<compile_context>
chip_gen: v7x
topology: tpu7x:2x2x1
jax: 0.10.0
libtpu: 0.0.40
codegen_flags: <defaults>
</compile_context>

<pallas_src>
import math

import jax
import jax.numpy as jnp
from jax.experimental import pallas as pl
from jax.experimental.pallas import tpu as pltpu

# ------------------------- configuration (small shapes) -------------------------
B = 2          # batch
L = 16         # window size / sequence length
D_MODEL = 32   # model dim
N_HEADS = 4
E_HEAD = D_MODEL // N_HEADS
D_FF = 4 * D_MODEL
EPS_LN = 1e-5  # PyTorch LayerNorm default eps

PROJ_W = 3 * D_MODEL + N_HEADS   # 100 useful columns of the fused projection
PROJ_PAD = 128                   # lane-pad the fused projection to a full 128-lane tile
assert PROJ_PAD == D_FF          # lets the fused projection bias share the vecs slab

_LN3 = math.log(3.0)
_INV_SQRT_2PI = 1.0 / math.sqrt(2.0 * math.pi)
_SCALE = 1.0 / math.sqrt(E_HEAD)


# ------------------------------- Pallas kernel ----------------------------------
def _make_kernel(bb):
    """Kernel processing `bb` batch rows per grid step (bb is static)."""

    def kernel(x_ref, nhd2_ref, w_in_ref, wo_ref, w1_ref, w2_ref, vecs_ref,
               out_ref, attn_ref):
        # Stack the bb batch rows into one (bb*L, D) slab so projection / FFN / LN
        # run as single wide passes.
        if bb == 1:
            x = x_ref[0]
        else:
            x = jnp.concatenate([x_ref[b] for b in range(bb)], axis=0)

        neg_half_d2 = nhd2_ref[...]                     # -0.5 * dist^2 (precomputed)

        vecs = vecs_ref[...]                            # (8, 128) packed bias/gain slab
        bo, g1, be1 = vecs[0, :D_MODEL], vecs[1, :D_MODEL], vecs[2, :D_MODEL]
        g2, be2, b2 = vecs[3, :D_MODEL], vecs[4, :D_MODEL], vecs[5, :D_MODEL]
        b1 = vecs[6, :]                                 # (D_FF,)
        b_in = vecs[7, :]                               # fused q/k/v/sigma bias (128,)

        # Fused q/k/v/sigma projection: one (bb*L, D) x (D, 128) MXU op.
        # 1/sqrt(E) is already folded into the q columns, 5.0 into the sigma columns.
        qkvs = jnp.dot(x, w_in_ref[...], preferred_element_type=jnp.float32) + b_in
        q = qkvs[:, 0:D_MODEL]
        k = qkvs[:, D_MODEL:2 * D_MODEL]
        v = qkvs[:, 2 * D_MODEL:3 * D_MODEL]
        sig_raw = qkvs[:, 3 * D_MODEL:3 * D_MODEL + N_HEADS]    # (bb*L, H), already *5

        # Sigma transform hoisted out of the head loop: one sigmoid + one exp pass.
        s_all = jnp.exp(_LN3 * (jax.nn.sigmoid(sig_raw) + 1e-5)) - 1.0   # 3**s - 1

        # One transpose of k instead of bb*H tiny in-loop transposes.
        k_t = k.T                                        # (D_MODEL, bb*L)
        wo = wo_ref[...]

        acc = []
        for b in range(bb):                              # static unroll over batch rows
            rs = slice(b * L, (b + 1) * L)
            acc_b = jnp.zeros((L, D_MODEL), jnp.float32)
            for h in range(N_HEADS):                     # static unroll over heads
                sl = slice(h * E_HEAD, (h + 1) * E_HEAD)

                # series = softmax(scale * q k^T)   (mask_flag=False -> no causal mask)
                scores = jnp.dot(q[rs, sl], k_t[sl, rs],
                                 preferred_element_type=jnp.float32)
                m = jnp.max(scores, axis=-1, keepdims=True)
                e = jnp.exp(scores - m)
                series_h = e / jnp.sum(e, axis=-1, keepdims=True)   # exact divide

                # Gaussian prior from per-row sigma (exact reciprocal for accuracy).
                sigma_h = jnp.broadcast_to(s_all[rs, h:h + 1], (L, L))
                inv_sig = 1.0 / sigma_h
                prior_h = _INV_SQRT_2PI * inv_sig * jnp.exp(
                    neg_half_d2 * inv_sig * inv_sig)

                attn_ref[b, h] = series_h
                attn_ref[b, N_HEADS + h] = prior_h
                attn_ref[b, 2 * N_HEADS + h] = sigma_h

                # Fused per-head output projection (no lane-concat of head slices).
                acc_b = acc_b + jnp.dot(
                    jnp.dot(series_h, v[rs, sl], preferred_element_type=jnp.float32),
                    wo[sl, :], preferred_element_type=jnp.float32)
            acc.append(acc_b)
        attn_out = acc[0] if bb == 1 else jnp.concatenate(acc, axis=0)

        # x = x + dropout(new_x); dropout is identity in eval mode
        x1 = x + attn_out + bo

        # norm1
        mu1 = jnp.mean(x1, axis=-1, keepdims=True)
        xc = x1 - mu1
        var1 = jnp.mean(xc * xc, axis=-1, keepdims=True)
        xn = xc * jax.lax.rsqrt(var1 + EPS_LN) * g1 + be1

        # conv1 (k=1) -> relu -> conv2 (k=1) as feature-dim matmuls; dropouts identity
        y = jnp.maximum(
            jnp.dot(xn, w1_ref[...], preferred_element_type=jnp.float32) + b1, 0.0)
        y = jnp.dot(y, w2_ref[...], preferred_element_type=jnp.float32) + b2

        # norm2(x + y)
        z = xn + y
        mu2 = jnp.mean(z, axis=-1, keepdims=True)
        zc = z - mu2
        var2 = jnp.mean(zc * zc, axis=-1, keepdims=True)
        out2 = zc * jax.lax.rsqrt(var2 + EPS_LN) * g2 + be2

        for b in range(bb):
            out_ref[b] = out2[b * L:(b + 1) * L, :]

    return kernel


# --------------------------------- wrapper ---------------------------------------
def _pack_weights(p):
    # Fold constants into the packed fused projection (host-side, one-time).
    wq = p["wq"] * _SCALE
    bq = p["bq"] * _SCALE
    wsig = p["wsig"] * 5.0
    bsig = p["bsig"] * 5.0
    w_in = jnp.concatenate([wq, p["wk"], p["wv"], wsig], axis=1)          # (D, 100)
    w_in = jnp.pad(w_in, ((0, 0), (0, PROJ_PAD - PROJ_W)))                # (D, 128)
    b_in = jnp.concatenate([bq, p["bk"], p["bv"], bsig], axis=1)          # (1, 100)
    b_in = jnp.pad(b_in, ((0, 0), (0, PROJ_PAD - PROJ_W)))                # (1, 128)
    # One (8, D_FF) slab for all per-feature vectors (biases / LN gains + fused proj bias).
    small = jnp.concatenate([p["bo"], p["g1"], p["be1"],
                             p["g2"], p["be2"], p["b2"]], axis=0)         # (6, D_MODEL)
    small = jnp.pad(small, ((0, 0), (0, D_FF - D_MODEL)))                 # (6, 128)
    vecs = jnp.concatenate([small, p["b1"], b_in], axis=0)                # (8, 128)
    return w_in, vecs


def _default_batch_per_step():
    # v7x has 2 TensorCores per chip: keep a parallel batch axis there. On single-TC
    # v5e/v6e (and CPU interpret) collapse the grid and process all B rows per step.
    try:
        kind = jax.devices()[0].device_kind.lower()
    except Exception:
        kind = ""
    if "v7" in kind or "7x" in kind:
        return 1
    return B


def encoder_layer(x, params, distances, batch_per_step=None):
    bb = _default_batch_per_step() if batch_per_step is None else batch_per_step
    assert B % bb == 0
    w_in, vecs = _pack_weights(params)
    neg_half_d2 = -0.5 * distances * distances

    in_specs = [
        pl.BlockSpec((bb, L, D_MODEL), lambda i: (i, 0, 0)),      # x: bb batch rows per step
        pl.BlockSpec((L, L), lambda i: (0, 0)),                   # -0.5*dist^2 (shared)
        pl.BlockSpec((D_MODEL, PROJ_PAD), lambda i: (0, 0)),      # fused q/k/v/sigma weight
        pl.BlockSpec((D_MODEL, D_MODEL), lambda i: (0, 0)),       # wo
        pl.BlockSpec((D_MODEL, D_FF), lambda i: (0, 0)),          # w1
        pl.BlockSpec((D_FF, D_MODEL), lambda i: (0, 0)),          # w2
        pl.BlockSpec((8, D_FF), lambda i: (0, 0)),                # packed bias/gain slab
    ]
    out_shape = (
        jax.ShapeDtypeStruct((B, L, D_MODEL), jnp.float32),             # layer output
        jax.ShapeDtypeStruct((B, 3 * N_HEADS, L, L), jnp.float32),      # [series | prior | sigma]
    )
    out_specs = (
        pl.BlockSpec((bb, L, D_MODEL), lambda i: (i, 0, 0)),
        pl.BlockSpec((bb, 3 * N_HEADS, L, L), lambda i: (i, 0, 0, 0)),
    )

    out, attn_pack = pl.pallas_call(
        _make_kernel(bb),
        out_shape=out_shape,
        grid=(B // bb,),
        in_specs=in_specs,
        out_specs=out_specs,
        compiler_params=pltpu.CompilerParams(dimension_semantics=("parallel",)),
    )(x, neg_half_d2, w_in, params["wo"], params["w1"], params["w2"], vecs)

    ap = attn_pack.reshape(B, 3, N_HEADS, L, L)
    return out, ap[:, 0], ap[:, 1], ap[:, 2]


# ------------------------- pure-JAX reference for checking -----------------------
def layer_norm(x, g, b):
    mu = jnp.mean(x, axis=-1, keepdims=True)
    var = jnp.mean((x - mu) ** 2, axis=-1, keepdims=True)
    return (x - mu) / jnp.sqrt(var + EPS_LN) * g + b


def reference(x, p, dist):
    q = (x @ p["wq"] + p["bq"][0]).reshape(B, L, N_HEADS, E_HEAD)
    k = (x @ p["wk"] + p["bk"][0]).reshape(B, L, N_HEADS, E_HEAD)
    v = (x @ p["wv"] + p["bv"][0]).reshape(B, L, N_HEADS, E_HEAD)
    sig = x @ p["wsig"] + p["bsig"][0]                       # (B, L, H)

    scores = jnp.einsum("blhe,bshe->bhls", q, k) / math.sqrt(E_HEAD)
    series = jax.nn.softmax(scores, axis=-1)

    sig = jnp.transpose(sig, (0, 2, 1))                      # (B, H, L)
    sig = jax.nn.sigmoid(sig * 5.0) + 1e-5
    sig = jnp.power(3.0, sig) - 1.0
    sig = jnp.broadcast_to(sig[..., None], (B, N_HEADS, L, L))
    prior = (1.0 / (math.sqrt(2.0 * math.pi) * sig)) * jnp.exp(-(dist ** 2) / (2.0 * sig ** 2))

    V = jnp.einsum("bhls,bshd->blhd", series, v).reshape(B, L, D_MODEL)
    new_x = V @ p["wo"] + p["bo"][0]

    x1 = x + new_x
    xn = layer_norm(x1, p["g1"][0], p["be1"][0])
    y = jnp.maximum(xn @ p["w1"] + p["b1"][0], 0.0)
    y = y @ p["w2"] + p["b2"][0]
    out = layer_norm(xn + y, p["g2"][0], p["be2"][0])
    return out, series, prior, sig


# ----------------------------------- main ----------------------------------------
if __name__ == "__main__":
    key = jax.random.PRNGKey(0)
    ks = jax.random.split(key, 16)

    def init(k, shape, s=0.05):
        return (s * jax.random.normal(k, shape)).astype(jnp.float32)

    params = {
        "wq": init(ks[0], (D_MODEL, D_MODEL)),  "bq": init(ks[1], (1, D_MODEL)),
        "wk": init(ks[2], (D_MODEL, D_MODEL)),  "bk": init(ks[3], (1, D_MODEL)),
        "wv": init(ks[4], (D_MODEL, D_MODEL)),  "bv": init(ks[5], (1, D_MODEL)),
        "wsig": init(ks[6], (D_MODEL, N_HEADS)), "bsig": init(ks[7], (1, N_HEADS)),
        "wo": init(ks[8], (D_MODEL, D_MODEL)),  "bo": init(ks[9], (1, D_MODEL)),
        "g1": jnp.ones((1, D_MODEL), jnp.float32),  "be1": jnp.zeros((1, D_MODEL), jnp.float32),
        "g2": jnp.ones((1, D_MODEL), jnp.float32),  "be2": jnp.zeros((1, D_MODEL), jnp.float32),
        "w1": init(ks[10], (D_MODEL, D_FF)),    "b1": init(ks[11], (1, D_FF)),
        "w2": init(ks[12], (D_FF, D_MODEL)),    "b2": init(ks[13], (1, D_MODEL)),
    }

    x = jax.random.normal(ks[14], (B, L, D_MODEL), dtype=jnp.float32)
    distances = jnp.abs(
        jnp.arange(L, dtype=jnp.float32)[:, None] - jnp.arange(L, dtype=jnp.float32)[None, :]
    )

    out, series, prior, sigma = jax.block_until_ready(encoder_layer(x, params, distances))

    r_out, r_series, r_prior, r_sigma = reference(x, params, distances)
    for got, want in ((out, r_out), (series, r_series), (prior, r_prior), (sigma, r_sigma)):
        assert jnp.allclose(got, want, rtol=2e-3, atol=1e-4), "mismatch vs reference"

    print("KERNEL_OK")
</pallas_src>

<mosaic_0001>
module attributes {stable_mosaic.version = 11 : i64} {
  func.func @kernel(%arg0: i32, %arg1: memref<2x16x32xf32, #tpu.memory_space<vmem>>, %arg2: memref<16x16xf32, #tpu.memory_space<vmem>>, %arg3: memref<32x128xf32, #tpu.memory_space<vmem>>, %arg4: memref<32x32xf32, #tpu.memory_space<vmem>>, %arg5: memref<32x128xf32, #tpu.memory_space<vmem>>, %arg6: memref<128x32xf32, #tpu.memory_space<vmem>>, %arg7: memref<8x128xf32, #tpu.memory_space<vmem>>, %arg8: memref<2x16x32xf32, #tpu.memory_space<vmem>>, %arg9: memref<2x12x16x16xf32, #tpu.memory_space<vmem>>) attributes {dimension_semantics = [#tpu.dimension_semantics<parallel>], iteration_bounds = array<i64: 1>, scalar_prefetch = 0 : i64, scratch_operands = 0 : i64, tpu.core_type = #tpu.core_type<tc>, window_params = [{transform_indices = @transform_0, window_bounds = array<i64: 2, 16, 32>}, {pipeline_mode = #tpu.pipeline_mode<synchronous>, transform_indices = @transform_1, window_bounds = array<i64: 16, 16>}, {pipeline_mode = #tpu.pipeline_mode<synchronous>, transform_indices = @transform_2, window_bounds = array<i64: 32, 128>}, {pipeline_mode = #tpu.pipeline_mode<synchronous>, transform_indices = @transform_3, window_bounds = array<i64: 32, 32>}, {pipeline_mode = #tpu.pipeline_mode<synchronous>, transform_indices = @transform_4, window_bounds = array<i64: 32, 128>}, {pipeline_mode = #tpu.pipeline_mode<synchronous>, transform_indices = @transform_5, window_bounds = array<i64: 128, 32>}, {pipeline_mode = #tpu.pipeline_mode<synchronous>, transform_indices = @transform_6, window_bounds = array<i64: 8, 128>}, {transform_indices = @transform_7, window_bounds = array<i64: 2, 16, 32>}, {transform_indices = @transform_8, window_bounds = array<i64: 2, 12, 16, 16>}]} {
    %c0 = arith.constant 0 : index
    %c0_0 = arith.constant 0 : index
    %c0_1 = arith.constant 0 : index
    %0 = vector.load %arg1[%c0, %c0_0, %c0_1] : memref<2x16x32xf32, #tpu.memory_space<vmem>>, vector<1x16x32xf32>
    %1 = vector.shape_cast %0 : vector<1x16x32xf32> to vector<16x32xf32>
    %c1 = arith.constant 1 : index
    %c0_2 = arith.constant 0 : index
    %c0_3 = arith.constant 0 : index
    %2 = vector.load %arg1[%c1, %c0_2, %c0_3] : memref<2x16x32xf32, #tpu.memory_space<vmem>>, vector<1x16x32xf32>
    %3 = vector.shape_cast %2 : vector<1x16x32xf32> to vector<16x32xf32>
    %4 = tpu.concatenate %1, %3 in 0 : vector<16x32xf32>, vector<16x32xf32> -> vector<32x32xf32>
    %c0_4 = arith.constant 0 : index
    %c0_5 = arith.constant 0 : index
    %5 = vector.load %arg2[%c0_4, %c0_5] : memref<16x16xf32, #tpu.memory_space<vmem>>, vector<16x16xf32>
    %c0_6 = arith.constant 0 : index
    %c0_7 = arith.constant 0 : index
    %6 = vector.load %arg7[%c0_6, %c0_7] : memref<8x128xf32, #tpu.memory_space<vmem>>, vector<8x128xf32>
    %7 = vector.extract_strided_slice %6 {offsets = [0, 0], sizes = [1, 32], strides = [1, 1]} : vector<8x128xf32> to vector<1x32xf32>
    %8 = vector.shape_cast %7 : vector<1x32xf32> to vector<32xf32>
    %9 = vector.extract_strided_slice %6 {offsets = [1, 0], sizes = [1, 32], strides = [1, 1]} : vector<8x128xf32> to vector<1x32xf32>
    %10 = vector.shape_cast %9 : vector<1x32xf32> to vector<32xf32>
    %11 = vector.extract_strided_slice %6 {offsets = [2, 0], sizes = [1, 32], strides = [1, 1]} : vector<8x128xf32> to vector<1x32xf32>
    %12 = vector.shape_cast %11 : vector<1x32xf32> to vector<32xf32>
    %13 = vector.extract_strided_slice %6 {offsets = [3, 0], sizes = [1, 32], strides = [1, 1]} : vector<8x128xf32> to vector<1x32xf32>
    %14 = vector.shape_cast %13 : vector<1x32xf32> to vector<32xf32>
    %15 = vector.extract_strided_slice %6 {offsets = [4, 0], sizes = [1, 32], strides = [1, 1]} : vector<8x128xf32> to vector<1x32xf32>
    %16 = vector.shape_cast %15 : vector<1x32xf32> to vector<32xf32>
    %17 = vector.extract_strided_slice %6 {offsets = [5, 0], sizes = [1, 32], strides = [1, 1]} : vector<8x128xf32> to vector<1x32xf32>
    %18 = vector.shape_cast %17 : vector<1x32xf32> to vector<32xf32>
    %19 = vector.extract_strided_slice %6 {offsets = [6, 0], sizes = [1, 128], strides = [1, 1]} : vector<8x128xf32> to vector<1x128xf32>
    %20 = vector.shape_cast %19 : vector<1x128xf32> to vector<128xf32>
    %21 = vector.extract_strided_slice %6 {offsets = [7, 0], sizes = [1, 128], strides = [1, 1]} : vector<8x128xf32> to vector<1x128xf32>
    %22 = vector.shape_cast %21 : vector<1x128xf32> to vector<128xf32>
    %c0_8 = arith.constant 0 : index
    %c0_9 = arith.constant 0 : index
    %23 = vector.load %arg3[%c0_8, %c0_9] : memref<32x128xf32, #tpu.memory_space<vmem>>, vector<32x128xf32>
    %cst = arith.constant dense<0.000000e+00> : vector<32x128xf32>
    %24 = tpu.matmul %4, %23, %cst {dimension_numbers = #tpu.dot_dimension_numbers<[1], [0], [0], [1], [0, 0, 1, 1], [], []>} : vector<32x32xf32>, vector<32x128xf32>, vector<32x128xf32> -> vector<32x128xf32>
    %25 = vector.shape_cast %22 : vector<128xf32> to vector<1x128xf32>
    %26 = vector.broadcast %25 : vector<1x128xf32> to vector<32x128xf32>
    %27 = arith.addf %24, %26 : vector<32x128xf32>
    %28 = vector.extract_strided_slice %27 {offsets = [0, 0], sizes = [32, 32], strides = [1, 1]} : vector<32x128xf32> to vector<32x32xf32>
    %29 = vector.extract_strided_slice %27 {offsets = [0, 32], sizes = [32, 32], strides = [1, 1]} : vector<32x128xf32> to vector<32x32xf32>
    %30 = vector.extract_strided_slice %27 {offsets = [0, 64], sizes = [32, 32], strides = [1, 1]} : vector<32x128xf32> to vector<32x32xf32>
    %31 = vector.extract_strided_slice %27 {offsets = [0, 96], sizes = [32, 4], strides = [1, 1]} : vector<32x128xf32> to vector<32x4xf32>
    %32 = arith.negf %31 : vector<32x4xf32>
    %33 = math.exp %32 : vector<32x4xf32>
    %cst_10 = arith.constant 1.000000e+00 : f32
    %34 = vector.broadcast %cst_10 : f32 to vector<32x4xf32>
    %35 = arith.addf %34, %33 : vector<32x4xf32>
    %36 = arith.divf %34, %35 : vector<32x4xf32>
    %cst_11 = arith.constant 9.99999974E-6 : f32
    %37 = vector.broadcast %cst_11 : f32 to vector<32x4xf32>
    %38 = arith.addf %36, %37 : vector<32x4xf32>
    %cst_12 = arith.constant 1.09861231 : f32
    %39 = vector.broadcast %cst_12 : f32 to vector<32x4xf32>
    %40 = arith.mulf %39, %38 : vector<32x4xf32>
    %41 = math.exp %40 : vector<32x4xf32>
    %cst_13 = arith.constant 1.000000e+00 : f32
    %42 = vector.broadcast %cst_13 : f32 to vector<32x4xf32>
    %43 = arith.subf %41, %42 : vector<32x4xf32>
    %44 = tpu.transpose %29, [1, 0] : vector<32x32xf32> -> vector<32x32xf32>
    %c0_14 = arith.constant 0 : index
    %c0_15 = arith.constant 0 : index
    %45 = vector.load %arg4[%c0_14, %c0_15] : memref<32x32xf32, #tpu.memory_space<vmem>>, vector<32x32xf32>
    %cst_16 = arith.constant 0.000000e+00 : f32
    %46 = vector.broadcast %cst_16 : f32 to vector<16x32xf32>
    %47 = vector.extract_strided_slice %28 {offsets = [0, 0], sizes = [16, 8], strides = [1, 1]} : vector<32x32xf32> to vector<16x8xf32>
    %48 = vector.extract_strided_slice %44 {offsets = [0, 0], sizes = [8, 16], strides = [1, 1]} : vector<32x32xf32> to vector<8x16xf32>
    %cst_17 = arith.constant dense<0.000000e+00> : vector<16x16xf32>
    %49 = tpu.matmul %47, %48, %cst_17 {dimension_numbers = #tpu.dot_dimension_numbers<[1], [0], [0], [1], [0, 0, 1, 1], [], []>} : vector<16x8xf32>, vector<8x16xf32>, vector<16x16xf32> -> vector<16x16xf32>
    %cst_18 = arith.constant dense<0xFF800000> : vector<16xf32>
    %50 = vector.multi_reduction <maximumf>, %49, %cst_18 [1] : vector<16x16xf32> to vector<16xf32>
    %51 = vector.shape_cast %50 : vector<16xf32> to vector<16x1xf32>
    %52 = vector.broadcast %51 : vector<16x1xf32> to vector<16x16xf32>
    %53 = arith.subf %49, %52 : vector<16x16xf32>
    %54 = math.exp %53 : vector<16x16xf32>
    %cst_19 = arith.constant dense<0.000000e+00> : vector<16xf32>
    %55 = vector.multi_reduction <add>, %54, %cst_19 [1] : vector<16x16xf32> to vector<16xf32>
    %56 = vector.shape_cast %55 : vector<16xf32> to vector<16x1xf32>
    %57 = vector.broadcast %56 : vector<16x1xf32> to vector<16x16xf32>
    %58 = arith.divf %54, %57 : vector<16x16xf32>
    %59 = vector.extract_strided_slice %43 {offsets = [0, 0], sizes = [16, 1], strides = [1, 1]} : vector<32x4xf32> to vector<16x1xf32>
    %60 = vector.shape_cast %59 : vector<16x1xf32> to vector<16x1xf32>
    %61 = vector.broadcast %60 : vector<16x1xf32> to vector<16x16xf32>
    %cst_20 = arith.constant 1.000000e+00 : f32
    %62 = vector.broadcast %cst_20 : f32 to vector<16x16xf32>
    %63 = arith.divf %62, %61 : vector<16x16xf32>
    %cst_21 = arith.constant 0.398942292 : f32
    %64 = vector.broadcast %cst_21 : f32 to vector<16x16xf32>
    %65 = arith.mulf %64, %63 : vector<16x16xf32>
    %66 = arith.mulf %5, %63 : vector<16x16xf32>
    %67 = arith.mulf %66, %63 : vector<16x16xf32>
    %68 = math.exp %67 : vector<16x16xf32>
    %69 = arith.mulf %65, %68 : vector<16x16xf32>
    %c0_22 = arith.constant 0 : index
    %c0_23 = arith.constant 0 : index
    %c0_24 = arith.constant 0 : index
    %c0_25 = arith.constant 0 : index
    %70 = vector.load %arg9[%c0_22, %c0_23, %c0_24, %c0_25] : memref<2x12x16x16xf32, #tpu.memory_space<vmem>>, vector<1x1x16x16xf32>
    %71 = vector.shape_cast %70 : vector<1x1x16x16xf32> to vector<16x16xf32>
    %72 = vector.shape_cast %58 : vector<16x16xf32> to vector<1x1x16x16xf32>
    tpu.vector_store %arg9[%c0_22, %c0_23, %c0_24, %c0_25], %72 {strides = array<i32>} : memref<2x12x16x16xf32, #tpu.memory_space<vmem>>, vector<1x1x16x16xf32>,
    %c0_26 = arith.constant 0 : index
    %c4 = arith.constant 4 : index
    %c0_27 = arith.constant 0 : index
    %c0_28 = arith.constant 0 : index
    %73 = vector.load %arg9[%c0_26, %c4, %c0_27, %c0_28] : memref<2x12x16x16xf32, #tpu.memory_space<vmem>>, vector<1x1x16x16xf32>
    %74 = vector.shape_cast %73 : vector<1x1x16x16xf32> to vector<16x16xf32>
    %75 = vector.shape_cast %69 : vector<16x16xf32> to vector<1x1x16x16xf32>
    tpu.vector_store %arg9[%c0_26, %c4, %c0_27, %c0_28], %75 {strides = array<i32>} : memref<2x12x16x16xf32, #tpu.memory_space<vmem>>, vector<1x1x16x16xf32>,
    %c0_29 = arith.constant 0 : index
    %c8 = arith.constant 8 : index
    %c0_30 = arith.constant 0 : index
    %c0_31 = arith.constant 0 : index
    %76 = vector.load %arg9[%c0_29, %c8, %c0_30, %c0_31] : memref<2x12x16x16xf32, #tpu.memory_space<vmem>>, vector<1x1x16x16xf32>
    %77 = vector.shape_cast %76 : vector<1x1x16x16xf32> to vector<16x16xf32>
    %78 = vector.shape_cast %61 : vector<16x16xf32> to vector<1x1x16x16xf32>
    tpu.vector_store %arg9[%c0_29, %c8, %c0_30, %c0_31], %78 {strides = array<i32>} : memref<2x12x16x16xf32, #tpu.memory_space<vmem>>, vector<1x1x16x16xf32>,
    %79 = vector.extract_strided_slice %30 {offsets = [0, 0], sizes = [16, 8], strides = [1, 1]} : vector<32x32xf32> to vector<16x8xf32>
    %cst_32 = arith.constant dense<0.000000e+00> : vector<16x8xf32>
    %80 = tpu.matmul %58, %79, %cst_32 {dimension_numbers = #tpu.dot_dimension_numbers<[1], [0], [0], [1], [0, 0, 1, 1], [], []>} : vector<16x16xf32>, vector<16x8xf32>, vector<16x8xf32> -> vector<16x8xf32>
    %81 = vector.extract_strided_slice %45 {offsets = [0, 0], sizes = [8, 32], strides = [1, 1]} : vector<32x32xf32> to vector<8x32xf32>
    %cst_33 = arith.constant dense<0.000000e+00> : vector<16x32xf32>
    %82 = tpu.matmul %80, %81, %cst_33 {dimension_numbers = #tpu.dot_dimension_numbers<[1], [0], [0], [1], [0, 0, 1, 1], [], []>} : vector<16x8xf32>, vector<8x32xf32>, vector<16x32xf32> -> vector<16x32xf32>
    %83 = arith.addf %46, %82 : vector<16x32xf32>
    %84 = vector.extract_strided_slice %28 {offsets = [0, 8], sizes = [16, 8], strides = [1, 1]} : vector<32x32xf32> to vector<16x8xf32>
    %85 = vector.extract_strided_slice %44 {offsets = [8, 0], sizes = [8, 16], strides = [1, 1]} : vector<32x32xf32> to vector<8x16xf32>
    %cst_34 = arith.constant dense<0.000000e+00> : vector<16x16xf32>
    %86 = tpu.matmul %84, %85, %cst_34 {dimension_numbers = #tpu.dot_dimension_numbers<[1], [0], [0], [1], [0, 0, 1, 1], [], []>} : vector<16x8xf32>, vector<8x16xf32>, vector<16x16xf32> -> vector<16x16xf32>
    %cst_35 = arith.constant dense<0xFF800000> : vector<16xf32>
    %87 = vector.multi_reduction <maximumf>, %86, %cst_35 [1] : vector<16x16xf32> to vector<16xf32>
    %88 = vector.shape_cast %87 : vector<16xf32> to vector<16x1xf32>
    %89 = vector.broadcast %88 : vector<16x1xf32> to vector<16x16xf32>
    %90 = arith.subf %86, %89 : vector<16x16xf32>
    %91 = math.exp %90 : vector<16x16xf32>
    %cst_36 = arith.constant dense<0.000000e+00> : vector<16xf32>
    %92 = vector.multi_reduction <add>, %91, %cst_36 [1] : vector<16x16xf32> to vector<16xf32>
    %93 = vector.shape_cast %92 : vector<16xf32> to vector<16x1xf32>
    %94 = vector.broadcast %93 : vector<16x1xf32> to vector<16x16xf32>
    %95 = arith.divf %91, %94 : vector<16x16xf32>
    %96 = vector.extract_strided_slice %43 {offsets = [0, 1], sizes = [16, 1], strides = [1, 1]} : vector<32x4xf32> to vector<16x1xf32>
    %97 = vector.shape_cast %96 : vector<16x1xf32> to vector<16x1xf32>
    %98 = vector.broadcast %97 : vector<16x1xf32> to vector<16x16xf32>
    %cst_37 = arith.constant 1.000000e+00 : f32
    %99 = vector.broadcast %cst_37 : f32 to vector<16x16xf32>
    %100 = arith.divf %99, %98 : vector<16x16xf32>
    %cst_38 = arith.constant 0.398942292 : f32
    %101 = vector.broadcast %cst_38 : f32 to vector<16x16xf32>
    %102 = arith.mulf %101, %100 : vector<16x16xf32>
    %103 = arith.mulf %5, %100 : vector<16x16xf32>
    %104 = arith.mulf %103, %100 : vector<16x16xf32>
    %105 = math.exp %104 : vector<16x16xf32>
    %106 = arith.mulf %102, %105 : vector<16x16xf32>
    %c0_39 = arith.constant 0 : index
    %c1_40 = arith.constant 1 : index
    %c0_41 = arith.constant 0 : index
    %c0_42 = arith.constant 0 : index
    %107 = vector.load %arg9[%c0_39, %c1_40, %c0_41, %c0_42] : memref<2x12x16x16xf32, #tpu.memory_space<vmem>>, vector<1x1x16x16xf32>
    %108 = vector.shape_cast %107 : vector<1x1x16x16xf32> to vector<16x16xf32>
    %109 = vector.shape_cast %95 : vector<16x16xf32> to vector<1x1x16x16xf32>
    tpu.vector_store %arg9[%c0_39, %c1_40, %c0_41, %c0_42], %109 {strides = array<i32>} : memref<2x12x16x16xf32, #tpu.memory_space<vmem>>, vector<1x1x16x16xf32>,
    %c0_43 = arith.constant 0 : index
    %c5 = arith.constant 5 : index
    %c0_44 = arith.constant 0 : index
    %c0_45 = arith.constant 0 : index
    %110 = vector.load %arg9[%c0_43, %c5, %c0_44, %c0_45] : memref<2x12x16x16xf32, #tpu.memory_space<vmem>>, vector<1x1x16x16xf32>
    %111 = vector.shape_cast %110 : vector<1x1x16x16xf32> to vector<16x16xf32>
    %112 = vector.shape_cast %106 : vector<16x16xf32> to vector<1x1x16x16xf32>
    tpu.vector_store %arg9[%c0_43, %c5, %c0_44, %c0_45], %112 {strides = array<i32>} : memref<2x12x16x16xf32, #tpu.memory_space<vmem>>, vector<1x1x16x16xf32>,
    %c0_46 = arith.constant 0 : index
    %c9 = arith.constant 9 : index
    %c0_47 = arith.constant 0 : index
    %c0_48 = arith.constant 0 : index
    %113 = vector.load %arg9[%c0_46, %c9, %c0_47, %c0_48] : memref<2x12x16x16xf32, #tpu.memory_space<vmem>>, vector<1x1x16x16xf32>
    %114 = vector.shape_cast %113 : vector<1x1x16x16xf32> to vector<16x16xf32>
    %115 = vector.shape_cast %98 : vector<16x16xf32> to vector<1x1x16x16xf32>
    tpu.vector_store %arg9[%c0_46, %c9, %c0_47, %c0_48], %115 {strides = array<i32>} : memref<2x12x16x16xf32, #tpu.memory_space<vmem>>, vector<1x1x16x16xf32>,
    %116 = vector.extract_strided_slice %30 {offsets = [0, 8], sizes = [16, 8], strides = [1, 1]} : vector<32x32xf32> to vector<16x8xf32>
    %cst_49 = arith.constant dense<0.000000e+00> : vector<16x8xf32>
    %117 = tpu.matmul %95, %116, %cst_49 {dimension_numbers = #tpu.dot_dimension_numbers<[1], [0], [0], [1], [0, 0, 1, 1], [], []>} : vector<16x16xf32>, vector<16x8xf32>, vector<16x8xf32> -> vector<16x8xf32>
    %118 = vector.extract_strided_slice %45 {offsets = [8, 0], sizes = [8, 32], strides = [1, 1]} : vector<32x32xf32> to vector<8x32xf32>
    %cst_50 = arith.constant dense<0.000000e+00> : vector<16x32xf32>
    %119 = tpu.matmul %117, %118, %cst_50 {dimension_numbers = #tpu.dot_dimension_numbers<[1], [0], [0], [1], [0, 0, 1, 1], [], []>} : vector<16x8xf32>, vector<8x32xf32>, vector<16x32xf32> -> vector<16x32xf32>
    %120 = arith.addf %83, %119 : vector<16x32xf32>
    %121 = vector.extract_strided_slice %28 {offsets = [0, 16], sizes = [16, 8], strides = [1, 1]} : vector<32x32xf32> to vector<16x8xf32>
    %122 = vector.extract_strided_slice %44 {offsets = [16, 0], sizes = [8, 16], strides = [1, 1]} : vector<32x32xf32> to vector<8x16xf32>
    %cst_51 = arith.constant dense<0.000000e+00> : vector<16x16xf32>
    %123 = tpu.matmul %121, %122, %cst_51 {dimension_numbers = #tpu.dot_dimension_numbers<[1], [0], [0], [1], [0, 0, 1, 1], [], []>} : vector<16x8xf32>, vector<8x16xf32>, vector<16x16xf32> -> vector<16x16xf32>
    %cst_52 = arith.constant dense<0xFF800000> : vector<16xf32>
    %124 = vector.multi_reduction <maximumf>, %123, %cst_52 [1] : vector<16x16xf32> to vector<16xf32>
    %125 = vector.shape_cast %124 : vector<16xf32> to vector<16x1xf32>
    %126 = vector.broadcast %125 : vector<16x1xf32> to vector<16x16xf32>
    %127 = arith.subf %123, %126 : vector<16x16xf32>
    %128 = math.exp %127 : vector<16x16xf32>
    %cst_53 = arith.constant dense<0.000000e+00> : vector<16xf32>
    %129 = vector.multi_reduction <add>, %128, %cst_53 [1] : vector<16x16xf32> to vector<16xf32>
    %130 = vector.shape_cast %129 : vector<16xf32> to vector<16x1xf32>
    %131 = vector.broadcast %130 : vector<16x1xf32> to vector<16x16xf32>
    %132 = arith.divf %128, %131 : vector<16x16xf32>
    %133 = vector.extract_strided_slice %43 {offsets = [0, 2], sizes = [16, 1], strides = [1, 1]} : vector<32x4xf32> to vector<16x1xf32>
    %134 = vector.shape_cast %133 : vector<16x1xf32> to vector<16x1xf32>
    %135 = vector.broadcast %134 : vector<16x1xf32> to vector<16x16xf32>
    %cst_54 = arith.constant 1.000000e+00 : f32
    %136 = vector.broadcast %cst_54 : f32 to vector<16x16xf32>
    %137 = arith.divf %136, %135 : vector<16x16xf32>
    %cst_55 = arith.constant 0.398942292 : f32
    %138 = vector.broadcast %cst_55 : f32 to vector<16x16xf32>
    %139 = arith.mulf %138, %137 : vector<16x16xf32>
    %140 = arith.mulf %5, %137 : vector<16x16xf32>
    %141 = arith.mulf %140, %137 : vector<16x16xf32>
    %142 = math.exp %141 : vector<16x16xf32>
    %143 = arith.mulf %139, %142 : vector<16x16xf32>
    %c0_56 = arith.constant 0 : index
    %c2 = arith.constant 2 : index
    %c0_57 = arith.constant 0 : index
    %c0_58 = arith.constant 0 : index
    %144 = vector.load %arg9[%c0_56, %c2, %c0_57, %c0_58] : memref<2x12x16x16xf32, #tpu.memory_space<vmem>>, vector<1x1x16x16xf32>
    %145 = vector.shape_cast %144 : vector<1x1x16x16xf32> to vector<16x16xf32>
    %146 = vector.shape_cast %132 : vector<16x16xf32> to vector<1x1x16x16xf32>
    tpu.vector_store %arg9[%c0_56, %c2, %c0_57, %c0_58], %146 {strides = array<i32>} : memref<2x12x16x16xf32, #tpu.memory_space<vmem>>, vector<1x1x16x16xf32>,
    %c0_59 = arith.constant 0 : index
    %c6 = arith.constant 6 : index
    %c0_60 = arith.constant 0 : index
    %c0_61 = arith.constant 0 : index
    %147 = vector.load %arg9[%c0_59, %c6, %c0_60, %c0_61] : memref<2x12x16x16xf32, #tpu.memory_space<vmem>>, vector<1x1x16x16xf32>
    %148 = vector.shape_cast %147 : vector<1x1x16x16xf32> to vector<16x16xf32>
    %149 = vector.shape_cast %143 : vector<16x16xf32> to vector<1x1x16x16xf32>
    tpu.vector_store %arg9[%c0_59, %c6, %c0_60, %c0_61], %149 {strides = array<i32>} : memref<2x12x16x16xf32, #tpu.memory_space<vmem>>, vector<1x1x16x16xf32>,
    %c0_62 = arith.constant 0 : index
    %c10 = arith.constant 10 : index
    %c0_63 = arith.constant 0 : index
    %c0_64 = arith.constant 0 : index
    %150 = vector.load %arg9[%c0_62, %c10, %c0_63, %c0_64] : memref<2x12x16x16xf32, #tpu.memory_space<vmem>>, vector<1x1x16x16xf32>
    %151 = vector.shape_cast %150 : vector<1x1x16x16xf32> to vector<16x16xf32>
    %152 = vector.shape_cast %135 : vector<16x16xf32> to vector<1x1x16x16xf32>
    tpu.vector_store %arg9[%c0_62, %c10, %c0_63, %c0_64], %152 {strides = array<i32>} : memref<2x12x16x16xf32, #tpu.memory_space<vmem>>, vector<1x1x16x16xf32>,
    %153 = vector.extract_strided_slice %30 {offsets = [0, 16], sizes = [16, 8], strides = [1, 1]} : vector<32x32xf32> to vector<16x8xf32>
    %cst_65 = arith.constant dense<0.000000e+00> : vector<16x8xf32>
    %154 = tpu.matmul %132, %153, %cst_65 {dimension_numbers = #tpu.dot_dimension_numbers<[1], [0], [0], [1], [0, 0, 1, 1], [], []>} : vector<16x16xf32>, vector<16x8xf32>, vector<16x8xf32> -> vector<16x8xf32>
    %155 = vector.extract_strided_slice %45 {offsets = [16, 0], sizes = [8, 32], strides = [1, 1]} : vector<32x32xf32> to vector<8x32xf32>
    %cst_66 = arith.constant dense<0.000000e+00> : vector<16x32xf32>
    %156 = tpu.matmul %154, %155, %cst_66 {dimension_numbers = #tpu.dot_dimension_numbers<[1], [0], [0], [1], [0, 0, 1, 1], [], []>} : vector<16x8xf32>, vector<8x32xf32>, vector<16x32xf32> -> vector<16x32xf32>
    %157 = arith.addf %120, %156 : vector<16x32xf32>
    %158 = vector.extract_strided_slice %28 {offsets = [0, 24], sizes = [16, 8], strides = [1, 1]} : vector<32x32xf32> to vector<16x8xf32>
    %159 = vector.extract_strided_slice %44 {offsets = [24, 0], sizes = [8, 16], strides = [1, 1]} : vector<32x32xf32> to vector<8x16xf32>
    %cst_67 = arith.constant dense<0.000000e+00> : vector<16x16xf32>
    %160 = tpu.matmul %158, %159, %cst_67 {dimension_numbers = #tpu.dot_dimension_numbers<[1], [0], [0], [1], [0, 0, 1, 1], [], []>} : vector<16x8xf32>, vector<8x16xf32>, vector<16x16xf32> -> vector<16x16xf32>
    %cst_68 = arith.constant dense<0xFF800000> : vector<16xf32>
    %161 = vector.multi_reduction <maximumf>, %160, %cst_68 [1] : vector<16x16xf32> to vector<16xf32>
    %162 = vector.shape_cast %161 : vector<16xf32> to vector<16x1xf32>
    %163 = vector.broadcast %162 : vector<16x1xf32> to vector<16x16xf32>
    %164 = arith.subf %160, %163 : vector<16x16xf32>
    %165 = math.exp %164 : vector<16x16xf32>
    %cst_69 = arith.constant dense<0.000000e+00> : vector<16xf32>
    %166 = vector.multi_reduction <add>, %165, %cst_69 [1] : vector<16x16xf32> to vector<16xf32>
    %167 = vector.shape_cast %166 : vector<16xf32> to vector<16x1xf32>
    %168 = vector.broadcast %167 : vector<16x1xf32> to vector<16x16xf32>
    %169 = arith.divf %165, %168 : vector<16x16xf32>
    %170 = vector.extract_strided_slice %43 {offsets = [0, 3], sizes = [16, 1], strides = [1, 1]} : vector<32x4xf32> to vector<16x1xf32>
    %171 = vector.shape_cast %170 : vector<16x1xf32> to vector<16x1xf32>
    %172 = vector.broadcast %171 : vector<16x1xf32> to vector<16x16xf32>
    %cst_70 = arith.constant 1.000000e+00 : f32
    %173 = vector.broadcast %cst_70 : f32 to vector<16x16xf32>
    %174 = arith.divf %173, %172 : vector<16x16xf32>
    %cst_71 = arith.constant 0.398942292 : f32
    %175 = vector.broadcast %cst_71 : f32 to vector<16x16xf32>
    %176 = arith.mulf %175, %174 : vector<16x16xf32>
    %177 = arith.mulf %5, %174 : vector<16x16xf32>
    %178 = arith.mulf %177, %174 : vector<16x16xf32>
    %179 = math.exp %178 : vector<16x16xf32>
    %180 = arith.mulf %176, %179 : vector<16x16xf32>
    %c0_72 = arith.constant 0 : index
    %c3 = arith.constant 3 : index
    %c0_73 = arith.constant 0 : index
    %c0_74 = arith.constant 0 : index
    %181 = vector.load %arg9[%c0_72, %c3, %c0_73, %c0_74] : memref<2x12x16x16xf32, #tpu.memory_space<vmem>>, vector<1x1x16x16xf32>
    %182 = vector.shape_cast %181 : vector<1x1x16x16xf32> to vector<16x16xf32>
    %183 = vector.shape_cast %169 : vector<16x16xf32> to vector<1x1x16x16xf32>
    tpu.vector_store %arg9[%c0_72, %c3, %c0_73, %c0_74], %183 {strides = array<i32>} : memref<2x12x16x16xf32, #tpu.memory_space<vmem>>, vector<1x1x16x16xf32>,
    %c0_75 = arith.constant 0 : index
    %c7 = arith.constant 7 : index
    %c0_76 = arith.constant 0 : index
    %c0_77 = arith.constant 0 : index
    %184 = vector.load %arg9[%c0_75, %c7, %c0_76, %c0_77] : memref<2x12x16x16xf32, #tpu.memory_space<vmem>>, vector<1x1x16x16xf32>
    %185 = vector.shape_cast %184 : vector<1x1x16x16xf32> to vector<16x16xf32>
    %186 = vector.shape_cast %180 : vector<16x16xf32> to vector<1x1x16x16xf32>
    tpu.vector_store %arg9[%c0_75, %c7, %c0_76, %c0_77], %186 {strides = array<i32>} : memref<2x12x16x16xf32, #tpu.memory_space<vmem>>, vector<1x1x16x16xf32>,
    %c0_78 = arith.constant 0 : index
    %c11 = arith.constant 11 : index
    %c0_79 = arith.constant 0 : index
    %c0_80 = arith.constant 0 : index
    %187 = vector.load %arg9[%c0_78, %c11, %c0_79, %c0_80] : memref<2x12x16x16xf32, #tpu.memory_space<vmem>>, vector<1x1x16x16xf32>
    %188 = vector.shape_cast %187 : vector<1x1x16x16xf32> to vector<16x16xf32>
    %189 = vector.shape_cast %172 : vector<16x16xf32> to vector<1x1x16x16xf32>
    tpu.vector_store %arg9[%c0_78, %c11, %c0_79, %c0_80], %189 {strides = array<i32>} : memref<2x12x16x16xf32, #tpu.memory_space<vmem>>, vector<1x1x16x16xf32>,
    %190 = vector.extract_strided_slice %30 {offsets = [0, 24], sizes = [16, 8], strides = [1, 1]} : vector<32x32xf32> to vector<16x8xf32>
    %cst_81 = arith.constant dense<0.000000e+00> : vector<16x8xf32>
    %191 = tpu.matmul %169, %190, %cst_81 {dimension_numbers = #tpu.dot_dimension_numbers<[1], [0], [0], [1], [0, 0, 1, 1], [], []>} : vector<16x16xf32>, vector<16x8xf32>, vector<16x8xf32> -> vector<16x8xf32>
    %192 = vector.extract_strided_slice %45 {offsets = [24, 0], sizes = [8, 32], strides = [1, 1]} : vector<32x32xf32> to vector<8x32xf32>
    %cst_82 = arith.constant dense<0.000000e+00> : vector<16x32xf32>
    %193 = tpu.matmul %191, %192, %cst_82 {dimension_numbers = #tpu.dot_dimension_numbers<[1], [0], [0], [1], [0, 0, 1, 1], [], []>} : vector<16x8xf32>, vector<8x32xf32>, vector<16x32xf32> -> vector<16x32xf32>
    %194 = arith.addf %157, %193 : vector<16x32xf32>
    %cst_83 = arith.constant 0.000000e+00 : f32
    %195 = vector.broadcast %cst_83 : f32 to vector<16x32xf32>
    %196 = vector.extract_strided_slice %28 {offsets = [16, 0], sizes = [16, 8], strides = [1, 1]} : vector<32x32xf32> to vector<16x8xf32>
    %197 = vector.extract_strided_slice %44 {offsets = [0, 16], sizes = [8, 16], strides = [1, 1]} : vector<32x32xf32> to vector<8x16xf32>
    %cst_84 = arith.constant dense<0.000000e+00> : vector<16x16xf32>
    %198 = tpu.matmul %196, %197, %cst_84 {dimension_numbers = #tpu.dot_dimension_numbers<[1], [0], [0], [1], [0, 0, 1, 1], [], []>} : vector<16x8xf32>, vector<8x16xf32>, vector<16x16xf32> -> vector<16x16xf32>
    %cst_85 = arith.constant dense<0xFF800000> : vector<16xf32>
    %199 = vector.multi_reduction <maximumf>, %198, %cst_85 [1] : vector<16x16xf32> to vector<16xf32>
    %200 = vector.shape_cast %199 : vector<16xf32> to vector<16x1xf32>
    %201 = vector.broadcast %200 : vector<16x1xf32> to vector<16x16xf32>
    %202 = arith.subf %198, %201 : vector<16x16xf32>
    %203 = math.exp %202 : vector<16x16xf32>
    %cst_86 = arith.constant dense<0.000000e+00> : vector<16xf32>
    %204 = vector.multi_reduction <add>, %203, %cst_86 [1] : vector<16x16xf32> to vector<16xf32>
    %205 = vector.shape_cast %204 : vector<16xf32> to vector<16x1xf32>
    %206 = vector.broadcast %205 : vector<16x1xf32> to vector<16x16xf32>
    %207 = arith.divf %203, %206 : vector<16x16xf32>
    %208 = vector.extract_strided_slice %43 {offsets = [16, 0], sizes = [16, 1], strides = [1, 1]} : vector<32x4xf32> to vector<16x1xf32>
    %209 = vector.shape_cast %208 : vector<16x1xf32> to vector<16x1xf32>
    %210 = vector.broadcast %209 : vector<16x1xf32> to vector<16x16xf32>
    %cst_87 = arith.constant 1.000000e+00 : f32
    %211 = vector.broadcast %cst_87 : f32 to vector<16x16xf32>
    %212 = arith.divf %211, %210 : vector<16x16xf32>
    %cst_88 = arith.constant 0.398942292 : f32
    %213 = vector.broadcast %cst_88 : f32 to vector<16x16xf32>
    %214 = arith.mulf %213, %212 : vector<16x16xf32>
    %215 = arith.mulf %5, %212 : vector<16x16xf32>
    %216 = arith.mulf %215, %212 : vector<16x16xf32>
    %217 = math.exp %216 : vector<16x16xf32>
    %218 = arith.mulf %214, %217 : vector<16x16xf32>
    %c1_89 = arith.constant 1 : index
    %c0_90 = arith.constant 0 : index
    %c0_91 = arith.constant 0 : index
    %c0_92 = arith.constant 0 : index
    %219 = vector.load %arg9[%c1_89, %c0_90, %c0_91, %c0_92] : memref<2x12x16x16xf32, #tpu.memory_space<vmem>>, vector<1x1x16x16xf32>
    %220 = vector.shape_cast %219 : vector<1x1x16x16xf32> to vector<16x16xf32>
    %221 = vector.shape_cast %207 : vector<16x16xf32> to vector<1x1x16x16xf32>
    tpu.vector_store %arg9[%c1_89, %c0_90, %c0_91, %c0_92], %221 {strides = array<i32>} : memref<2x12x16x16xf32, #tpu.memory_space<vmem>>, vector<1x1x16x16xf32>,
    %c1_93 = arith.constant 1 : index
    %c4_94 = arith.constant 4 : index
    %c0_95 = arith.constant 0 : index
    %c0_96 = arith.constant 0 : index
    %222 = vector.load %arg9[%c1_93, %c4_94, %c0_95, %c0_96] : memref<2x12x16x16xf32, #tpu.memory_space<vmem>>, vector<1x1x16x16xf32>
    %223 = vector.shape_cast %222 : vector<1x1x16x16xf32> to vector<16x16xf32>
    %224 = vector.shape_cast %218 : vector<16x16xf32> to vector<1x1x16x16xf32>
    tpu.vector_store %arg9[%c1_93, %c4_94, %c0_95, %c0_96], %224 {strides = array<i32>} : memref<2x12x16x16xf32, #tpu.memory_space<vmem>>, vector<1x1x16x16xf32>,
    %c1_97 = arith.constant 1 : index
    %c8_98 = arith.constant 8 : index
    %c0_99 = arith.constant 0 : index
    %c0_100 = arith.constant 0 : index
    %225 = vector.load %arg9[%c1_97, %c8_98, %c0_99, %c0_100] : memref<2x12x16x16xf32, #tpu.memory_space<vmem>>, vector<1x1x16x16xf32>
    %226 = vector.shape_cast %225 : vector<1x1x16x16xf32> to vector<16x16xf32>
    %227 = vector.shape_cast %210 : vector<16x16xf32> to vector<1x1x16x16xf32>
    tpu.vector_store %arg9[%c1_97, %c8_98, %c0_99, %c0_100], %227 {strides = array<i32>} : memref<2x12x16x16xf32, #tpu.memory_space<vmem>>, vector<1x1x16x16xf32>,
    %228 = vector.extract_strided_slice %30 {offsets = [16, 0], sizes = [16, 8], strides = [1, 1]} : vector<32x32xf32> to vector<16x8xf32>
    %cst_101 = arith.constant dense<0.000000e+00> : vector<16x8xf32>
    %229 = tpu.matmul %207, %228, %cst_101 {dimension_numbers = #tpu.dot_dimension_numbers<[1], [0], [0], [1], [0, 0, 1, 1], [], []>} : vector<16x16xf32>, vector<16x8xf32>, vector<16x8xf32> -> vector<16x8xf32>
    %230 = vector.extract_strided_slice %45 {offsets = [0, 0], sizes = [8, 32], strides = [1, 1]} : vector<32x32xf32> to vector<8x32xf32>
    %cst_102 = arith.constant dense<0.000000e+00> : vector<16x32xf32>
    %231 = tpu.matmul %229, %230, %cst_102 {dimension_numbers = #tpu.dot_dimension_numbers<[1], [0], [0], [1], [0, 0, 1, 1], [], []>} : vector<16x8xf32>, vector<8x32xf32>, vector<16x32xf32> -> vector<16x32xf32>
    %232 = arith.addf %195, %231 : vector<16x32xf32>
    %233 = vector.extract_strided_slice %28 {offsets = [16, 8], sizes = [16, 8], strides = [1, 1]} : vector<32x32xf32> to vector<16x8xf32>
    %234 = vector.extract_strided_slice %44 {offsets = [8, 16], sizes = [8, 16], strides = [1, 1]} : vector<32x32xf32> to vector<8x16xf32>
    %cst_103 = arith.constant dense<0.000000e+00> : vector<16x16xf32>
    %235 = tpu.matmul %233, %234, %cst_103 {dimension_numbers = #tpu.dot_dimension_numbers<[1], [0], [0], [1], [0, 0, 1, 1], [], []>} : vector<16x8xf32>, vector<8x16xf32>, vector<16x16xf32> -> vector<16x16xf32>
    %cst_104 = arith.constant dense<0xFF800000> : vector<16xf32>
    %236 = vector.multi_reduction <maximumf>, %235, %cst_104 [1] : vector<16x16xf32> to vector<16xf32>
    %237 = vector.shape_cast %236 : vector<16xf32> to vector<16x1xf32>
    %238 = vector.broadcast %237 : vector<16x1xf32> to vector<16x16xf32>
    %239 = arith.subf %235, %238 : vector<16x16xf32>
    %240 = math.exp %239 : vector<16x16xf32>
    %cst_105 = arith.constant dense<0.000000e+00> : vector<16xf32>
    %241 = vector.multi_reduction <add>, %240, %cst_105 [1] : vector<16x16xf32> to vector<16xf32>
    %242 = vector.shape_cast %241 : vector<16xf32> to vector<16x1xf32>
    %243 = vector.broadcast %242 : vector<16x1xf32> to vector<16x16xf32>
    %244 = arith.divf %240, %243 : vector<16x16xf32>
    %245 = vector.extract_strided_slice %43 {offsets = [16, 1], sizes = [16, 1], strides = [1, 1]} : vector<32x4xf32> to vector<16x1xf32>
    %246 = vector.shape_cast %245 : vector<16x1xf32> to vector<16x1xf32>
    %247 = vector.broadcast %246 : vector<16x1xf32> to vector<16x16xf32>
    %cst_106 = arith.constant 1.000000e+00 : f32
    %248 = vector.broadcast %cst_106 : f32 to vector<16x16xf32>
    %249 = arith.divf %248, %247 : vector<16x16xf32>
    %cst_107 = arith.constant 0.398942292 : f32
    %250 = vector.broadcast %cst_107 : f32 to vector<16x16xf32>
    %251 = arith.mulf %250, %249 : vector<16x16xf32>
    %252 = arith.mulf %5, %249 : vector<16x16xf32>
    %253 = arith.mulf %252, %249 : vector<16x16xf32>
    %254 = math.exp %253 : vector<16x16xf32>
    %255 = arith.mulf %251, %254 : vector<16x16xf32>
    %c1_108 = arith.constant 1 : index
    %c1_109 = arith.constant 1 : index
    %c0_110 = arith.constant 0 : index
    %c0_111 = arith.constant 0 : index
    %256 = vector.load %arg9[%c1_108, %c1_109, %c0_110, %c0_111] : memref<2x12x16x16xf32, #tpu.memory_space<vmem>>, vector<1x1x16x16xf32>
    %257 = vector.shape_cast %256 : vector<1x1x16x16xf32> to vector<16x16xf32>
    %258 = vector.shape_cast %244 : vector<16x16xf32> to vector<1x1x16x16xf32>
    tpu.vector_store %arg9[%c1_108, %c1_109, %c0_110, %c0_111], %258 {strides = array<i32>} : memref<2x12x16x16xf32, #tpu.memory_space<vmem>>, vector<1x1x16x16xf32>,
    %c1_112 = arith.constant 1 : index
    %c5_113 = arith.constant 5 : index
    %c0_114 = arith.constant 0 : index
    %c0_115 = arith.constant 0 : index
    %259 = vector.load %arg9[%c1_112, %c5_113, %c0_114, %c0_115] : memref<2x12x16x16xf32, #tpu.memory_space<vmem>>, vector<1x1x16x16xf32>
    %260 = vector.shape_cast %259 : vector<1x1x16x16xf32> to vector<16x16xf32>
    %261 = vector.shape_cast %255 : vector<16x16xf32> to vector<1x1x16x16xf32>
    tpu.vector_store %arg9[%c1_112, %c5_113, %c0_114, %c0_115], %261 {strides = array<i32>} : memref<2x12x16x16xf32, #tpu.memory_space<vmem>>, vector<1x1x16x16xf32>,
    %c1_116 = arith.constant 1 : index
    %c9_117 = arith.constant 9 : index
    %c0_118 = arith.constant 0 : index
    %c0_119 = arith.constant 0 : index
    %262 = vector.load %arg9[%c1_116, %c9_117, %c0_118, %c0_119] : memref<2x12x16x16xf32, #tpu.memory_space<vmem>>, vector<1x1x16x16xf32>
    %263 = vector.shape_cast %262 : vector<1x1x16x16xf32> to vector<16x16xf32>
    %264 = vector.shape_cast %247 : vector<16x16xf32> to vector<1x1x16x16xf32>
    tpu.vector_store %arg9[%c1_116, %c9_117, %c0_118, %c0_119], %264 {strides = array<i32>} : memref<2x12x16x16xf32, #tpu.memory_space<vmem>>, vector<1x1x16x16xf32>,
    %265 = vector.extract_strided_slice %30 {offsets = [16, 8], sizes = [16, 8], strides = [1, 1]} : vector<32x32xf32> to vector<16x8xf32>
    %cst_120 = arith.constant dense<0.000000e+00> : vector<16x8xf32>
    %266 = tpu.matmul %244, %265, %cst_120 {dimension_numbers = #tpu.dot_dimension_numbers<[1], [0], [0], [1], [0, 0, 1, 1], [], []>} : vector<16x16xf32>, vector<16x8xf32>, vector<16x8xf32> -> vector<16x8xf32>
    %267 = vector.extract_strided_slice %45 {offsets = [8, 0], sizes = [8, 32], strides = [1, 1]} : vector<32x32xf32> to vector<8x32xf32>
    %cst_121 = arith.constant dense<0.000000e+00> : vector<16x32xf32>
    %268 = tpu.matmul %266, %267, %cst_121 {dimension_numbers = #tpu.dot_dimension_numbers<[1], [0], [0], [1], [0, 0, 1, 1], [], []>} : vector<16x8xf32>, vector<8x32xf32>, vector<16x32xf32> -> vector<16x32xf32>
    %269 = arith.addf %232, %268 : vector<16x32xf32>
    %270 = vector.extract_strided_slice %28 {offsets = [16, 16], sizes = [16, 8], strides = [1, 1]} : vector<32x32xf32> to vector<16x8xf32>
    %271 = vector.extract_strided_slice %44 {offsets = [16, 16], sizes = [8, 16], strides = [1, 1]} : vector<32x32xf32> to vector<8x16xf32>
    %cst_122 = arith.constant dense<0.000000e+00> : vector<16x16xf32>
    %272 = tpu.matmul %270, %271, %cst_122 {dimension_numbers = #tpu.dot_dimension_numbers<[1], [0], [0], [1], [0, 0, 1, 1], [], []>} : vector<16x8xf32>, vector<8x16xf32>, vector<16x16xf32> -> vector<16x16xf32>
    %cst_123 = arith.constant dense<0xFF800000> : vector<16xf32>
    %273 = vector.multi_reduction <maximumf>, %272, %cst_123 [1] : vector<16x16xf32> to vector<16xf32>
    %274 = vector.shape_cast %273 : vector<16xf32> to vector<16x1xf32>
    %275 = vector.broadcast %274 : vector<16x1xf32> to vector<16x16xf32>
    %276 = arith.subf %272, %275 : vector<16x16xf32>
    %277 = math.exp %276 : vector<16x16xf32>
    %cst_124 = arith.constant dense<0.000000e+00> : vector<16xf32>
    %278 = vector.multi_reduction <add>, %277, %cst_124 [1] : vector<16x16xf32> to vector<16xf32>
    %279 = vector.shape_cast %278 : vector<16xf32> to vector<16x1xf32>
    %280 = vector.broadcast %279 : vector<16x1xf32> to vector<16x16xf32>
    %281 = arith.divf %277, %280 : vector<16x16xf32>
    %282 = vector.extract_strided_slice %43 {offsets = [16, 2], sizes = [16, 1], strides = [1, 1]} : vector<32x4xf32> to vector<16x1xf32>
    %283 = vector.shape_cast %282 : vector<16x1xf32> to vector<16x1xf32>
    %284 = vector.broadcast %283 : vector<16x1xf32> to vector<16x16xf32>
    %cst_125 = arith.constant 1.000000e+00 : f32
    %285 = vector.broadcast %cst_125 : f32 to vector<16x16xf32>
    %286 = arith.divf %285, %284 : vector<16x16xf32>
    %cst_126 = arith.constant 0.398942292 : f32
    %287 = vector.broadcast %cst_126 : f32 to vector<16x16xf32>
    %288 = arith.mulf %287, %286 : vector<16x16xf32>
    %289 = arith.mulf %5, %286 : vector<16x16xf32>
    %290 = arith.mulf %289, %286 : vector<16x16xf32>
    %291 = math.exp %290 : vector<16x16xf32>
    %292 = arith.mulf %288, %291 : vector<16x16xf32>
    %c1_127 = arith.constant 1 : index
    %c2_128 = arith.constant 2 : index
    %c0_129 = arith.constant 0 : index
    %c0_130 = arith.constant 0 : index
    %293 = vector.load %arg9[%c1_127, %c2_128, %c0_129, %c0_130] : memref<2x12x16x16xf32, #tpu.memory_space<vmem>>, vector<1x1x16x16xf32>
    %294 = vector.shape_cast %293 : vector<1x1x16x16xf32> to vector<16x16xf32>
    %295 = vector.shape_cast %281 : vector<16x16xf32> to vector<1x1x16x16xf32>
    tpu.vector_store %arg9[%c1_127, %c2_128, %c0_129, %c0_130], %295 {strides = array<i32>} : memref<2x12x16x16xf32, #tpu.memory_space<vmem>>, vector<1x1x16x16xf32>,
    %c1_131 = arith.constant 1 : index
    %c6_132 = arith.constant 6 : index
    %c0_133 = arith.constant 0 : index
    %c0_134 = arith.constant 0 : index
    %296 = vector.load %arg9[%c1_131, %c6_132, %c0_133, %c0_134] : memref<2x12x16x16xf32, #tpu.memory_space<vmem>>, vector<1x1x16x16xf32>
    %297 = vector.shape_cast %296 : vector<1x1x16x16xf32> to vector<16x16xf32>
    %298 = vector.shape_cast %292 : vector<16x16xf32> to vector<1x1x16x16xf32>
    tpu.vector_store %arg9[%c1_131, %c6_132, %c0_133, %c0_134], %298 {strides = array<i32>} : memref<2x12x16x16xf32, #tpu.memory_space<vmem>>, vector<1x1x16x16xf32>,
    %c1_135 = arith.constant 1 : index
    %c10_136 = arith.constant 10 : index
    %c0_137 = arith.constant 0 : index
    %c0_138 = arith.constant 0 : index
    %299 = vector.load %arg9[%c1_135, %c10_136, %c0_137, %c0_138] : memref<2x12x16x16xf32, #tpu.memory_space<vmem>>, vector<1x1x16x16xf32>
    %300 = vector.shape_cast %299 : vector<1x1x16x16xf32> to vector<16x16xf32>
    %301 = vector.shape_cast %284 : vector<16x16xf32> to vector<1x1x16x16xf32>
    tpu.vector_store %arg9[%c1_135, %c10_136, %c0_137, %c0_138], %301 {strides = array<i32>} : memref<2x12x16x16xf32, #tpu.memory_space<vmem>>, vector<1x1x16x16xf32>,
    %302 = vector.extract_strided_slice %30 {offsets = [16, 16], sizes = [16, 8], strides = [1, 1]} : vector<32x32xf32> to vector<16x8xf32>
    %cst_139 = arith.constant dense<0.000000e+00> : vector<16x8xf32>
    %303 = tpu.matmul %281, %302, %cst_139 {dimension_numbers = #tpu.dot_dimension_numbers<[1], [0], [0], [1], [0, 0, 1, 1], [], []>} : vector<16x16xf32>, vector<16x8xf32>, vector<16x8xf32> -> vector<16x8xf32>
    %304 = vector.extract_strided_slice %45 {offsets = [16, 0], sizes = [8, 32], strides = [1, 1]} : vector<32x32xf32> to vector<8x32xf32>
    %cst_140 = arith.constant dense<0.000000e+00> : vector<16x32xf32>
    %305 = tpu.matmul %303, %304, %cst_140 {dimension_numbers = #tpu.dot_dimension_numbers<[1], [0], [0], [1], [0, 0, 1, 1], [], []>} : vector<16x8xf32>, vector<8x32xf32>, vector<16x32xf32> -> vector<16x32xf32>
    %306 = arith.addf %269, %305 : vector<16x32xf32>
    %307 = vector.extract_strided_slice %28 {offsets = [16, 24], sizes = [16, 8], strides = [1, 1]} : vector<32x32xf32> to vector<16x8xf32>
    %308 = vector.extract_strided_slice %44 {offsets = [24, 16], sizes = [8, 16], strides = [1, 1]} : vector<32x32xf32> to vector<8x16xf32>
    %cst_141 = arith.constant dense<0.000000e+00> : vector<16x16xf32>
    %309 = tpu.matmul %307, %308, %cst_141 {dimension_numbers = #tpu.dot_dimension_numbers<[1], [0], [0], [1], [0, 0, 1, 1], [], []>} : vector<16x8xf32>, vector<8x16xf32>, vector<16x16xf32> -> vector<16x16xf32>
    %cst_142 = arith.constant dense<0xFF800000> : vector<16xf32>
    %310 = vector.multi_reduction <maximumf>, %309, %cst_142 [1] : vector<16x16xf32> to vector<16xf32>
    %311 = vector.shape_cast %310 : vector<16xf32> to vector<16x1xf32>
    %312 = vector.broadcast %311 : vector<16x1xf32> to vector<16x16xf32>
    %313 = arith.subf %309, %312 : vector<16x16xf32>
    %314 = math.exp %313 : vector<16x16xf32>
    %cst_143 = arith.constant dense<0.000000e+00> : vector<16xf32>
    %315 = vector.multi_reduction <add>, %314, %cst_143 [1] : vector<16x16xf32> to vector<16xf32>
    %316 = vector.shape_cast %315 : vector<16xf32> to vector<16x1xf32>
    %317 = vector.broadcast %316 : vector<16x1xf32> to vector<16x16xf32>
    %318 = arith.divf %314, %317 : vector<16x16xf32>
    %319 = vector.extract_strided_slice %43 {offsets = [16, 3], sizes = [16, 1], strides = [1, 1]} : vector<32x4xf32> to vector<16x1xf32>
    %320 = vector.shape_cast %319 : vector<16x1xf32> to vector<16x1xf32>
    %321 = vector.broadcast %320 : vector<16x1xf32> to vector<16x16xf32>
    %cst_144 = arith.constant 1.000000e+00 : f32
    %322 = vector.broadcast %cst_144 : f32 to vector<16x16xf32>
    %323 = arith.divf %322, %321 : vector<16x16xf32>
    %cst_145 = arith.constant 0.398942292 : f32
    %324 = vector.broadcast %cst_145 : f32 to vector<16x16xf32>
    %325 = arith.mulf %324, %323 : vector<16x16xf32>
    %326 = arith.mulf %5, %323 : vector<16x16xf32>
    %327 = arith.mulf %326, %323 : vector<16x16xf32>
    %328 = math.exp %327 : vector<16x16xf32>
    %329 = arith.mulf %325, %328 : vector<16x16xf32>
    %c1_146 = arith.constant 1 : index
    %c3_147 = arith.constant 3 : index
    %c0_148 = arith.constant 0 : index
    %c0_149 = arith.constant 0 : index
    %330 = vector.load %arg9[%c1_146, %c3_147, %c0_148, %c0_149] : memref<2x12x16x16xf32, #tpu.memory_space<vmem>>, vector<1x1x16x16xf32>
    %331 = vector.shape_cast %330 : vector<1x1x16x16xf32> to vector<16x16xf32>
    %332 = vector.shape_cast %318 : vector<16x16xf32> to vector<1x1x16x16xf32>
    tpu.vector_store %arg9[%c1_146, %c3_147, %c0_148, %c0_149], %332 {strides = array<i32>} : memref<2x12x16x16xf32, #tpu.memory_space<vmem>>, vector<1x1x16x16xf32>,
    %c1_150 = arith.constant 1 : index
    %c7_151 = arith.constant 7 : index
    %c0_152 = arith.constant 0 : index
    %c0_153 = arith.constant 0 : index
    %333 = vector.load %arg9[%c1_150, %c7_151, %c0_152, %c0_153] : memref<2x12x16x16xf32, #tpu.memory_space<vmem>>, vector<1x1x16x16xf32>
    %334 = vector.shape_cast %333 : vector<1x1x16x16xf32> to vector<16x16xf32>
    %335 = vector.shape_cast %329 : vector<16x16xf32> to vector<1x1x16x16xf32>
    tpu.vector_store %arg9[%c1_150, %c7_151, %c0_152, %c0_153], %335 {strides = array<i32>} : memref<2x12x16x16xf32, #tpu.memory_space<vmem>>, vector<1x1x16x16xf32>,
    %c1_154 = arith.constant 1 : index
    %c11_155 = arith.constant 11 : index
    %c0_156 = arith.constant 0 : index
    %c0_157 = arith.constant 0 : index
    %336 = vector.load %arg9[%c1_154, %c11_155, %c0_156, %c0_157] : memref<2x12x16x16xf32, #tpu.memory_space<vmem>>, vector<1x1x16x16xf32>
    %337 = vector.shape_cast %336 : vector<1x1x16x16xf32> to vector<16x16xf32>
    %338 = vector.shape_cast %321 : vector<16x16xf32> to vector<1x1x16x16xf32>
    tpu.vector_store %arg9[%c1_154, %c11_155, %c0_156, %c0_157], %338 {strides = array<i32>} : memref<2x12x16x16xf32, #tpu.memory_space<vmem>>, vector<1x1x16x16xf32>,
    %339 = vector.extract_strided_slice %30 {offsets = [16, 24], sizes = [16, 8], strides = [1, 1]} : vector<32x32xf32> to vector<16x8xf32>
    %cst_158 = arith.constant dense<0.000000e+00> : vector<16x8xf32>
    %340 = tpu.matmul %318, %339, %cst_158 {dimension_numbers = #tpu.dot_dimension_numbers<[1], [0], [0], [1], [0, 0, 1, 1], [], []>} : vector<16x16xf32>, vector<16x8xf32>, vector<16x8xf32> -> vector<16x8xf32>
    %341 = vector.extract_strided_slice %45 {offsets = [24, 0], sizes = [8, 32], strides = [1, 1]} : vector<32x32xf32> to vector<8x32xf32>
    %cst_159 = arith.constant dense<0.000000e+00> : vector<16x32xf32>
    %342 = tpu.matmul %340, %341, %cst_159 {dimension_numbers = #tpu.dot_dimension_numbers<[1], [0], [0], [1], [0, 0, 1, 1], [], []>} : vector<16x8xf32>, vector<8x32xf32>, vector<16x32xf32> -> vector<16x32xf32>
    %343 = arith.addf %306, %342 : vector<16x32xf32>
    %344 = tpu.concatenate %194, %343 in 0 : vector<16x32xf32>, vector<16x32xf32> -> vector<32x32xf32>
    %345 = arith.addf %4, %344 : vector<32x32xf32>
    %346 = vector.shape_cast %8 : vector<32xf32> to vector<1x32xf32>
    %347 = vector.broadcast %346 : vector<1x32xf32> to vector<32x32xf32>
    %348 = arith.addf %345, %347 : vector<32x32xf32>
    %cst_160 = arith.constant dense<0.000000e+00> : vector<32xf32>
    %349 = vector.multi_reduction <add>, %348, %cst_160 [1] : vector<32x32xf32> to vector<32xf32>
    %350 = vector.shape_cast %349 : vector<32xf32> to vector<32x1xf32>
    %cst_161 = arith.constant 3.200000e+01 : f32
    %351 = vector.broadcast %cst_161 : f32 to vector<32x1xf32>
    %352 = arith.divf %350, %351 : vector<32x1xf32>
    %353 = vector.broadcast %352 : vector<32x1xf32> to vector<32x32xf32>
    %354 = arith.subf %348, %353 : vector<32x32xf32>
    %355 = arith.mulf %354, %354 : vector<32x32xf32>
    %cst_162 = arith.constant dense<0.000000e+00> : vector<32xf32>
    %356 = vector.multi_reduction <add>, %355, %cst_162 [1] : vector<32x32xf32> to vector<32xf32>
    %357 = vector.shape_cast %356 : vector<32xf32> to vector<32x1xf32>
    %cst_163 = arith.constant 3.200000e+01 : f32
    %358 = vector.broadcast %cst_163 : f32 to vector<32x1xf32>
    %359 = arith.divf %357, %358 : vector<32x1xf32>
    %cst_164 = arith.constant 9.99999974E-6 : f32
    %360 = vector.broadcast %cst_164 : f32 to vector<32x1xf32>
    %361 = arith.addf %359, %360 : vector<32x1xf32>
    %362 = math.rsqrt %361 : vector<32x1xf32>
    %363 = vector.broadcast %362 : vector<32x1xf32> to vector<32x32xf32>
    %364 = arith.mulf %354, %363 : vector<32x32xf32>
    %365 = vector.shape_cast %10 : vector<32xf32> to vector<1x32xf32>
    %366 = vector.broadcast %365 : vector<1x32xf32> to vector<32x32xf32>
    %367 = arith.mulf %364, %366 : vector<32x32xf32>
    %368 = vector.shape_cast %12 : vector<32xf32> to vector<1x32xf32>
    %369 = vector.broadcast %368 : vector<1x32xf32> to vector<32x32xf32>
    %370 = arith.addf %367, %369 : vector<32x32xf32>
    %c0_165 = arith.constant 0 : index
    %c0_166 = arith.constant 0 : index
    %371 = vector.load %arg5[%c0_165, %c0_166] : memref<32x128xf32, #tpu.memory_space<vmem>>, vector<32x128xf32>
    %cst_167 = arith.constant dense<0.000000e+00> : vector<32x128xf32>
    %372 = tpu.matmul %370, %371, %cst_167 {dimension_numbers = #tpu.dot_dimension_numbers<[1], [0], [0], [1], [0, 0, 1, 1], [], []>} : vector<32x32xf32>, vector<32x128xf32>, vector<32x128xf32> -> vector<32x128xf32>
    %373 = vector.shape_cast %20 : vector<128xf32> to vector<1x128xf32>
    %374 = vector.broadcast %373 : vector<1x128xf32> to vector<32x128xf32>
    %375 = arith.addf %372, %374 : vector<32x128xf32>
    %cst_168 = arith.constant 0.000000e+00 : f32
    %376 = vector.broadcast %cst_168 : f32 to vector<32x128xf32>
    %377 = arith.maximumf %375, %376 : vector<32x128xf32>
    %c0_169 = arith.constant 0 : index
    %c0_170 = arith.constant 0 : index
    %378 = vector.load %arg6[%c0_169, %c0_170] : memref<128x32xf32, #tpu.memory_space<vmem>>, vector<128x32xf32>
    %cst_171 = arith.constant dense<0.000000e+00> : vector<32x32xf32>
    %379 = tpu.matmul %377, %378, %cst_171 {dimension_numbers = #tpu.dot_dimension_numbers<[1], [0], [0], [1], [0, 0, 1, 1], [], []>} : vector<32x128xf32>, vector<128x32xf32>, vector<32x32xf32> -> vector<32x32xf32>
    %380 = vector.shape_cast %18 : vector<32xf32> to vector<1x32xf32>
    %381 = vector.broadcast %380 : vector<1x32xf32> to vector<32x32xf32>
    %382 = arith.addf %379, %381 : vector<32x32xf32>
    %383 = arith.addf %370, %382 : vector<32x32xf32>
    %cst_172 = arith.constant dense<0.000000e+00> : vector<32xf32>
    %384 = vector.multi_reduction <add>, %383, %cst_172 [1] : vector<32x32xf32> to vector<32xf32>
    %385 = vector.shape_cast %384 : vector<32xf32> to vector<32x1xf32>
    %cst_173 = arith.constant 3.200000e+01 : f32
    %386 = vector.broadcast %cst_173 : f32 to vector<32x1xf32>
    %387 = arith.divf %385, %386 : vector<32x1xf32>
    %388 = vector.broadcast %387 : vector<32x1xf32> to vector<32x32xf32>
    %389 = arith.subf %383, %388 : vector<32x32xf32>
    %390 = arith.mulf %389, %389 : vector<32x32xf32>
    %cst_174 = arith.constant dense<0.000000e+00> : vector<32xf32>
    %391 = vector.multi_reduction <add>, %390, %cst_174 [1] : vector<32x32xf32> to vector<32xf32>
    %392 = vector.shape_cast %391 : vector<32xf32> to vector<32x1xf32>
    %cst_175 = arith.constant 3.200000e+01 : f32
    %393 = vector.broadcast %cst_175 : f32 to vector<32x1xf32>
    %394 = arith.divf %392, %393 : vector<32x1xf32>
    %cst_176 = arith.constant 9.99999974E-6 : f32
    %395 = vector.broadcast %cst_176 : f32 to vector<32x1xf32>
    %396 = arith.addf %394, %395 : vector<32x1xf32>
    %397 = math.rsqrt %396 : vector<32x1xf32>
    %398 = vector.broadcast %397 : vector<32x1xf32> to vector<32x32xf32>
    %399 = arith.mulf %389, %398 : vector<32x32xf32>
    %400 = vector.shape_cast %14 : vector<32xf32> to vector<1x32xf32>
    %401 = vector.broadcast %400 : vector<1x32xf32> to vector<32x32xf32>
    %402 = arith.mulf %399, %401 : vector<32x32xf32>
    %403 = vector.shape_cast %16 : vector<32xf32> to vector<1x32xf32>
    %404 = vector.broadcast %403 : vector<1x32xf32> to vector<32x32xf32>
    %405 = arith.addf %402, %404 : vector<32x32xf32>
    %406 = vector.extract_strided_slice %405 {offsets = [0, 0], sizes = [16, 32], strides = [1, 1]} : vector<32x32xf32> to vector<16x32xf32>
    %c0_177 = arith.constant 0 : index
    %c0_178 = arith.constant 0 : index
    %c0_179 = arith.constant 0 : index
    %407 = vector.load %arg8[%c0_177, %c0_178, %c0_179] : memref<2x16x32xf32, #tpu.memory_space<vmem>>, vector<1x16x32xf32>
    %408 = vector.shape_cast %407 : vector<1x16x32xf32> to vector<16x32xf32>
    %409 = vector.shape_cast %406 : vector<16x32xf32> to vector<1x16x32xf32>
    tpu.vector_store %arg8[%c0_177, %c0_178, %c0_179], %409 {strides = array<i32>} : memref<2x16x32xf32, #tpu.memory_space<vmem>>, vector<1x16x32xf32>,
    %410 = vector.extract_strided_slice %405 {offsets = [16, 0], sizes = [16, 32], strides = [1, 1]} : vector<32x32xf32> to vector<16x32xf32>
    %c1_180 = arith.constant 1 : index
    %c0_181 = arith.constant 0 : index
    %c0_182 = arith.constant 0 : index
    %411 = vector.load %arg8[%c1_180, %c0_181, %c0_182] : memref<2x16x32xf32, #tpu.memory_space<vmem>>, vector<1x16x32xf32>
    %412 = vector.shape_cast %411 : vector<1x16x32xf32> to vector<16x32xf32>
    %413 = vector.shape_cast %410 : vector<16x32xf32> to vector<1x16x32xf32>
    tpu.vector_store %arg8[%c1_180, %c0_181, %c0_182], %413 {strides = array<i32>} : memref<2x16x32xf32, #tpu.memory_space<vmem>>, vector<1x16x32xf32>,
    return
  }
  func.func @transform_0(%arg0: i32) -> (i32, i32, i32) {
    %c0_i32 = arith.constant 0 : i32
    %c0_i32_0 = arith.constant 0 : i32
    %c0_i32_1 = arith.constant 0 : i32
    return %arg0, %c0_i32, %c0_i32_0 : i32, i32, i32
  }
  func.func @transform_1(%arg0: i32) -> (i32, i32) {
    %c0_i32 = arith.constant 0 : i32
    %c0_i32_0 = arith.constant 0 : i32
    %c0_i32_1 = arith.constant 0 : i32
    return %c0_i32, %c0_i32_0 : i32, i32
  }
  func.func @transform_2(%arg0: i32) -> (i32, i32) {
    %c0_i32 = arith.constant 0 : i32
    %c0_i32_0 = arith.constant 0 : i32
    %c0_i32_1 = arith.constant 0 : i32
    return %c0_i32, %c0_i32_0 : i32, i32
  }
  func.func @transform_3(%arg0: i32) -> (i32, i32) {
    %c0_i32 = arith.constant 0 : i32
    %c0_i32_0 = arith.constant 0 : i32
    %c0_i32_1 = arith.constant 0 : i32
    return %c0_i32, %c0_i32_0 : i32, i32
  }
  func.func @transform_4(%arg0: i32) -> (i32, i32) {
    %c0_i32 = arith.constant 0 : i32
    %c0_i32_0 = arith.constant 0 : i32
    %c0_i32_1 = arith.constant 0 : i32
    return %c0_i32, %c0_i32_0 : i32, i32
  }
  func.func @transform_5(%arg0: i32) -> (i32, i32) {
    %c0_i32 = arith.constant 0 : i32
    %c0_i32_0 = arith.constant 0 : i32
    %c0_i32_1 = arith.constant 0 : i32
    return %c0_i32, %c0_i32_0 : i32, i32
  }
  func.func @transform_6(%arg0: i32) -> (i32, i32) {
    %c0_i32 = arith.constant 0 : i32
    %c0_i32_0 = arith.constant 0 : i32
    %c0_i32_1 = arith.constant 0 : i32
    return %c0_i32, %c0_i32_0 : i32, i32
  }
  func.func @transform_7(%arg0: i32) -> (i32, i32, i32) {
    %c0_i32 = arith.constant 0 : i32
    %c0_i32_0 = arith.constant 0 : i32
    %c0_i32_1 = arith.constant 0 : i32
    return %arg0, %c0_i32, %c0_i32_0 : i32, i32, i32
  }
  func.func @transform_8(%arg0: i32) -> (i32, i32, i32, i32) {
    %c0_i32 = arith.constant 0 : i32
    %c0_i32_0 = arith.constant 0 : i32
    %c0_i32_1 = arith.constant 0 : i32
    %c0_i32_2 = arith.constant 0 : i32
    return %arg0, %c0_i32, %c0_i32_0, %c0_i32_1 : i32, i32, i32, i32
  }
}

</mosaic_0001>

<llo_original>
// kernel: tpu_custom_call.1
$region0: #{tpu_custom_call.1}
  #allocation0 [shape = 'u32[]', space=smem, size = 0x4, offset = 0x4, fixed_abs, tag = 'smem constant byte address 0x4 - core index']
  #allocation1 [shape = 'u32[144,128]{1,0:T(1,128)}', space=vmem, size = 0x12000, scoped, tag = 'internal scratch']
  %s0 = inlined_call_operand.vmem [shape: f32[2,16,32], index: 0, kind: input, shape index: {}]
  %s1 = inlined_call_operand.vmem [shape: f32[16,16], index: 1, kind: input, shape index: {}]
  %s2 = inlined_call_operand.vmem [shape: f32[32,128], index: 2, kind: input, shape index: {}]
  %s3 = inlined_call_operand.vmem [shape: f32[32,32], index: 3, kind: input, shape index: {}]
  %s4 = inlined_call_operand.vmem [shape: f32[32,128], index: 4, kind: input, shape index: {}]
  %s5 = inlined_call_operand.vmem [shape: f32[128,32], index: 5, kind: input, shape index: {}]
  %s6 = inlined_call_operand.vmem [shape: f32[8,128], index: 6, kind: input, shape index: {}]
  %s7 = inlined_call_operand.hbm [shape: f32[2,16,32], index: 7, kind: output, shape index: {0}]
  %s8 = inlined_call_operand.hbm [shape: f32[2,12,16,16], index: 8, kind: output, shape index: {1}]
  %9 = xla_tuple %s7, %s8
  %s10 = sld [smem:[#allocation0]]
  $region46: #{tpu_custom_call.1} parent=0
    _
  %s12 = ssub.s32 1, %s10
  %s13 = scalar_select 0, %s12, %s10
  $region1: #{tpu_custom_call.1} parent=0
    #allocation2 [shape = 'u8[16384]{0}', space=vmem, size = 0x4000, scoped, tag = 'output window, operand 0, single buffered']
    #allocation3 [shape = 's32[1]{0}', space=sflag, size = 0x4, scoped, tag = 'scoped memory for tpu_custom_call.1']
    #allocation4 [shape = 'u8[196608]{0}', space=vmem, size = 0x30000, scoped, tag = 'output window, operand 1, single buffered']
    #allocation5 [shape = 's32[1]{0}', space=sflag, size = 0x4, scoped, tag = 'scoped memory for tpu_custom_call.1']
    %14 = vsyncpa [#allocation3], 0
    %15 = vsyncpa [#allocation5], 0
    // Predicated region
    $region2: #{tpu_custom_call.1} parent=1 // pred_check
      _
    $region3: #{tpu_custom_call.1} parent=1 // pred_check_branch
      %17 = sbr.rel (0) target = $region5
    $region4: #{tpu_custom_call.1} parent=1 // pred_region
      _
    $region5: #{tpu_custom_call.1} parent=1 // pred_fallthru
      _
    // Predicated region
    $region6: #{tpu_custom_call.1} parent=1 // pred_check
      _
    $region7: #{tpu_custom_call.1} parent=1 // pred_check_branch
      %19 = sbr.rel (0) target = $region9
    $region8: #{tpu_custom_call.1} parent=1 // pred_region
      _
    $region9: #{tpu_custom_call.1} parent=1 // pred_fallthru
      _
    // Predicated region
    $region10: #{tpu_custom_call.1} parent=1 // pred_check
      _
    $region11: #{tpu_custom_call.1} parent=1 // pred_check_branch
      %21 = sbr.rel (0) target = $region13
    $region12: #{tpu_custom_call.1} parent=1 // pred_region
      _
    $region13: #{tpu_custom_call.1} parent=1 // pred_fallthru
      _
    // Predicated region
    $region14: #{tpu_custom_call.1} parent=1 // pred_check
      _
    $region15: #{tpu_custom_call.1} parent=1 // pred_check_branch
      %23 = sbr.rel (0) target = $region17
    $region16: #{tpu_custom_call.1} parent=1 // pred_region
      _
    $region17: #{tpu_custom_call.1} parent=1 // pred_fallthru
      _
    // Predicated region
    $region18: #{tpu_custom_call.1} parent=1 // pred_check
      _
    $region19: #{tpu_custom_call.1} parent=1 // pred_check_branch
      %25 = sbr.rel (0) target = $region21
    $region20: #{tpu_custom_call.1} parent=1 // pred_region
      _
    $region21: #{tpu_custom_call.1} parent=1 // pred_fallthru
      _
    // Predicated region
    $region22: #{tpu_custom_call.1} parent=1 // pred_check
      _
    $region23: #{tpu_custom_call.1} parent=1 // pred_check_branch
      %27 = sbr.rel (0) target = $region25
    $region24: #{tpu_custom_call.1} parent=1 // pred_region
      _
    $region25: #{tpu_custom_call.1} parent=1 // pred_fallthru
      _
    // Predicated region
    $region26: #{tpu_custom_call.1} parent=1 // pred_check
      _
    $region27: #{tpu_custom_call.1} parent=1 // pred_check_branch
      %29 = sbr.rel (0) target = $region29
    $region28: #{tpu_custom_call.1} parent=1 // pred_region
      _
    $region29: #{tpu_custom_call.1} parent=1 // pred_fallthru
      _
    %v30 = vld [vmem:[%s0] sm:$0xff]
    %v31 = vld [vmem:[%s0 + $0x8] sm:$0xff]
    %s32 = scalar_lea.vmem %s0, 16
    %v33 = vld [vmem:[%s32] sm:$0xff]
    %v34 = vld [vmem:[%s32 + $0x8] sm:$0xff]
    %v35 = vld [vmem:[%s1] sm:$0xff]
    %v36 = vld [vmem:[%s1 + $0x8] sm:$0xff]
    %v37 = vld [vmem:[%s6] sm:$0xff]
    %v38 = vld [vmem:[%s2] sm:$0xff]
    %v39 = vld [vmem:[%s2 + $0x8] sm:$0xff]
    %v40 = vld [vmem:[%s2 + $0x10] sm:$0xff]
    %v41 = vld [vmem:[%s2 + $0x18] sm:$0xff]
    %v42 = vlaneseq
    %v43 = vshrl.u32 %v42, 7
    %v44 = vsub.s32 7, %v43
    %v45 = vrot.slane %v37, %v44
    %vm46 = vcmask 261120
    %v48 = vsel %vm46, %v30, 0
    %v51 = vsel %vm46, %v31, 0
    %v54 = vsel %vm46, %v33, 0
    %v57 = vsel %vm46, %v34, 0
    %59 = vmatprep.subr.mxu0 0.0
    %60 = vmatpush1.msra.mxu0 %v38
    %61 = vmatprep.subr.mxu0 0.0
    %62 = vmatpush1.msra.mxu0 %v39
    %63 = vmatprep.subr.mxu0 0.0
    %64 = vmatpush1.msra.mxu0 %v40
    %65 = vmatprep.subr.mxu0 0.0
    %66 = vmatpush1.msra.mxu0 %v41
    %67 = vmatprep.subr.mxu0 0.0
    %68 = vmatpush1.msra.mxu0 0.0
    %69 = vmatprep.subr.mxu0 0.0
    %70 = vmatpush1.msra.mxu0 0.0
    %71 = vmatprep.subr.mxu0 0.0
    %72 = vmatpush1.msra.mxu0 0.0
    %73 = vmatprep.subr.mxu0 0.0
    %74 = vmatpush1.msra.mxu0 0.0
    %75 = vmatprep.subr.mxu0 0.0
    %76 = vmatpush1.msra.mxu0 0.0
    %77 = vmatprep.subr.mxu0 0.0
    %78 = vmatpush1.msra.mxu0 0.0
    %79 = vmatprep.subr.mxu0 0.0
    %80 = vmatpush1.msra.mxu0 0.0
    %81 = vmatprep.subr.mxu0 0.0
    %82 = vmatpush1.msra.mxu0 0.0
    %83 = vmatprep.subr.mxu0 0.0
    %84 = vmatpush1.msra.mxu0 0.0
    %85 = vmatprep.subr.mxu0 0.0
    %86 = vmatpush1.msra.mxu0 0.0
    %87 = vmatprep.subr.mxu0 0.0
    %88 = vmatpush1.msra.mxu0 0.0
    %89 = vmatprep.subr.mxu0 0.0
    %90 = vmatpush1.msra.mxu0 0.0
    %91 = vmatprep.subr.mxu0 0.0
    %92 = vmatpush1.msra.mxu0 0.0
    %93 = vmatprep.subr.mxu0 0.0
    %94 = vmatpush1.msra.mxu0 0.0
    %95 = vmatprep.subr.mxu0 0.0
    %96 = vmatpush1.msra.mxu0 0.0
    %97 = vmatprep.subr.mxu0 0.0
    %98 = vmatpush1.msra.mxu0 0.0
    %99 = vmatprep.subr.mxu0 0.0
    %100 = vmatpush1.msra.mxu0 0.0
    %101 = vmatprep.subr.mxu0 0.0
    %102 = vmatpush1.msra.mxu0 0.0
    %103 = vmatprep.subr.mxu0 0.0
    %104 = vmatpush1.msra.mxu0 0.0
    %105 = vmatprep.subr.mxu0 0.0
    %106 = vmatpush1.msra.mxu0 0.0
    %107 = vmatprep.subr.mxu0 0.0
    %108 = vmatpush1.msra.mxu0 0.0
    %109 = vmatprep.subr.mxu0 0.0
    %110 = vmatpush1.msra.mxu0 0.0
    %111 = vmatprep.subr.mxu0 0.0
    %112 = vmatpush1.msra.mxu0 0.0
    %113 = vmatprep.subr.mxu0 0.0
    %114 = vmatpush1.msra.mxu0 0.0
    %115 = vmatprep.subr.mxu0 0.0
    %116 = vmatpush1.msra.mxu0 0.0
    %117 = vmatprep.subr.mxu0 0.0
    %118 = vmatpush1.msra.mxu0 0.0
    %119 = vmatprep.subr.mxu0 0.0
    %120 = vmatpush1.msra.mxu0 0.0
    %121 = vmatprep.subr.mxu0 0.0
    %122 = vmatpush1.msra.mxu0 0.0
    %123 = vmatprep.mubr.f32.mxu0 0.0
    %124 = vmatmul.mubr.f32.gmra.mrb[0].mxu0 %v48
    %v125 = vpop.f32.mrb[0].mxu0
    %v126 = vadd.f32 %v45, %v125
    %v127 = vpop.f32.mrb[0].mxu0
    %128 = vmatprep.mubr.f32.mxu0 0.0
    %129 = vmatmul.mubr.f32.gmra.mrb[0].mxu0 %v51
    %v130 = vpop.f32.mrb[0].mxu0
    %v131 = vadd.f32 %v45, %v130
    %v132 = vpop.f32.mrb[0].mxu0
    %133 = vmatprep.mubr.f32.mxu0 0.0
    %134 = vmatmul.mubr.f32.gmra.mrb[0].mxu0 %v54
    %v135 = vpop.f32.mrb[0].mxu0
    %v136 = vadd.f32 %v45, %v135
    %v137 = vpop.f32.mrb[0].mxu0
    %138 = vmatprep.mubr.f32.mxu0 0.0
    %139 = vmatmul.mubr.f32.gmra.mrb[0].mxu0 %v57
    %v140 = vpop.f32.mrb[0].mxu0
    %v141 = vadd.f32 %v45, %v140
    %v142 = vpop.f32.mrb[0].mxu0
    %143 = vdwg.mxu0
    %v144 = vxor.u32 %v126, 2147483648
    %v145 = vxor.u32 %v131, 2147483648
    %v146 = vxor.u32 %v136, 2147483648
    %v147 = vxor.u32 %v141, 2147483648
    %v148 = vmul.f32 %v144, 1.442695
    %v149 = vpow.pop %v148
    %v150 = vmul.f32 %v145, 1.442695
    %v151 = vpow.pop %v150
    %v152 = vmul.f32 %v146, 1.442695
    %v153 = vpow.pop %v152
    %v154 = vmul.f32 %v147, 1.442695
    %v155 = vpow.pop %v154
    %v156 = vadd.f32 %v149, 1.0
    %v157 = vadd.f32 %v151, 1.0
    %v158 = vadd.f32 %v153, 1.0
    %v159 = vadd.f32 %v155, 1.0
    %v160 = vrcp.pop %v156
    %v161 = vmul.f32 1.0, %v160
    %v162 = vrcp.pop %v157
    %v163 = vmul.f32 1.0, %v162
    %v164 = vrcp.pop %v158
    %v165 = vmul.f32 1.0, %v164
    %v166 = vrcp.pop %v159
    %v167 = vmul.f32 1.0, %v166
    %v168 = vadd.f32 %v161, 1e-05
    %v169 = vadd.f32 %v163, 1e-05
    %v170 = vadd.f32 %v165, 1e-05
    %v171 = vadd.f32 %v167, 1e-05
    %v172 = vmul.f32 %v168, 1.0986123
    %v173 = vmul.f32 %v169, 1.0986123
    %v174 = vmul.f32 %v170, 1.0986123
    %v175 = vmul.f32 %v171, 1.0986123
    %v176 = vmul.f32 %v172, 1.442695
    %v177 = vpow.pop %v176
    %v178 = vmul.f32 %v173, 1.442695
    %v179 = vpow.pop %v178
    %v180 = vmul.f32 %v174, 1.442695
    %v181 = vpow.pop %v180
    %v182 = vmul.f32 %v175, 1.442695
    %v183 = vpow.pop %v182
    %v184 = vsub.f32 %v177, 1.0
    %v185 = vsub.f32 %v179, 1.0
    %v186 = vsub.f32 %v181, 1.0
    %v187 = vsub.f32 %v183, 1.0
    %v188 = vld [vmem:[%s3] sm:$0xff]
    %v189 = vld [vmem:[%s3 + $0x8] sm:$0xff]
    %v190 = vld [vmem:[%s3 + $0x10] sm:$0xff]
    %v191 = vld [vmem:[%s3 + $0x18] sm:$0xff]
    %194 = vrot.lane.b32.xlu0 %v126, 96
    %v195 = vpop.permute.xlu0 %194
    %196 = vrot.lane.b32.xlu0 %v131, 96
    %v197 = vpop.permute.xlu0 %196
    %vm198 = vcmask 64512
    %v199 = vsel %vm198, %v126, 0
    %v201 = vsel %vm198, %v131, 0
    %v203 = vsel %vm198, %v195, 0
    %v205 = vsel %vm198, %v197, 0
    %207 = vmatprep.subr.mxu0 0.0
    %208 = vmatpush1.xpose.msra.mxu0 %v203
    %209 = vmatprep.subr.mxu0 0.0
    %210 = vmatpush1.xpose.msra.mxu0 %v205
    %211 = vmatprep.subr.mxu0 0.0
    %212 = vmatpush1.xpose.msra.mxu0 0.0
    %213 = vmatprep.subr.mxu0 0.0
    %214 = vmatpush1.xpose.msra.mxu0 0.0
    %215 = vmatprep.subr.mxu0 0.0
    %216 = vmatpush1.xpose.msra.mxu0 0.0
    %217 = vmatprep.subr.mxu0 0.0
    %218 = vmatpush1.xpose.msra.mxu0 0.0
    %219 = vmatprep.subr.mxu0 0.0
    %220 = vmatpush1.xpose.msra.mxu0 0.0
    %221 = vmatprep.subr.mxu0 0.0
    %222 = vmatpush1.xpose.msra.mxu0 0.0
    %223 = vmatprep.subr.mxu0 0.0
    %224 = vmatpush1.xpose.msra.mxu0 0.0
    %225 = vmatprep.subr.mxu0 0.0
    %226 = vmatpush1.xpose.msra.mxu0 0.0
    %227 = vmatprep.subr.mxu0 0.0
    %228 = vmatpush1.xpose.msra.mxu0 0.0
    %229 = vmatprep.subr.mxu0 0.0
    %230 = vmatpush1.xpose.msra.mxu0 0.0
    %231 = vmatprep.subr.mxu0 0.0
    %232 = vmatpush1.xpose.msra.mxu0 0.0
    %233 = vmatprep.subr.mxu0 0.0
    %234 = vmatpush1.xpose.msra.mxu0 0.0
    %235 = vmatprep.subr.mxu0 0.0
    %236 = vmatpush1.xpose.msra.mxu0 0.0
    %237 = vmatprep.subr.mxu0 0.0
    %238 = vmatpush1.xpose.msra.mxu0 0.0
    %239 = vmatprep.subr.mxu0 0.0
    %240 = vmatpush1.xpose.msra.mxu0 0.0
    %241 = vmatprep.subr.mxu0 0.0
    %242 = vmatpush1.xpose.msra.mxu0 0.0
    %243 = vmatprep.subr.mxu0 0.0
    %244 = vmatpush1.xpose.msra.mxu0 0.0
    %245 = vmatprep.subr.mxu0 0.0
    %246 = vmatpush1.xpose.msra.mxu0 0.0
    %247 = vmatprep.subr.mxu0 0.0
    %248 = vmatpush1.xpose.msra.mxu0 0.0
    %249 = vmatprep.subr.mxu0 0.0
    %250 = vmatpush1.xpose.msra.mxu0 0.0
    %251 = vmatprep.subr.mxu0 0.0
    %252 = vmatpush1.xpose.msra.mxu0 0.0
    %253 = vmatprep.subr.mxu0 0.0
    %254 = vmatpush1.xpose.msra.mxu0 0.0
    %255 = vmatprep.subr.mxu0 0.0
    %256 = vmatpush1.xpose.msra.mxu0 0.0
    %257 = vmatprep.subr.mxu0 0.0
    %258 = vmatpush1.xpose.msra.mxu0 0.0
    %259 = vmatprep.subr.mxu0 0.0
    %260 = vmatpush1.xpose.msra.mxu0 0.0
    %261 = vmatprep.subr.mxu0 0.0
    %262 = vmatpush1.xpose.msra.mxu0 0.0
    %263 = vmatprep.subr.mxu0 0.0
    %264 = vmatpush1.xpose.msra.mxu0 0.0
    %265 = vmatprep.subr.mxu0 0.0
    %266 = vmatpush1.xpose.msra.mxu0 0.0
    %267 = vmatprep.subr.mxu0 0.0
    %268 = vmatpush1.xpose.msra.mxu0 0.0
    %269 = vmatprep.subr.mxu0 0.0
    %270 = vmatpush1.xpose.msra.mxu0 0.0
    %271 = vmatprep.mubr.f32.mxu0 0.0
    %272 = vmatmul.mubr.f32.gmra.mrb[0].mxu0 %v199
    %v273 = vpop.f32.mrb[0].mxu0
    %v274 = vadd.f32 0.0, %v273
    %v275 = vpop.f32.mrb[0].mxu0
    %276 = vmatprep.mubr.f32.mxu0 0.0
    %277 = vmatmul.mubr.f32.gmra.mrb[0].mxu0 %v201
    %v278 = vpop.f32.mrb[0].mxu0
    %v279 = vadd.f32 0.0, %v278
    %v280 = vpop.f32.mrb[0].mxu0
    %281 = vdwg.mxu0
    %vm282 = vcmask 130048
    %v283 = vsel %vm282, %v274, -inf
    %284 = vmax.xlane.f32.xlu0 %v283
    %v285 = vpop.xlane.xlu0 %284
    %v286 = vsel %vm282, %v279, -inf
    %287 = vmax.xlane.f32.xlu0 %v286
    %v288 = vpop.xlane.xlu0 %287
    %v289 = vsub.f32 %v274, %v285
    %v290 = vsub.f32 %v279, %v288
    %v291 = vmul.f32 %v289, 1.442695
    %v292 = vpow.pop %v291
    %v293 = vmul.f32 %v290, 1.442695
    %v294 = vpow.pop %v293
    %v295 = vsel %vm282, %v292, 0.0
    %296 = vadd.xlane.f32.xlu0 %v295
    %v297 = vpop.xlane.xlu0 %296
    %v298 = vsel %vm282, %v294, 0.0
    %299 = vadd.xlane.f32.xlu0 %v298
    %v300 = vpop.xlane.xlu0 %299
    %v301 = vrcp.pop %v297
    %v302 = vmul.f32 %v292, %v301
    %v303 = vrcp.pop %v300
    %v304 = vmul.f32 %v294, %v303
    %306 = vset.pattern.permute.xlu0 96
    %307 = vperm.xlu0 %306, %v184
    %v308 = vpop.permute.xlu0 %307
    %311 = vset.pattern.permute.xlu0 96
    %312 = vperm.xlu0 %311, %v185
    %v313 = vpop.permute.xlu0 %312
    %v315 = vrcp.pop %v308
    %v316 = vmul.f32 1.0, %v315
    %v317 = vrcp.pop %v313
    %v318 = vmul.f32 1.0, %v317
    %v319 = vmul.f32 %v316, 0.3989423
    %v320 = vmul.f32 %v318, 0.3989423
    %v321 = vmul.f32 %v35, %v316
    %v322 = vmul.f32 %v36, %v318
    %v323 = vmul.f32 %v321, %v316
    %v324 = vmul.f32 %v322, %v318
    %v325 = vmul.f32 %v323, 1.442695
    %v326 = vpow.pop %v325
    %v327 = vmul.f32 %v324, 1.442695
    %v328 = vpow.pop %v327
    %v329 = vmul.f32 %v319, %v326
    %v330 = vmul.f32 %v320, %v328
    %331 = vst.msk [vmem:[#allocation4] sm:$0xff] %vm282, %v302
    %332 = vst.msk [vmem:[#allocation4 + $0x8] sm:$0xff] %vm282, %v304
    %s333 = scalar_lea.vmem [#allocation4], 64
    %334 = vst.msk [vmem:[%s333] sm:$0xff] %vm282, %v329
    %335 = vst.msk [vmem:[%s333 + $0x8] sm:$0xff] %vm282, %v330
    %s336 = scalar_lea.vmem [#allocation4], 128
    %337 = vst.msk [vmem:[%s336] sm:$0xff] %vm282, %v308
    %338 = vst.msk [vmem:[%s336 + $0x8] sm:$0xff] %vm282, %v313
    %339 = vrot.lane.b32.xlu0 %v126, 64
    %v340 = vpop.permute.xlu0 %339
    %341 = vrot.lane.b32.xlu0 %v131, 64
    %v342 = vpop.permute.xlu0 %341
    %v346 = vsel %vm282, %v302, 0
    %v349 = vsel %vm282, %v304, 0
    %351 = vmatprep.subr.mxu0 0.0
    %352 = vmatpush1.msra.mxu0 %v340
    %353 = vmatprep.subr.mxu0 0.0
    %354 = vmatpush1.msra.mxu0 %v342
    %355 = vmatprep.subr.mxu0 0.0
    %356 = vmatpush1.msra.mxu0 0.0
    %357 = vmatprep.subr.mxu0 0.0
    %358 = vmatpush1.msra.mxu0 0.0
    %359 = vmatprep.subr.mxu0 0.0
    %360 = vmatpush1.msra.mxu0 0.0
    %361 = vmatprep.subr.mxu0 0.0
    %362 = vmatpush1.msra.mxu0 0.0
    %363 = vmatprep.subr.mxu0 0.0
    %364 = vmatpush1.msra.mxu0 0.0
    %365 = vmatprep.subr.mxu0 0.0
    %366 = vmatpush1.msra.mxu0 0.0
    %367 = vmatprep.subr.mxu0 0.0
    %368 = vmatpush1.msra.mxu0 0.0
    %369 = vmatprep.subr.mxu0 0.0
    %370 = vmatpush1.msra.mxu0 0.0
    %371 = vmatprep.subr.mxu0 0.0
    %372 = vmatpush1.msra.mxu0 0.0
    %373 = vmatprep.subr.mxu0 0.0
    %374 = vmatpush1.msra.mxu0 0.0
    %375 = vmatprep.subr.mxu0 0.0
    %376 = vmatpush1.msra.mxu0 0.0
    %377 = vmatprep.subr.mxu0 0.0
    %378 = vmatpush1.msra.mxu0 0.0
    %379 = vmatprep.subr.mxu0 0.0
    %380 = vmatpush1.msra.mxu0 0.0
    %381 = vmatprep.subr.mxu0 0.0
    %382 = vmatpush1.msra.mxu0 0.0
    %383 = vmatprep.subr.mxu0 0.0
    %384 = vmatpush1.msra.mxu0 0.0
    %385 = vmatprep.subr.mxu0 0.0
    %386 = vmatpush1.msra.mxu0 0.0
    %387 = vmatprep.subr.mxu0 0.0
    %388 = vmatpush1.msra.mxu0 0.0
    %389 = vmatprep.subr.mxu0 0.0
    %390 = vmatpush1.msra.mxu0 0.0
    %391 = vmatprep.subr.mxu0 0.0
    %392 = vmatpush1.msra.mxu0 0.0
    %393 = vmatprep.subr.mxu0 0.0
    %394 = vmatpush1.msra.mxu0 0.0
    %395 = vmatprep.subr.mxu0 0.0
    %396 = vmatpush1.msra.mxu0 0.0
    %397 = vmatprep.subr.mxu0 0.0
    %398 = vmatpush1.msra.mxu0 0.0
    %399 = vmatprep.subr.mxu0 0.0
    %400 = vmatpush1.msra.mxu0 0.0
    %401 = vmatprep.subr.mxu0 0.0
    %402 = vmatpush1.msra.mxu0 0.0
    %403 = vmatprep.subr.mxu0 0.0
    %404 = vmatpush1.msra.mxu0 0.0
    %405 = vmatprep.subr.mxu0 0.0
    %406 = vmatpush1.msra.mxu0 0.0
    %407 = vmatprep.subr.mxu0 0.0
    %408 = vmatpush1.msra.mxu0 0.0
    %409 = vmatprep.subr.mxu0 0.0
    %410 = vmatpush1.msra.mxu0 0.0
    %411 = vmatprep.subr.mxu0 0.0
    %412 = vmatpush1.msra.mxu0 0.0
    %413 = vmatprep.subr.mxu0 0.0
    %414 = vmatpush1.msra.mxu0 0.0
    %415 = vmatprep.mubr.f32.mxu0 0.0
    %416 = vmatmul.mubr.f32.gmra.mrb[0].mxu0 %v346
    %v417 = vpop.f32.mrb[0].mxu0
    %v418 = vadd.f32 0.0, %v417
    %v419 = vpop.f32.mrb[0].mxu0
    %420 = vmatprep.mubr.f32.mxu0 0.0
    %421 = vmatmul.mubr.f32.gmra.mrb[0].mxu0 %v349
    %v422 = vpop.f32.mrb[0].mxu0
    %v423 = vadd.f32 0.0, %v422
    %v424 = vpop.f32.mrb[0].mxu0
    %425 = vdwg.mxu0
    %426 = vrot.lane.b32.xlu0 %v126, 120
    %v427 = vpop.permute.xlu0 %426
    %428 = vrot.lane.b32.xlu0 %v131, 120
    %v429 = vpop.permute.xlu0 %428
    %430 = vrot.lane.b32.xlu0 %v126, 88
    %v431 = vpop.permute.xlu0 %430
    %432 = vrot.lane.b32.xlu0 %v131, 88
    %v433 = vpop.permute.xlu0 %432
    %v434 = vsel %vm198, %v427, 0
    %v436 = vsel %vm198, %v429, 0
    %v438 = vsel %vm198, %v431, 0
    %v440 = vsel %vm198, %v433, 0
    %442 = vmatprep.subr.mxu0 0.0
    %443 = vmatpush1.xpose.msra.mxu0 %v438
    %444 = vmatprep.subr.mxu0 0.0
    %445 = vmatpush1.xpose.msra.mxu0 %v440
    %446 = vmatprep.subr.mxu0 0.0
    %447 = vmatpush1.xpose.msra.mxu0 0.0
    %448 = vmatprep.subr.mxu0 0.0
    %449 = vmatpush1.xpose.msra.mxu0 0.0
    %450 = vmatprep.subr.mxu0 0.0
    %451 = vmatpush1.xpose.msra.mxu0 0.0
    %452 = vmatprep.subr.mxu0 0.0
    %453 = vmatpush1.xpose.msra.mxu0 0.0
    %454 = vmatprep.subr.mxu0 0.0
    %455 = vmatpush1.xpose.msra.mxu0 0.0
    %456 = vmatprep.subr.mxu0 0.0
    %457 = vmatpush1.xpose.msra.mxu0 0.0
    %458 = vmatprep.subr.mxu0 0.0
    %459 = vmatpush1.xpose.msra.mxu0 0.0
    %460 = vmatprep.subr.mxu0 0.0
    %461 = vmatpush1.xpose.msra.mxu0 0.0
    %462 = vmatprep.subr.mxu0 0.0
    %463 = vmatpush1.xpose.msra.mxu0 0.0
    %464 = vmatprep.subr.mxu0 0.0
    %465 = vmatpush1.xpose.msra.mxu0 0.0
    %466 = vmatprep.subr.mxu0 0.0
    %467 = vmatpush1.xpose.msra.mxu0 0.0
    %468 = vmatprep.subr.mxu0 0.0
    %469 = vmatpush1.xpose.msra.mxu0 0.0
    %470 = vmatprep.subr.mxu0 0.0
    %471 = vmatpush1.xpose.msra.mxu0 0.0
    %472 = vmatprep.subr.mxu0 0.0
    %473 = vmatpush1.xpose.msra.mxu0 0.0
    %474 = vmatprep.subr.mxu0 0.0
    %475 = vmatpush1.xpose.msra.mxu0 0.0
    %476 = vmatprep.subr.mxu0 0.0
    %477 = vmatpush1.xpose.msra.mxu0 0.0
    %478 = vmatprep.subr.mxu0 0.0
    %479 = vmatpush1.xpose.msra.mxu0 0.0
    %480 = vmatprep.subr.mxu0 0.0
    %481 = vmatpush1.xpose.msra.mxu0 0.0
    %482 = vmatprep.subr.mxu0 0.0
    %483 = vmatpush1.xpose.msra.mxu0 0.0
    %484 = vmatprep.subr.mxu0 0.0
    %485 = vmatpush1.xpose.msra.mxu0 0.0
    %486 = vmatprep.subr.mxu0 0.0
    %487 = vmatpush1.xpose.msra.mxu0 0.0
    %488 = vmatprep.subr.mxu0 0.0
    %489 = vmatpush1.xpose.msra.mxu0 0.0
    %490 = vmatprep.subr.mxu0 0.0
    %491 = vmatpush1.xpose.msra.mxu0 0.0
    %492 = vmatprep.subr.mxu0 0.0
    %493 = vmatpush1.xpose.msra.mxu0 0.0
    %494 = vmatprep.subr.mxu0 0.0
    %495 = vmatpush1.xpose.msra.mxu0 0.0
    %496 = vmatprep.subr.mxu0 0.0
    %497 = vmatpush1.xpose.msra.mxu0 0.0
    %498 = vmatprep.subr.mxu0 0.0
    %499 = vmatpush1.xpose.msra.mxu0 0.0
    %500 = vmatprep.subr.mxu0 0.0
    %501 = vmatpush1.xpose.msra.mxu0 0.0
    %502 = vmatprep.subr.mxu0 0.0
    %503 = vmatpush1.xpose.msra.mxu0 0.0
    %504 = vmatprep.subr.mxu0 0.0
    %505 = vmatpush1.xpose.msra.mxu0 0.0
    %506 = vmatprep.mubr.f32.mxu0 0.0
    %507 = vmatmul.mubr.f32.gmra.mrb[0].mxu0 %v434
    %v508 = vpop.f32.mrb[0].mxu0
    %v509 = vadd.f32 0.0, %v508
    %v510 = vpop.f32.mrb[0].mxu0
    %511 = vmatprep.mubr.f32.mxu0 0.0
    %512 = vmatmul.mubr.f32.gmra.mrb[0].mxu0 %v436
    %v513 = vpop.f32.mrb[0].mxu0
    %v514 = vadd.f32 0.0, %v513
    %v515 = vpop.f32.mrb[0].mxu0
    %516 = vdwg.mxu0
    %v517 = vsel %vm282, %v509, -inf
    %518 = vmax.xlane.f32.xlu0 %v517
    %v519 = vpop.xlane.xlu0 %518
    %v520 = vsel %vm282, %v514, -inf
    %521 = vmax.xlane.f32.xlu0 %v520
    %v522 = vpop.xlane.xlu0 %521
    %v523 = vsub.f32 %v509, %v519
    %v524 = vsub.f32 %v514, %v522
    %v525 = vmul.f32 %v523, 1.442695
    %v526 = vpow.pop %v525
    %v527 = vmul.f32 %v524, 1.442695
    %v528 = vpow.pop %v527
    %v529 = vsel %vm282, %v526, 0.0
    %530 = vadd.xlane.f32.xlu0 %v529
    %v531 = vpop.xlane.xlu0 %530
    %v532 = vsel %vm282, %v528, 0.0
    %533 = vadd.xlane.f32.xlu0 %v532
    %v534 = vpop.xlane.xlu0 %533
    %v535 = vrcp.pop %v531
    %v536 = vmul.f32 %v526, %v535
    %v537 = vrcp.pop %v534
    %v538 = vmul.f32 %v528, %v537
    %539 = vset.pattern.permute.xlu0 97
    %540 = vperm.xlu0 %539, %v184
    %v541 = vpop.permute.xlu0 %540
    %543 = vset.pattern.permute.xlu0 97
    %544 = vperm.xlu0 %543, %v185
    %v545 = vpop.permute.xlu0 %544
    %v547 = vrcp.pop %v541
    %v548 = vmul.f32 1.0, %v547
    %v549 = vrcp.pop %v545
    %v550 = vmul.f32 1.0, %v549
    %v551 = vmul.f32 %v548, 0.3989423
    %v552 = vmul.f32 %v550, 0.3989423
    %v553 = vmul.f32 %v35, %v548
    %v554 = vmul.f32 %v36, %v550
    %v555 = vmul.f32 %v553, %v548
    %v556 = vmul.f32 %v554, %v550
    %v557 = vmul.f32 %v555, 1.442695
    %v558 = vpow.pop %v557
    %v559 = vmul.f32 %v556, 1.442695
    %v560 = vpow.pop %v559
    %v561 = vmul.f32 %v551, %v558
    %v562 = vmul.f32 %v552, %v560
    %s563 = scalar_lea.vmem [#allocation4], 16
    %564 = vst.msk [vmem:[%s563] sm:$0xff] %vm282, %v536
    %565 = vst.msk [vmem:[%s563 + $0x8] sm:$0xff] %vm282, %v538
    %s566 = scalar_lea.vmem [#allocation4], 80
    %567 = vst.msk [vmem:[%s566] sm:$0xff] %vm282, %v561
    %568 = vst.msk [vmem:[%s566 + $0x8] sm:$0xff] %vm282, %v562
    %s569 = scalar_lea.vmem [#allocation4], 144
    %570 = vst.msk [vmem:[%s569] sm:$0xff] %vm282, %v541
    %571 = vst.msk [vmem:[%s569 + $0x8] sm:$0xff] %vm282, %v545
    %572 = vrot.lane.b32.xlu0 %v126, 56
    %v573 = vpop.permute.xlu0 %572
    %574 = vrot.lane.b32.xlu0 %v131, 56
    %v575 = vpop.permute.xlu0 %574
    %v579 = vsel %vm282, %v536, 0
    %v582 = vsel %vm282, %v538, 0
    %584 = vmatprep.subr.mxu0 0.0
    %585 = vmatpush1.msra.mxu0 %v573
    %586 = vmatprep.subr.mxu0 0.0
    %587 = vmatpush1.msra.mxu0 %v575
    %588 = vmatprep.subr.mxu0 0.0
    %589 = vmatpush1.msra.mxu0 0.0
    %590 = vmatprep.subr.mxu0 0.0
    %591 = vmatpush1.msra.mxu0 0.0
    %592 = vmatprep.subr.mxu0 0.0
    %593 = vmatpush1.msra.mxu0 0.0
    %594 = vmatprep.subr.mxu0 0.0
    %595 = vmatpush1.msra.mxu0 0.0
    %596 = vmatprep.subr.mxu0 0.0
    %597 = vmatpush1.msra.mxu0 0.0
    %598 = vmatprep.subr.mxu0 0.0
    %599 = vmatpush1.msra.mxu0 0.0
    %600 = vmatprep.subr.mxu0 0.0
    %601 = vmatpush1.msra.mxu0 0.0
    %602 = vmatprep.subr.mxu0 0.0
    %603 = vmatpush1.msra.mxu0 0.0
    %604 = vmatprep.subr.mxu0 0.0
    %605 = vmatpush1.msra.mxu0 0.0
    %606 = vmatprep.subr.mxu0 0.0
    %607 = vmatpush1.msra.mxu0 0.0
    %608 = vmatprep.subr.mxu0 0.0
    %609 = vmatpush1.msra.mxu0 0.0
    %610 = vmatprep.subr.mxu0 0.0
    %611 = vmatpush1.msra.mxu0 0.0
    %612 = vmatprep.subr.mxu0 0.0
    %613 = vmatpush1.msra.mxu0 0.0
    %614 = vmatprep.subr.mxu0 0.0
    %615 = vmatpush1.msra.mxu0 0.0
    %616 = vmatprep.subr.mxu0 0.0
    %617 = vmatpush1.msra.mxu0 0.0
    %618 = vmatprep.subr.mxu0 0.0
    %619 = vmatpush1.msra.mxu0 0.0
    %620 = vmatprep.subr.mxu0 0.0
    %621 = vmatpush1.msra.mxu0 0.0
    %622 = vmatprep.subr.mxu0 0.0
    %623 = vmatpush1.msra.mxu0 0.0
    %624 = vmatprep.subr.mxu0 0.0
    %625 = vmatpush1.msra.mxu0 0.0
    %626 = vmatprep.subr.mxu0 0.0
    %627 = vmatpush1.msra.mxu0 0.0
    %628 = vmatprep.subr.mxu0 0.0
    %629 = vmatpush1.msra.mxu0 0.0
    %630 = vmatprep.subr.mxu0 0.0
    %631 = vmatpush1.msra.mxu0 0.0
    %632 = vmatprep.subr.mxu0 0.0
    %633 = vmatpush1.msra.mxu0 0.0
    %634 = vmatprep.subr.mxu0 0.0
    %635 = vmatpush1.msra.mxu0 0.0
    %636 = vmatprep.subr.mxu0 0.0
    %637 = vmatpush1.msra.mxu0 0.0
    %638 = vmatprep.subr.mxu0 0.0
    %639 = vmatpush1.msra.mxu0 0.0
    %640 = vmatprep.subr.mxu0 0.0
    %641 = vmatpush1.msra.mxu0 0.0
    %642 = vmatprep.subr.mxu0 0.0
    %643 = vmatpush1.msra.mxu0 0.0
    %644 = vmatprep.subr.mxu0 0.0
    %645 = vmatpush1.msra.mxu0 0.0
    %646 = vmatprep.subr.mxu0 0.0
    %647 = vmatpush1.msra.mxu0 0.0
    %648 = vmatprep.mubr.f32.mxu0 0.0
    %649 = vmatmul.mubr.f32.gmra.mrb[0].mxu0 %v579
    %v650 = vpop.f32.mrb[0].mxu0
    %v651 = vadd.f32 0.0, %v650
    %v652 = vpop.f32.mrb[0].mxu0
    %653 = vmatprep.mubr.f32.mxu0 0.0
    %654 = vmatmul.mubr.f32.gmra.mrb[0].mxu0 %v582
    %v655 = vpop.f32.mrb[0].mxu0
    %v656 = vadd.f32 0.0, %v655
    %v657 = vpop.f32.mrb[0].mxu0
    %658 = vdwg.mxu0
    %v660 = vsel %vm198, %v651, 0
    %v663 = vsel %vm198, %v656, 0
    %665 = vmatprep.subr.mxu0 0.0
    %666 = vmatpush1.msra.mxu0 %v189
    %667 = vmatprep.subr.mxu0 0.0
    %668 = vmatpush1.msra.mxu0 0.0
    %669 = vmatprep.subr.mxu0 0.0
    %670 = vmatpush1.msra.mxu0 0.0
    %671 = vmatprep.subr.mxu0 0.0
    %672 = vmatpush1.msra.mxu0 0.0
    %673 = vmatprep.subr.mxu0 0.0
    %674 = vmatpush1.msra.mxu0 0.0
    %675 = vmatprep.subr.mxu0 0.0
    %676 = vmatpush1.msra.mxu0 0.0
    %677 = vmatprep.subr.mxu0 0.0
    %678 = vmatpush1.msra.mxu0 0.0
    %679 = vmatprep.subr.mxu0 0.0
    %680 = vmatpush1.msra.mxu0 0.0
    %681 = vmatprep.subr.mxu0 0.0
    %682 = vmatpush1.msra.mxu0 0.0
    %683 = vmatprep.subr.mxu0 0.0
    %684 = vmatpush1.msra.mxu0 0.0
    %685 = vmatprep.subr.mxu0 0.0
    %686 = vmatpush1.msra.mxu0 0.0
    %687 = vmatprep.subr.mxu0 0.0
    %688 = vmatpush1.msra.mxu0 0.0
    %689 = vmatprep.subr.mxu0 0.0
    %690 = vmatpush1.msra.mxu0 0.0
    %691 = vmatprep.subr.mxu0 0.0
    %692 = vmatpush1.msra.mxu0 0.0
    %693 = vmatprep.subr.mxu0 0.0
    %694 = vmatpush1.msra.mxu0 0.0
    %695 = vmatprep.subr.mxu0 0.0
    %696 = vmatpush1.msra.mxu0 0.0
    %697 = vmatprep.subr.mxu0 0.0
    %698 = vmatpush1.msra.mxu0 0.0
    %699 = vmatprep.subr.mxu0 0.0
    %700 = vmatpush1.msra.mxu0 0.0
    %701 = vmatprep.subr.mxu0 0.0
    %702 = vmatpush1.msra.mxu0 0.0
    %703 = vmatprep.subr.mxu0 0.0
    %704 = vmatpush1.msra.mxu0 0.0
    %705 = vmatprep.subr.mxu0 0.0
    %706 = vmatpush1.msra.mxu0 0.0
    %707 = vmatprep.subr.mxu0 0.0
    %708 = vmatpush1.msra.mxu0 0.0
    %709 = vmatprep.subr.mxu0 0.0
    %710 = vmatpush1.msra.mxu0 0.0
    %711 = vmatprep.subr.mxu0 0.0
    %712 = vmatpush1.msra.mxu0 0.0
    %713 = vmatprep.subr.mxu0 0.0
    %714 = vmatpush1.msra.mxu0 0.0
    %715 = vmatprep.subr.mxu0 0.0
    %716 = vmatpush1.msra.mxu0 0.0
    %717 = vmatprep.subr.mxu0 0.0
    %718 = vmatpush1.msra.mxu0 0.0
    %719 = vmatprep.subr.mxu0 0.0
    %720 = vmatpush1.msra.mxu0 0.0
    %721 = vmatprep.subr.mxu0 0.0
    %722 = vmatpush1.msra.mxu0 0.0
    %723 = vmatprep.subr.mxu0 0.0
    %724 = vmatpush1.msra.mxu0 0.0
    %725 = vmatprep.subr.mxu0 0.0
    %726 = vmatpush1.msra.mxu0 0.0
    %727 = vmatprep.subr.mxu0 0.0
    %728 = vmatpush1.msra.mxu0 0.0
    %729 = vmatprep.mubr.f32.mxu0 0.0
    %730 = vmatmul.mubr.f32.gmra.mrb[0].mxu0 %v660
    %v731 = vpop.f32.mrb[0].mxu0
    %v732 = vadd.f32 0.0, %v731
    %v733 = vpop.f32.mrb[0].mxu0
    %734 = vmatprep.mubr.f32.mxu0 0.0
    %735 = vmatmul.mubr.f32.gmra.mrb[0].mxu0 %v663
    %v736 = vpop.f32.mrb[0].mxu0
    %v737 = vadd.f32 0.0, %v736
    %v738 = vpop.f32.mrb[0].mxu0
    %739 = vdwg.mxu0
    %v741 = vsel %vm198, %v418, 0
    %v744 = vsel %vm198, %v423, 0
    %746 = vmatprep.subr.mxu0 0.0
    %747 = vmatpush1.msra.mxu0 %v188
    %748 = vmatprep.subr.mxu0 0.0
    %749 = vmatpush1.msra.mxu0 0.0
    %750 = vmatprep.subr.mxu0 0.0
    %751 = vmatpush1.msra.mxu0 0.0
    %752 = vmatprep.subr.mxu0 0.0
    %753 = vmatpush1.msra.mxu0 0.0
    %754 = vmatprep.subr.mxu0 0.0
    %755 = vmatpush1.msra.mxu0 0.0
    %756 = vmatprep.subr.mxu0 0.0
    %757 = vmatpush1.msra.mxu0 0.0
    %758 = vmatprep.subr.mxu0 0.0
    %759 = vmatpush1.msra.mxu0 0.0
    %760 = vmatprep.subr.mxu0 0.0
    %761 = vmatpush1.msra.mxu0 0.0
    %762 = vmatprep.subr.mxu0 0.0
    %763 = vmatpush1.msra.mxu0 0.0
    %764 = vmatprep.subr.mxu0 0.0
    %765 = vmatpush1.msra.mxu0 0.0
    %766 = vmatprep.subr.mxu0 0.0
    %767 = vmatpush1.msra.mxu0 0.0
    %768 = vmatprep.subr.mxu0 0.0
    %769 = vmatpush1.msra.mxu0 0.0
    %770 = vmatprep.subr.mxu0 0.0
    %771 = vmatpush1.msra.mxu0 0.0
    %772 = vmatprep.subr.mxu0 0.0
    %773 = vmatpush1.msra.mxu0 0.0
    %774 = vmatprep.subr.mxu0 0.0
    %775 = vmatpush1.msra.mxu0 0.0
    %776 = vmatprep.subr.mxu0 0.0
    %777 = vmatpush1.msra.mxu0 0.0
    %778 = vmatprep.subr.mxu0 0.0
    %779 = vmatpush1.msra.mxu0 0.0
    %780 = vmatprep.subr.mxu0 0.0
    %781 = vmatpush1.msra.mxu0 0.0
    %782 = vmatprep.subr.mxu0 0.0
    %783 = vmatpush1.msra.mxu0 0.0
    %784 = vmatprep.subr.mxu0 0.0
    %785 = vmatpush1.msra.mxu0 0.0
    %786 = vmatprep.subr.mxu0 0.0
    %787 = vmatpush1.msra.mxu0 0.0
    %788 = vmatprep.subr.mxu0 0.0
    %789 = vmatpush1.msra.mxu0 0.0
    %790 = vmatprep.subr.mxu0 0.0
    %791 = vmatpush1.msra.mxu0 0.0
    %792 = vmatprep.subr.mxu0 0.0
    %793 = vmatpush1.msra.mxu0 0.0
    %794 = vmatprep.subr.mxu0 0.0
    %795 = vmatpush1.msra.mxu0 0.0
    %796 = vmatprep.subr.mxu0 0.0
    %797 = vmatpush1.msra.mxu0 0.0
    %798 = vmatprep.subr.mxu0 0.0
    %799 = vmatpush1.msra.mxu0 0.0
    %800 = vmatprep.subr.mxu0 0.0
    %801 = vmatpush1.msra.mxu0 0.0
    %802 = vmatprep.subr.mxu0 0.0
    %803 = vmatpush1.msra.mxu0 0.0
    %804 = vmatprep.subr.mxu0 0.0
    %805 = vmatpush1.msra.mxu0 0.0
    %806 = vmatprep.subr.mxu0 0.0
    %807 = vmatpush1.msra.mxu0 0.0
    %808 = vmatprep.subr.mxu0 0.0
    %809 = vmatpush1.msra.mxu0 0.0
    %810 = vmatprep.mubr.f32.mxu0 0.0
    %811 = vmatmul.mubr.f32.gmra.mrb[0].mxu0 %v741
    %v812 = vpop.f32.mrb[0].mxu0
    %v813 = vadd.f32 %v732, %v812
    %v814 = vpop.f32.mrb[0].mxu0
    %815 = vmatprep.mubr.f32.mxu0 0.0
    %816 = vmatmul.mubr.f32.gmra.mrb[0].mxu0 %v744
    %v817 = vpop.f32.mrb[0].mxu0
    %v818 = vadd.f32 %v737, %v817
    %v819 = vpop.f32.mrb[0].mxu0
    %820 = vdwg.mxu0
    %821 = vrot.lane.b32.xlu0 %v126, 112
    %v822 = vpop.permute.xlu0 %821
    %823 = vrot.lane.b32.xlu0 %v131, 112
    %v824 = vpop.permute.xlu0 %823
    %825 = vrot.lane.b32.xlu0 %v126, 80
    %v826 = vpop.permute.xlu0 %825
    %827 = vrot.lane.b32.xlu0 %v131, 80
    %v828 = vpop.permute.xlu0 %827
    %v829 = vsel %vm198, %v822, 0
    %v831 = vsel %vm198, %v824, 0
    %v833 = vsel %vm198, %v826, 0
    %v835 = vsel %vm198, %v828, 0
    %837 = vmatprep.subr.mxu0 0.0
    %838 = vmatpush1.xpose.msra.mxu0 %v833
    %839 = vmatprep.subr.mxu0 0.0
    %840 = vmatpush1.xpose.msra.mxu0 %v835
    %841 = vmatprep.subr.mxu0 0.0
    %842 = vmatpush1.xpose.msra.mxu0 0.0
    %843 = vmatprep.subr.mxu0 0.0
    %844 = vmatpush1.xpose.msra.mxu0 0.0
    %845 = vmatprep.subr.mxu0 0.0
    %846 = vmatpush1.xpose.msra.mxu0 0.0
    %847 = vmatprep.subr.mxu0 0.0
    %848 = vmatpush1.xpose.msra.mxu0 0.0
    %849 = vmatprep.subr.mxu0 0.0
    %850 = vmatpush1.xpose.msra.mxu0 0.0
    %851 = vmatprep.subr.mxu0 0.0
    %852 = vmatpush1.xpose.msra.mxu0 0.0
    %853 = vmatprep.subr.mxu0 0.0
    %854 = vmatpush1.xpose.msra.mxu0 0.0
    %855 = vmatprep.subr.mxu0 0.0
    %856 = vmatpush1.xpose.msra.mxu0 0.0
    %857 = vmatprep.subr.mxu0 0.0
    %858 = vmatpush1.xpose.msra.mxu0 0.0
    %859 = vmatprep.subr.mxu0 0.0
    %860 = vmatpush1.xpose.msra.mxu0 0.0
    %861 = vmatprep.subr.mxu0 0.0
    %862 = vmatpush1.xpose.msra.mxu0 0.0
    %863 = vmatprep.subr.mxu0 0.0
    %864 = vmatpush1.xpose.msra.mxu0 0.0
    %865 = vmatprep.subr.mxu0 0.0
    %866 = vmatpush1.xpose.msra.mxu0 0.0
    %867 = vmatprep.subr.mxu0 0.0
    %868 = vmatpush1.xpose.msra.mxu0 0.0
    %869 = vmatprep.subr.mxu0 0.0
    %870 = vmatpush1.xpose.msra.mxu0 0.0
    %871 = vmatprep.subr.mxu0 0.0
    %872 = vmatpush1.xpose.msra.mxu0 0.0
    %873 = vmatprep.subr.mxu0 0.0
    %874 = vmatpush1.xpose.msra.mxu0 0.0
    %875 = vmatprep.subr.mxu0 0.0
    %876 = vmatpush1.xpose.msra.mxu0 0.0
    %877 = vmatprep.subr.mxu0 0.0
    %878 = vmatpush1.xpose.msra.mxu0 0.0
    %879 = vmatprep.subr.mxu0 0.0
    %880 = vmatpush1.xpose.msra.mxu0 0.0
    %881 = vmatprep.subr.mxu0 0.0
    %882 = vmatpush1.xpose.msra.mxu0 0.0
    %883 = vmatprep.subr.mxu0 0.0
    %884 = vmatpush1.xpose.msra.mxu0 0.0
    %885 = vmatprep.subr.mxu0 0.0
    %886 = vmatpush1.xpose.msra.mxu0 0.0
    %887 = vmatprep.subr.mxu0 0.0
    %888 = vmatpush1.xpose.msra.mxu0 0.0
    %889 = vmatprep.subr.mxu0 0.0
    %890 = vmatpush1.xpose.msra.mxu0 0.0
    %891 = vmatprep.subr.mxu0 0.0
    %892 = vmatpush1.xpose.msra.mxu0 0.0
    %893 = vmatprep.subr.mxu0 0.0
    %894 = vmatpush1.xpose.msra.mxu0 0.0
    %895 = vmatprep.subr.mxu0 0.0
    %896 = vmatpush1.xpose.msra.mxu0 0.0
    %897 = vmatprep.subr.mxu0 0.0
    %898 = vmatpush1.xpose.msra.mxu0 0.0
    %899 = vmatprep.subr.mxu0 0.0
    %900 = vmatpush1.xpose.msra.mxu0 0.0
    %901 = vmatprep.mubr.f32.mxu0 0.0
    %902 = vmatmul.mubr.f32.gmra.mrb[0].mxu0 %v829
    %v903 = vpop.f32.mrb[0].mxu0
    %v904 = vadd.f32 0.0, %v903
    %v905 = vpop.f32.mrb[0].mxu0
    %906 = vmatprep.mubr.f32.mxu0 0.0
    %907 = vmatmul.mubr.f32.gmra.mrb[0].mxu0 %v831
    %v908 = vpop.f32.mrb[0].mxu0
    %v909 = vadd.f32 0.0, %v908
    %v910 = vpop.f32.mrb[0].mxu0
    %911 = vdwg.mxu0
    %v912 = vsel %vm282, %v904, -inf
    %913 = vmax.xlane.f32.xlu0 %v912
    %v914 = vpop.xlane.xlu0 %913
    %v915 = vsel %vm282, %v909, -inf
    %916 = vmax.xlane.f32.xlu0 %v915
    %v917 = vpop.xlane.xlu0 %916
    %v918 = vsub.f32 %v904, %v914
    %v919 = vsub.f32 %v909, %v917
    %v920 = vmul.f32 %v918, 1.442695
    %v921 = vpow.pop %v920
    %v922 = vmul.f32 %v919, 1.442695
    %v923 = vpow.pop %v922
    %v924 = vsel %vm282, %v921, 0.0
    %925 = vadd.xlane.f32.xlu0 %v924
    %v926 = vpop.xlane.xlu0 %925
    %v927 = vsel %vm282, %v923, 0.0
    %928 = vadd.xlane.f32.xlu0 %v927
    %v929 = vpop.xlane.xlu0 %928
    %v930 = vrcp.pop %v926
    %v931 = vmul.f32 %v921, %v930
    %v932 = vrcp.pop %v929
    %v933 = vmul.f32 %v923, %v932
    %934 = vset.pattern.permute.xlu0 98
    %935 = vperm.xlu0 %934, %v184
    %v936 = vpop.permute.xlu0 %935
    %938 = vset.pattern.permute.xlu0 98
    %939 = vperm.xlu0 %938, %v185
    %v940 = vpop.permute.xlu0 %939
    %v942 = vrcp.pop %v936
    %v943 = vmul.f32 1.0, %v942
    %v944 = vrcp.pop %v940
    %v945 = vmul.f32 1.0, %v944
    %v946 = vmul.f32 %v943, 0.3989423
    %v947 = vmul.f32 %v945, 0.3989423
    %v948 = vmul.f32 %v35, %v943
    %v949 = vmul.f32 %v36, %v945
    %v950 = vmul.f32 %v948, %v943
    %v951 = vmul.f32 %v949, %v945
    %v952 = vmul.f32 %v950, 1.442695
    %v953 = vpow.pop %v952
    %v954 = vmul.f32 %v951, 1.442695
    %v955 = vpow.pop %v954
    %v956 = vmul.f32 %v946, %v953
    %v957 = vmul.f32 %v947, %v955
    %s958 = scalar_lea.vmem [#allocation4], 32
    %959 = vst.msk [vmem:[%s958] sm:$0xff] %vm282, %v931
    %960 = vst.msk [vmem:[%s958 + $0x8] sm:$0xff] %vm282, %v933
    %s961 = scalar_lea.vmem [#allocation4], 96
    %962 = vst.msk [vmem:[%s961] sm:$0xff] %vm282, %v956
    %963 = vst.msk [vmem:[%s961 + $0x8] sm:$0xff] %vm282, %v957
    %s964 = scalar_lea.vmem [#allocation4], 160
    %965 = vst.msk [vmem:[%s964] sm:$0xff] %vm282, %v936
    %966 = vst.msk [vmem:[%s964 + $0x8] sm:$0xff] %vm282, %v940
    %967 = vrot.lane.b32.xlu0 %v126, 48
    %v968 = vpop.permute.xlu0 %967
    %969 = vrot.lane.b32.xlu0 %v131, 48
    %v970 = vpop.permute.xlu0 %969
    %v974 = vsel %vm282, %v931, 0
    %v977 = vsel %vm282, %v933, 0
    %979 = vmatprep.subr.mxu0 0.0
    %980 = vmatpush1.msra.mxu0 %v968
    %981 = vmatprep.subr.mxu0 0.0
    %982 = vmatpush1.msra.mxu0 %v970
    %983 = vmatprep.subr.mxu0 0.0
    %984 = vmatpush1.msra.mxu0 0.0
    %985 = vmatprep.subr.mxu0 0.0
    %986 = vmatpush1.msra.mxu0 0.0
    %987 = vmatprep.subr.mxu0 0.0
    %988 = vmatpush1.msra.mxu0 0.0
    %989 = vmatprep.subr.mxu0 0.0
    %990 = vmatpush1.msra.mxu0 0.0
    %991 = vmatprep.subr.mxu0 0.0
    %992 = vmatpush1.msra.mxu0 0.0
    %993 = vmatprep.subr.mxu0 0.0
    %994 = vmatpush1.msra.mxu0 0.0
    %995 = vmatprep.subr.mxu0 0.0
    %996 = vmatpush1.msra.mxu0 0.0
    %997 = vmatprep.subr.mxu0 0.0
    %998 = vmatpush1.msra.mxu0 0.0
    %999 = vmatprep.subr.mxu0 0.0
    %1000 = vmatpush1.msra.mxu0 0.0
    %1001 = vmatprep.subr.mxu0 0.0
    %1002 = vmatpush1.msra.mxu0 0.0
    %1003 = vmatprep.subr.mxu0 0.0
    %1004 = vmatpush1.msra.mxu0 0.0
    %1005 = vmatprep.subr.mxu0 0.0
    %1006 = vmatpush1.msra.mxu0 0.0
    %1007 = vmatprep.subr.mxu0 0.0
    %1008 = vmatpush1.msra.mxu0 0.0
    %1009 = vmatprep.subr.mxu0 0.0
    %1010 = vmatpush1.msra.mxu0 0.0
    %1011 = vmatprep.subr.mxu0 0.0
    %1012 = vmatpush1.msra.mxu0 0.0
    %1013 = vmatprep.subr.mxu0 0.0
    %1014 = vmatpush1.msra.mxu0 0.0
    %1015 = vmatprep.subr.mxu0 0.0
    %1016 = vmatpush1.msra.mxu0 0.0
    %1017 = vmatprep.subr.mxu0 0.0
    %1018 = vmatpush1.msra.mxu0 0.0
    %1019 = vmatprep.subr.mxu0 0.0
    %1020 = vmatpush1.msra.mxu0 0.0
    %1021 = vmatprep.subr.mxu0 0.0
    %1022 = vmatpush1.msra.mxu0 0.0
    %1023 = vmatprep.subr.mxu0 0.0
    %1024 = vmatpush1.msra.mxu0 0.0
    %1025 = vmatprep.subr.mxu0 0.0
    %1026 = vmatpush1.msra.mxu0 0.0
    %1027 = vmatprep.subr.mxu0 0.0
    %1028 = vmatpush1.msra.mxu0 0.0
    %1029 = vmatprep.subr.mxu0 0.0
    %1030 = vmatpush1.msra.mxu0 0.0
    %1031 = vmatprep.subr.mxu0 0.0
    %1032 = vmatpush1.msra.mxu0 0.0
    %1033 = vmatprep.subr.mxu0 0.0
    %1034 = vmatpush1.msra.mxu0 0.0
    %1035 = vmatprep.subr.mxu0 0.0
    %1036 = vmatpush1.msra.mxu0 0.0
    %1037 = vmatprep.subr.mxu0 0.0
    %1038 = vmatpush1.msra.mxu0 0.0
    %1039 = vmatprep.subr.mxu0 0.0
    %1040 = vmatpush1.msra.mxu0 0.0
    %1041 = vmatprep.subr.mxu0 0.0
    %1042 = vmatpush1.msra.mxu0 0.0
    %1043 = vmatprep.mubr.f32.mxu0 0.0
    %1044 = vmatmul.mubr.f32.gmra.mrb[0].mxu0 %v974
    %v1045 = vpop.f32.mrb[0].mxu0
    %v1046 = vadd.f32 0.0, %v1045
    %v1047 = vpop.f32.mrb[0].mxu0
    %1048 = vmatprep.mubr.f32.mxu0 0.0
    %1049 = vmatmul.mubr.f32.gmra.mrb[0].mxu0 %v977
    %v1050 = vpop.f32.mrb[0].mxu0
    %v1051 = vadd.f32 0.0, %v1050
    %v1052 = vpop.f32.mrb[0].mxu0
    %1053 = vdwg.mxu0
    %v1055 = vsel %vm198, %v1046, 0
    %v1058 = vsel %vm198, %v1051, 0
    %1060 = vmatprep.subr.mxu0 0.0
    %1061 = vmatpush1.msra.mxu0 %v190
    %1062 = vmatprep.subr.mxu0 0.0
    %1063 = vmatpush1.msra.mxu0 0.0
    %1064 = vmatprep.subr.mxu0 0.0
    %1065 = vmatpush1.msra.mxu0 0.0
    %1066 = vmatprep.subr.mxu0 0.0
    %1067 = vmatpush1.msra.mxu0 0.0
    %1068 = vmatprep.subr.mxu0 0.0
    %1069 = vmatpush1.msra.mxu0 0.0
    %1070 = vmatprep.subr.mxu0 0.0
    %1071 = vmatpush1.msra.mxu0 0.0
    %1072 = vmatprep.subr.mxu0 0.0
    %1073 = vmatpush1.msra.mxu0 0.0
    %1074 = vmatprep.subr.mxu0 0.0
    %1075 = vmatpush1.msra.mxu0 0.0
    %1076 = vmatprep.subr.mxu0 0.0
    %1077 = vmatpush1.msra.mxu0 0.0
    %1078 = vmatprep.subr.mxu0 0.0
    %1079 = vmatpush1.msra.mxu0 0.0
    %1080 = vmatprep.subr.mxu0 0.0
    %1081 = vmatpush1.msra.mxu0 0.0
    %1082 = vmatprep.subr.mxu0 0.0
    %1083 = vmatpush1.msra.mxu0 0.0
    %1084 = vmatprep.subr.mxu0 0.0
    %1085 = vmatpush1.msra.mxu0 0.0
    %1086 = vmatprep.subr.mxu0 0.0
    %1087 = vmatpush1.msra.mxu0 0.0
    %1088 = vmatprep.subr.mxu0 0.0
    %1089 = vmatpush1.msra.mxu0 0.0
    %1090 = vmatprep.subr.mxu0 0.0
    %1091 = vmatpush1.msra.mxu0 0.0
    %1092 = vmatprep.subr.mxu0 0.0
    %1093 = vmatpush1.msra.mxu0 0.0
    %1094 = vmatprep.subr.mxu0 0.0
    %1095 = vmatpush1.msra.mxu0 0.0
    %1096 = vmatprep.subr.mxu0 0.0
    %1097 = vmatpush1.msra.mxu0 0.0
    %1098 = vmatprep.subr.mxu0 0.0
    %1099 = vmatpush1.msra.mxu0 0.0
    %1100 = vmatprep.subr.mxu0 0.0
    %1101 = vmatpush1.msra.mxu0 0.0
    %1102 = vmatprep.subr.mxu0 0.0
    %1103 = vmatpush1.msra.mxu0 0.0
    %1104 = vmatprep.subr.mxu0 0.0
    %1105 = vmatpush1.msra.mxu0 0.0
    %1106 = vmatprep.subr.mxu0 0.0
    %1107 = vmatpush1.msra.mxu0 0.0
    %1108 = vmatprep.subr.mxu0 0.0
    %1109 = vmatpush1.msra.mxu0 0.0
    %1110 = vmatprep.subr.mxu0 0.0
    %1111 = vmatpush1.msra.mxu0 0.0
    %1112 = vmatprep.subr.mxu0 0.0
    %1113 = vmatpush1.msra.mxu0 0.0
    %1114 = vmatprep.subr.mxu0 0.0
    %1115 = vmatpush1.msra.mxu0 0.0
    %1116 = vmatprep.subr.mxu0 0.0
    %1117 = vmatpush1.msra.mxu0 0.0
    %1118 = vmatprep.subr.mxu0 0.0
    %1119 = vmatpush1.msra.mxu0 0.0
    %1120 = vmatprep.subr.mxu0 0.0
    %1121 = vmatpush1.msra.mxu0 0.0
    %1122 = vmatprep.subr.mxu0 0.0
    %1123 = vmatpush1.msra.mxu0 0.0
    %1124 = vmatprep.mubr.f32.mxu0 0.0
    %1125 = vmatmul.mubr.f32.gmra.mrb[0].mxu0 %v1055
    %v1126 = vpop.f32.mrb[0].mxu0
    %v1127 = vadd.f32 0.0, %v1126
    %v1128 = vpop.f32.mrb[0].mxu0
    %1129 = vmatprep.mubr.f32.mxu0 0.0
    %1130 = vmatmul.mubr.f32.gmra.mrb[0].mxu0 %v1058
    %v1131 = vpop.f32.mrb[0].mxu0
    %v1132 = vadd.f32 0.0, %v1131
    %v1133 = vpop.f32.mrb[0].mxu0
    %1134 = vdwg.mxu0
    %v1135 = vadd.f32 %v813, %v1127
    %v1136 = vadd.f32 %v818, %v1132
    %1137 = vrot.lane.b32.xlu0 %v126, 104
    %v1138 = vpop.permute.xlu0 %1137
    %1139 = vrot.lane.b32.xlu0 %v131, 104
    %v1140 = vpop.permute.xlu0 %1139
    %1141 = vrot.lane.b32.xlu0 %v126, 72
    %v1142 = vpop.permute.xlu0 %1141
    %1143 = vrot.lane.b32.xlu0 %v131, 72
    %v1144 = vpop.permute.xlu0 %1143
    %v1145 = vsel %vm198, %v1138, 0
    %v1147 = vsel %vm198, %v1140, 0
    %v1149 = vsel %vm198, %v1142, 0
    %v1151 = vsel %vm198, %v1144, 0
    %1153 = vmatprep.subr.mxu0 0.0
    %1154 = vmatpush1.xpose.msra.mxu0 %v1149
    %1155 = vmatprep.subr.mxu0 0.0
    %1156 = vmatpush1.xpose.msra.mxu0 %v1151
    %1157 = vmatprep.subr.mxu0 0.0
    %1158 = vmatpush1.xpose.msra.mxu0 0.0
    %1159 = vmatprep.subr.mxu0 0.0
    %1160 = vmatpush1.xpose.msra.mxu0 0.0
    %1161 = vmatprep.subr.mxu0 0.0
    %1162 = vmatpush1.xpose.msra.mxu0 0.0
    %1163 = vmatprep.subr.mxu0 0.0
    %1164 = vmatpush1.xpose.msra.mxu0 0.0
    %1165 = vmatprep.subr.mxu0 0.0
    %1166 = vmatpush1.xpose.msra.mxu0 0.0
    %1167 = vmatprep.subr.mxu0 0.0
    %1168 = vmatpush1.xpose.msra.mxu0 0.0
    %1169 = vmatprep.subr.mxu0 0.0
    %1170 = vmatpush1.xpose.msra.mxu0 0.0
    %1171 = vmatprep.subr.mxu0 0.0
    %1172 = vmatpush1.xpose.msra.mxu0 0.0
    %1173 = vmatprep.subr.mxu0 0.0
    %1174 = vmatpush1.xpose.msra.mxu0 0.0
    %1175 = vmatprep.subr.mxu0 0.0
    %1176 = vmatpush1.xpose.msra.mxu0 0.0
    %1177 = vmatprep.subr.mxu0 0.0
    %1178 = vmatpush1.xpose.msra.mxu0 0.0
    %1179 = vmatprep.subr.mxu0 0.0
    %1180 = vmatpush1.xpose.msra.mxu0 0.0
    %1181 = vmatprep.subr.mxu0 0.0
    %1182 = vmatpush1.xpose.msra.mxu0 0.0
    %1183 = vmatprep.subr.mxu0 0.0
    %1184 = vmatpush1.xpose.msra.mxu0 0.0
    %1185 = vmatprep.subr.mxu0 0.0
    %1186 = vmatpush1.xpose.msra.mxu0 0.0
    %1187 = vmatprep.subr.mxu0 0.0
    %1188 = vmatpush1.xpose.msra.mxu0 0.0
    %1189 = vmatprep.subr.mxu0 0.0
    %1190 = vmatpush1.xpose.msra.mxu0 0.0
    %1191 = vmatprep.subr.mxu0 0.0
    %1192 = vmatpush1.xpose.msra.mxu0 0.0
    %1193 = vmatprep.subr.mxu0 0.0
    %1194 = vmatpush1.xpose.msra.mxu0 0.0
    %1195 = vmatprep.subr.mxu0 0.0
    %1196 = vmatpush1.xpose.msra.mxu0 0.0
    %1197 = vmatprep.subr.mxu0 0.0
    %1198 = vmatpush1.xpose.msra.mxu0 0.0
    %1199 = vmatprep.subr.mxu0 0.0
    %1200 = vmatpush1.xpose.msra.mxu0 0.0
    %1201 = vmatprep.subr.mxu0 0.0
    %1202 = vmatpush1.xpose.msra.mxu0 0.0
    %1203 = vmatprep.subr.mxu0 0.0
    %1204 = vmatpush1.xpose.msra.mxu0 0.0
    %1205 = vmatprep.subr.mxu0 0.0
    %1206 = vmatpush1.xpose.msra.mxu0 0.0
    %1207 = vmatprep.subr.mxu0 0.0
    %1208 = vmatpush1.xpose.msra.mxu0 0.0
    %1209 = vmatprep.subr.mxu0 0.0
    %1210 = vmatpush1.xpose.msra.mxu0 0.0
    %1211 = vmatprep.subr.mxu0 0.0
    %1212 = vmatpush1.xpose.msra.mxu0 0.0
    %1213 = vmatprep.subr.mxu0 0.0
    %1214 = vmatpush1.xpose.msra.mxu0 0.0
    %1215 = vmatprep.subr.mxu0 0.0
    %1216 = vmatpush1.xpose.msra.mxu0 0.0
    %1217 = vmatprep.mubr.f32.mxu0 0.0
    %1218 = vmatmul.mubr.f32.gmra.mrb[0].mxu0 %v1145
    %v1219 = vpop.f32.mrb[0].mxu0
    %v1220 = vadd.f32 0.0, %v1219
    %v1221 = vpop.f32.mrb[0].mxu0
    %1222 = vmatprep.mubr.f32.mxu0 0.0
    %1223 = vmatmul.mubr.f32.gmra.mrb[0].mxu0 %v1147
    %v1224 = vpop.f32.mrb[0].mxu0
    %v1225 = vadd.f32 0.0, %v1224
    %v1226 = vpop.f32.mrb[0].mxu0
    %1227 = vdwg.mxu0
    %v1228 = vsel %vm282, %v1220, -inf
    %1229 = vmax.xlane.f32.xlu0 %v1228
    %v1230 = vpop.xlane.xlu0 %1229
    %v1231 = vsel %vm282, %v1225, -inf
    %1232 = vmax.xlane.f32.xlu0 %v1231
    %v1233 = vpop.xlane.xlu0 %1232
    %v1234 = vsub.f32 %v1220, %v1230
    %v1235 = vsub.f32 %v1225, %v1233
    %v1236 = vmul.f32 %v1234, 1.442695
    %v1237 = vpow.pop %v1236
    %v1238 = vmul.f32 %v1235, 1.442695
    %v1239 = vpow.pop %v1238
    %v1240 = vsel %vm282, %v1237, 0.0
    %1241 = vadd.xlane.f32.xlu0 %v1240
    %v1242 = vpop.xlane.xlu0 %1241
    %v1243 = vsel %vm282, %v1239, 0.0
    %1244 = vadd.xlane.f32.xlu0 %v1243
    %v1245 = vpop.xlane.xlu0 %1244
    %v1246 = vrcp.pop %v1242
    %v1247 = vmul.f32 %v1237, %v1246
    %v1248 = vrcp.pop %v1245
    %v1249 = vmul.f32 %v1239, %v1248
    %1250 = vset.pattern.permute.xlu0 99
    %1251 = vperm.xlu0 %1250, %v184
    %v1252 = vpop.permute.xlu0 %1251
    %1254 = vset.pattern.permute.xlu0 99
    %1255 = vperm.xlu0 %1254, %v185
    %v1256 = vpop.permute.xlu0 %1255
    %v1258 = vrcp.pop %v1252
    %v1259 = vmul.f32 1.0, %v1258
    %v1260 = vrcp.pop %v1256
    %v1261 = vmul.f32 1.0, %v1260
    %v1262 = vmul.f32 %v1259, 0.3989423
    %v1263 = vmul.f32 %v1261, 0.3989423
    %v1264 = vmul.f32 %v35, %v1259
    %v1265 = vmul.f32 %v36, %v1261
    %v1266 = vmul.f32 %v1264, %v1259
    %v1267 = vmul.f32 %v1265, %v1261
    %v1268 = vmul.f32 %v1266, 1.442695
    %v1269 = vpow.pop %v1268
    %v1270 = vmul.f32 %v1267, 1.442695
    %v1271 = vpow.pop %v1270
    %v1272 = vmul.f32 %v1262, %v1269
    %v1273 = vmul.f32 %v1263, %v1271
    %s1274 = scalar_lea.vmem [#allocation4], 48
    %1275 = vst.msk [vmem:[%s1274] sm:$0xff] %vm282, %v1247
    %1276 = vst.msk [vmem:[%s1274 + $0x8] sm:$0xff] %vm282, %v1249
    %s1277 = scalar_lea.vmem [#allocation4], 112
    %1278 = vst.msk [vmem:[%s1277] sm:$0xff] %vm282, %v1272
    %1279 = vst.msk [vmem:[%s1277 + $0x8] sm:$0xff] %vm282, %v1273
    %s1280 = scalar_lea.vmem [#allocation4], 176
    %1281 = vst.msk [vmem:[%s1280] sm:$0xff] %vm282, %v1252
    %1282 = vst.msk [vmem:[%s1280 + $0x8] sm:$0xff] %vm282, %v1256
    %1283 = vrot.lane.b32.xlu0 %v126, 40
    %v1284 = vpop.permute.xlu0 %1283
    %1285 = vrot.lane.b32.xlu0 %v131, 40
    %v1286 = vpop.permute.xlu0 %1285
    %v1290 = vsel %vm282, %v1247, 0
    %v1293 = vsel %vm282, %v1249, 0
    %1295 = vmatprep.subr.mxu0 0.0
    %1296 = vmatpush1.msra.mxu0 %v1284
    %1297 = vmatprep.subr.mxu0 0.0
    %1298 = vmatpush1.msra.mxu0 %v1286
    %1299 = vmatprep.subr.mxu0 0.0
    %1300 = vmatpush1.msra.mxu0 0.0
    %1301 = vmatprep.subr.mxu0 0.0
    %1302 = vmatpush1.msra.mxu0 0.0
    %1303 = vmatprep.subr.mxu0 0.0
    %1304 = vmatpush1.msra.mxu0 0.0
    %1305 = vmatprep.subr.mxu0 0.0
    %1306 = vmatpush1.msra.mxu0 0.0
    %1307 = vmatprep.subr.mxu0 0.0
    %1308 = vmatpush1.msra.mxu0 0.0
    %1309 = vmatprep.subr.mxu0 0.0
    %1310 = vmatpush1.msra.mxu0 0.0
    %1311 = vmatprep.subr.mxu0 0.0
    %1312 = vmatpush1.msra.mxu0 0.0
    %1313 = vmatprep.subr.mxu0 0.0
    %1314 = vmatpush1.msra.mxu0 0.0
    %1315 = vmatprep.subr.mxu0 0.0
    %1316 = vmatpush1.msra.mxu0 0.0
    %1317 = vmatprep.subr.mxu0 0.0
    %1318 = vmatpush1.msra.mxu0 0.0
    %1319 = vmatprep.subr.mxu0 0.0
    %1320 = vmatpush1.msra.mxu0 0.0
    %1321 = vmatprep.subr.mxu0 0.0
    %1322 = vmatpush1.msra.mxu0 0.0
    %1323 = vmatprep.subr.mxu0 0.0
    %1324 = vmatpush1.msra.mxu0 0.0
    %1325 = vmatprep.subr.mxu0 0.0
    %1326 = vmatpush1.msra.mxu0 0.0
    %1327 = vmatprep.subr.mxu0 0.0
    %1328 = vmatpush1.msra.mxu0 0.0
    %1329 = vmatprep.subr.mxu0 0.0
    %1330 = vmatpush1.msra.mxu0 0.0
    %1331 = vmatprep.subr.mxu0 0.0
    %1332 = vmatpush1.msra.mxu0 0.0
    %1333 = vmatprep.subr.mxu0 0.0
    %1334 = vmatpush1.msra.mxu0 0.0
    %1335 = vmatprep.subr.mxu0 0.0
    %1336 = vmatpush1.msra.mxu0 0.0
    %1337 = vmatprep.subr.mxu0 0.0
    %1338 = vmatpush1.msra.mxu0 0.0
    %1339 = vmatprep.subr.mxu0 0.0
    %1340 = vmatpush1.msra.mxu0 0.0
    %1341 = vmatprep.subr.mxu0 0.0
    %1342 = vmatpush1.msra.mxu0 0.0
    %1343 = vmatprep.subr.mxu0 0.0
    %1344 = vmatpush1.msra.mxu0 0.0
    %1345 = vmatprep.subr.mxu0 0.0
    %1346 = vmatpush1.msra.mxu0 0.0
    %1347 = vmatprep.subr.mxu0 0.0
    %1348 = vmatpush1.msra.mxu0 0.0
    %1349 = vmatprep.subr.mxu0 0.0
    %1350 = vmatpush1.msra.mxu0 0.0
    %1351 = vmatprep.subr.mxu0 0.0
    %1352 = vmatpush1.msra.mxu0 0.0
    %1353 = vmatprep.subr.mxu0 0.0
    %1354 = vmatpush1.msra.mxu0 0.0
    %1355 = vmatprep.subr.mxu0 0.0
    %1356 = vmatpush1.msra.mxu0 0.0
    %1357 = vmatprep.subr.mxu0 0.0
    %1358 = vmatpush1.msra.mxu0 0.0
    %1359 = vmatprep.mubr.f32.mxu0 0.0
    %1360 = vmatmul.mubr.f32.gmra.mrb[0].mxu0 %v1290
    %v1361 = vpop.f32.mrb[0].mxu0
    %v1362 = vadd.f32 0.0, %v1361
    %v1363 = vpop.f32.mrb[0].mxu0
    %1364 = vmatprep.mubr.f32.mxu0 0.0
    %1365 = vmatmul.mubr.f32.gmra.mrb[0].mxu0 %v1293
    %v1366 = vpop.f32.mrb[0].mxu0
    %v1367 = vadd.f32 0.0, %v1366
    %v1368 = vpop.f32.mrb[0].mxu0
    %1369 = vdwg.mxu0
    %v1371 = vsel %vm198, %v1362, 0
    %v1374 = vsel %vm198, %v1367, 0
    %1376 = vmatprep.subr.mxu0 0.0
    %1377 = vmatpush1.msra.mxu0 %v191
    %1378 = vmatprep.subr.mxu0 0.0
    %1379 = vmatpush1.msra.mxu0 0.0
    %1380 = vmatprep.subr.mxu0 0.0
    %1381 = vmatpush1.msra.mxu0 0.0
    %1382 = vmatprep.subr.mxu0 0.0
    %1383 = vmatpush1.msra.mxu0 0.0
    %1384 = vmatprep.subr.mxu0 0.0
    %1385 = vmatpush1.msra.mxu0 0.0
    %1386 = vmatprep.subr.mxu0 0.0
    %1387 = vmatpush1.msra.mxu0 0.0
    %1388 = vmatprep.subr.mxu0 0.0
    %1389 = vmatpush1.msra.mxu0 0.0
    %1390 = vmatprep.subr.mxu0 0.0
    %1391 = vmatpush1.msra.mxu0 0.0
    %1392 = vmatprep.subr.mxu0 0.0
    %1393 = vmatpush1.msra.mxu0 0.0
    %1394 = vmatprep.subr.mxu0 0.0
    %1395 = vmatpush1.msra.mxu0 0.0
    %1396 = vmatprep.subr.mxu0 0.0
    %1397 = vmatpush1.msra.mxu0 0.0
    %1398 = vmatprep.subr.mxu0 0.0
    %1399 = vmatpush1.msra.mxu0 0.0
    %1400 = vmatprep.subr.mxu0 0.0
    %1401 = vmatpush1.msra.mxu0 0.0
    %1402 = vmatprep.subr.mxu0 0.0
    %1403 = vmatpush1.msra.mxu0 0.0
    %1404 = vmatprep.subr.mxu0 0.0
    %1405 = vmatpush1.msra.mxu0 0.0
    %1406 = vmatprep.subr.mxu0 0.0
    %1407 = vmatpush1.msra.mxu0 0.0
    %1408 = vmatprep.subr.mxu0 0.0
    %1409 = vmatpush1.msra.mxu0 0.0
    %1410 = vmatprep.subr.mxu0 0.0
    %1411 = vmatpush1.msra.mxu0 0.0
    %1412 = vmatprep.subr.mxu0 0.0
    %1413 = vmatpush1.msra.mxu0 0.0
    %1414 = vmatprep.subr.mxu0 0.0
    %1415 = vmatpush1.msra.mxu0 0.0
    %1416 = vmatprep.subr.mxu0 0.0
    %1417 = vmatpush1.msra.mxu0 0.0
    %1418 = vmatprep.subr.mxu0 0.0
    %1419 = vmatpush1.msra.mxu0 0.0
    %1420 = vmatprep.subr.mxu0 0.0
    %1421 = vmatpush1.msra.mxu0 0.0
    %1422 = vmatprep.subr.mxu0 0.0
    %1423 = vmatpush1.msra.mxu0 0.0
    %1424 = vmatprep.subr.mxu0 0.0
    %1425 = vmatpush1.msra.mxu0 0.0
    %1426 = vmatprep.subr.mxu0 0.0
    %1427 = vmatpush1.msra.mxu0 0.0
    %1428 = vmatprep.subr.mxu0 0.0
    %1429 = vmatpush1.msra.mxu0 0.0
    %1430 = vmatprep.subr.mxu0 0.0
    %1431 = vmatpush1.msra.mxu0 0.0
    %1432 = vmatprep.subr.mxu0 0.0
    %1433 = vmatpush1.msra.mxu0 0.0
    %1434 = vmatprep.subr.mxu0 0.0
    %1435 = vmatpush1.msra.mxu0 0.0
    %1436 = vmatprep.subr.mxu0 0.0
    %1437 = vmatpush1.msra.mxu0 0.0
    %1438 = vmatprep.subr.mxu0 0.0
    %1439 = vmatpush1.msra.mxu0 0.0
    %1440 = vmatprep.mubr.f32.mxu0 0.0
    %1441 = vmatmul.mubr.f32.gmra.mrb[0].mxu0 %v1371
    %v1442 = vpop.f32.mrb[0].mxu0
    %v1443 = vadd.f32 0.0, %v1442
    %v1444 = vpop.f32.mrb[0].mxu0
    %1445 = vmatprep.mubr.f32.mxu0 0.0
    %1446 = vmatmul.mubr.f32.gmra.mrb[0].mxu0 %v1374
    %v1447 = vpop.f32.mrb[0].mxu0
    %v1448 = vadd.f32 0.0, %v1447
    %v1449 = vpop.f32.mrb[0].mxu0
    %1450 = vdwg.mxu0
    %v1451 = vadd.f32 %v1135, %v1443
    %v1452 = vadd.f32 %v1136, %v1448
    %1455 = vrot.lane.b32.xlu0 %v136, 96
    %v1456 = vpop.permute.xlu0 %1455
    %1457 = vrot.lane.b32.xlu0 %v141, 96
    %v1458 = vpop.permute.xlu0 %1457
    %v1459 = vsel %vm198, %v136, 0
    %v1461 = vsel %vm198, %v141, 0
    %v1463 = vsel %vm198, %v1456, 0
    %v1465 = vsel %vm198, %v1458, 0
    %1467 = vmatprep.subr.mxu0 0.0
    %1468 = vmatpush1.xpose.msra.mxu0 %v1463
    %1469 = vmatprep.subr.mxu0 0.0
    %1470 = vmatpush1.xpose.msra.mxu0 %v1465
    %1471 = vmatprep.subr.mxu0 0.0
    %1472 = vmatpush1.xpose.msra.mxu0 0.0
    %1473 = vmatprep.subr.mxu0 0.0
    %1474 = vmatpush1.xpose.msra.mxu0 0.0
    %1475 = vmatprep.subr.mxu0 0.0
    %1476 = vmatpush1.xpose.msra.mxu0 0.0
    %1477 = vmatprep.subr.mxu0 0.0
    %1478 = vmatpush1.xpose.msra.mxu0 0.0
    %1479 = vmatprep.subr.mxu0 0.0
    %1480 = vmatpush1.xpose.msra.mxu0 0.0
    %1481 = vmatprep.subr.mxu0 0.0
    %1482 = vmatpush1.xpose.msra.mxu0 0.0
    %1483 = vmatprep.subr.mxu0 0.0
    %1484 = vmatpush1.xpose.msra.mxu0 0.0
    %1485 = vmatprep.subr.mxu0 0.0
    %1486 = vmatpush1.xpose.msra.mxu0 0.0
    %1487 = vmatprep.subr.mxu0 0.0
    %1488 = vmatpush1.xpose.msra.mxu0 0.0
    %1489 = vmatprep.subr.mxu0 0.0
    %1490 = vmatpush1.xpose.msra.mxu0 0.0
    %1491 = vmatprep.subr.mxu0 0.0
    %1492 = vmatpush1.xpose.msra.mxu0 0.0
    %1493 = vmatprep.subr.mxu0 0.0
    %1494 = vmatpush1.xpose.msra.mxu0 0.0
    %1495 = vmatprep.subr.mxu0 0.0
    %1496 = vmatpush1.xpose.msra.mxu0 0.0
    %1497 = vmatprep.subr.mxu0 0.0
    %1498 = vmatpush1.xpose.msra.mxu0 0.0
    %1499 = vmatprep.subr.mxu0 0.0
    %1500 = vmatpush1.xpose.msra.mxu0 0.0
    %1501 = vmatprep.subr.mxu0 0.0
    %1502 = vmatpush1.xpose.msra.mxu0 0.0
    %1503 = vmatprep.subr.mxu0 0.0
    %1504 = vmatpush1.xpose.msra.mxu0 0.0
    %1505 = vmatprep.subr.mxu0 0.0
    %1506 = vmatpush1.xpose.msra.mxu0 0.0
    %1507 = vmatprep.subr.mxu0 0.0
    %1508 = vmatpush1.xpose.msra.mxu0 0.0
    %1509 = vmatprep.subr.mxu0 0.0
    %1510 = vmatpush1.xpose.msra.mxu0 0.0
    %1511 = vmatprep.subr.mxu0 0.0
    %1512 = vmatpush1.xpose.msra.mxu0 0.0
    %1513 = vmatprep.subr.mxu0 0.0
    %1514 = vmatpush1.xpose.msra.mxu0 0.0
    %1515 = vmatprep.subr.mxu0 0.0
    %1516 = vmatpush1.xpose.msra.mxu0 0.0
    %1517 = vmatprep.subr.mxu0 0.0
    %1518 = vmatpush1.xpose.msra.mxu0 0.0
    %1519 = vmatprep.subr.mxu0 0.0
    %1520 = vmatpush1.xpose.msra.mxu0 0.0
    %1521 = vmatprep.subr.mxu0 0.0
    %1522 = vmatpush1.xpose.msra.mxu0 0.0
    %1523 = vmatprep.subr.mxu0 0.0
    %1524 = vmatpush1.xpose.msra.mxu0 0.0
    %1525 = vmatprep.subr.mxu0 0.0
    %1526 = vmatpush1.xpose.msra.mxu0 0.0
    %1527 = vmatprep.subr.mxu0 0.0
    %1528 = vmatpush1.xpose.msra.mxu0 0.0
    %1529 = vmatprep.subr.mxu0 0.0
    %1530 = vmatpush1.xpose.msra.mxu0 0.0
    %1531 = vmatprep.mubr.f32.mxu0 0.0
    %1532 = vmatmul.mubr.f32.gmra.mrb[0].mxu0 %v1459
    %v1533 = vpop.f32.mrb[0].mxu0
    %v1534 = vadd.f32 0.0, %v1533
    %v1535 = vpop.f32.mrb[0].mxu0
    %1536 = vmatprep.mubr.f32.mxu0 0.0
    %1537 = vmatmul.mubr.f32.gmra.mrb[0].mxu0 %v1461
    %v1538 = vpop.f32.mrb[0].mxu0
    %v1539 = vadd.f32 0.0, %v1538
    %v1540 = vpop.f32.mrb[0].mxu0
    %1541 = vdwg.mxu0
    %v1542 = vsel %vm282, %v1534, -inf
    %1543 = vmax.xlane.f32.xlu0 %v1542
    %v1544 = vpop.xlane.xlu0 %1543
    %v1545 = vsel %vm282, %v1539, -inf
    %1546 = vmax.xlane.f32.xlu0 %v1545
    %v1547 = vpop.xlane.xlu0 %1546
    %v1548 = vsub.f32 %v1534, %v1544
    %v1549 = vsub.f32 %v1539, %v1547
    %v1550 = vmul.f32 %v1548, 1.442695
    %v1551 = vpow.pop %v1550
    %v1552 = vmul.f32 %v1549, 1.442695
    %v1553 = vpow.pop %v1552
    %v1554 = vsel %vm282, %v1551, 0.0
    %1555 = vadd.xlane.f32.xlu0 %v1554
    %v1556 = vpop.xlane.xlu0 %1555
    %v1557 = vsel %vm282, %v1553, 0.0
    %1558 = vadd.xlane.f32.xlu0 %v1557
    %v1559 = vpop.xlane.xlu0 %1558
    %v1560 = vrcp.pop %v1556
    %v1561 = vmul.f32 %v1551, %v1560
    %v1562 = vrcp.pop %v1559
    %v1563 = vmul.f32 %v1553, %v1562
    %1565 = vset.pattern.permute.xlu0 96
    %1566 = vperm.xlu0 %1565, %v186
    %v1567 = vpop.permute.xlu0 %1566
    %1570 = vset.pattern.permute.xlu0 96
    %1571 = vperm.xlu0 %1570, %v187
    %v1572 = vpop.permute.xlu0 %1571
    %v1574 = vrcp.pop %v1567
    %v1575 = vmul.f32 1.0, %v1574
    %v1576 = vrcp.pop %v1572
    %v1577 = vmul.f32 1.0, %v1576
    %v1578 = vmul.f32 %v1575, 0.3989423
    %v1579 = vmul.f32 %v1577, 0.3989423
    %v1580 = vmul.f32 %v35, %v1575
    %v1581 = vmul.f32 %v36, %v1577
    %v1582 = vmul.f32 %v1580, %v1575
    %v1583 = vmul.f32 %v1581, %v1577
    %v1584 = vmul.f32 %v1582, 1.442695
    %v1585 = vpow.pop %v1584
    %v1586 = vmul.f32 %v1583, 1.442695
    %v1587 = vpow.pop %v1586
    %v1588 = vmul.f32 %v1578, %v1585
    %v1589 = vmul.f32 %v1579, %v1587
    %s1590 = scalar_lea.vmem [#allocation4], 192
    %1591 = vst.msk [vmem:[%s1590] sm:$0xff] %vm282, %v1561
    %1592 = vst.msk [vmem:[%s1590 + $0x8] sm:$0xff] %vm282, %v1563
    %s1593 = scalar_lea.vmem [#allocation4], 256
    %1594 = vst.msk [vmem:[%s1593] sm:$0xff] %vm282, %v1588
    %1595 = vst.msk [vmem:[%s1593 + $0x8] sm:$0xff] %vm282, %v1589
    %s1596 = scalar_lea.vmem [#allocation4], 320
    %1597 = vst.msk [vmem:[%s1596] sm:$0xff] %vm282, %v1567
    %1598 = vst.msk [vmem:[%s1596 + $0x8] sm:$0xff] %vm282, %v1572
    %1599 = vrot.lane.b32.xlu0 %v136, 64
    %v1600 = vpop.permute.xlu0 %1599
    %1601 = vrot.lane.b32.xlu0 %v141, 64
    %v1602 = vpop.permute.xlu0 %1601
    %v1606 = vsel %vm282, %v1561, 0
    %v1609 = vsel %vm282, %v1563, 0
    %1611 = vmatprep.subr.mxu0 0.0
    %1612 = vmatpush1.msra.mxu0 %v1600
    %1613 = vmatprep.subr.mxu0 0.0
    %1614 = vmatpush1.msra.mxu0 %v1602
    %1615 = vmatprep.subr.mxu0 0.0
    %1616 = vmatpush1.msra.mxu0 0.0
    %1617 = vmatprep.subr.mxu0 0.0
    %1618 = vmatpush1.msra.mxu0 0.0
    %1619 = vmatprep.subr.mxu0 0.0
    %1620 = vmatpush1.msra.mxu0 0.0
    %1621 = vmatprep.subr.mxu0 0.0
    %1622 = vmatpush1.msra.mxu0 0.0
    %1623 = vmatprep.subr.mxu0 0.0
    %1624 = vmatpush1.msra.mxu0 0.0
    %1625 = vmatprep.subr.mxu0 0.0
    %1626 = vmatpush1.msra.mxu0 0.0
    %1627 = vmatprep.subr.mxu0 0.0
    %1628 = vmatpush1.msra.mxu0 0.0
    %1629 = vmatprep.subr.mxu0 0.0
    %1630 = vmatpush1.msra.mxu0 0.0
    %1631 = vmatprep.subr.mxu0 0.0
    %1632 = vmatpush1.msra.mxu0 0.0
    %1633 = vmatprep.subr.mxu0 0.0
    %1634 = vmatpush1.msra.mxu0 0.0
    %1635 = vmatprep.subr.mxu0 0.0
    %1636 = vmatpush1.msra.mxu0 0.0
    %1637 = vmatprep.subr.mxu0 0.0
    %1638 = vmatpush1.msra.mxu0 0.0
    %1639 = vmatprep.subr.mxu0 0.0
    %1640 = vmatpush1.msra.mxu0 0.0
    %1641 = vmatprep.subr.mxu0 0.0
    %1642 = vmatpush1.msra.mxu0 0.0
    %1643 = vmatprep.subr.mxu0 0.0
    %1644 = vmatpush1.msra.mxu0 0.0
    %1645 = vmatprep.subr.mxu0 0.0
    %1646 = vmatpush1.msra.mxu0 0.0
    %1647 = vmatprep.subr.mxu0 0.0
    %1648 = vmatpush1.msra.mxu0 0.0
    %1649 = vmatprep.subr.mxu0 0.0
    %1650 = vmatpush1.msra.mxu0 0.0
    %1651 = vmatprep.subr.mxu0 0.0
    %1652 = vmatpush1.msra.mxu0 0.0
    %1653 = vmatprep.subr.mxu0 0.0
    %1654 = vmatpush1.msra.mxu0 0.0
    %1655 = vmatprep.subr.mxu0 0.0
    %1656 = vmatpush1.msra.mxu0 0.0
    %1657 = vmatprep.subr.mxu0 0.0
    %1658 = vmatpush1.msra.mxu0 0.0
    %1659 = vmatprep.subr.mxu0 0.0
    %1660 = vmatpush1.msra.mxu0 0.0
    %1661 = vmatprep.subr.mxu0 0.0
    %1662 = vmatpush1.msra.mxu0 0.0
    %1663 = vmatprep.subr.mxu0 0.0
    %1664 = vmatpush1.msra.mxu0 0.0
    %1665 = vmatprep.subr.mxu0 0.0
    %1666 = vmatpush1.msra.mxu0 0.0
    %1667 = vmatprep.subr.mxu0 0.0
    %1668 = vmatpush1.msra.mxu0 0.0
    %1669 = vmatprep.subr.mxu0 0.0
    %1670 = vmatpush1.msra.mxu0 0.0
    %1671 = vmatprep.subr.mxu0 0.0
    %1672 = vmatpush1.msra.mxu0 0.0
    %1673 = vmatprep.subr.mxu0 0.0
    %1674 = vmatpush1.msra.mxu0 0.0
    %1675 = vmatprep.mubr.f32.mxu0 0.0
    %1676 = vmatmul.mubr.f32.gmra.mrb[0].mxu0 %v1606
    %v1677 = vpop.f32.mrb[0].mxu0
    %v1678 = vadd.f32 0.0, %v1677
    %v1679 = vpop.f32.mrb[0].mxu0
    %1680 = vmatprep.mubr.f32.mxu0 0.0
    %1681 = vmatmul.mubr.f32.gmra.mrb[0].mxu0 %v1609
    %v1682 = vpop.f32.mrb[0].mxu0
    %v1683 = vadd.f32 0.0, %v1682
    %v1684 = vpop.f32.mrb[0].mxu0
    %1685 = vdwg.mxu0
    %1686 = vrot.lane.b32.xlu0 %v136, 120
    %v1687 = vpop.permute.xlu0 %1686
    %1688 = vrot.lane.b32.xlu0 %v141, 120
    %v1689 = vpop.permute.xlu0 %1688
    %1690 = vrot.lane.b32.xlu0 %v136, 88
    %v1691 = vpop.permute.xlu0 %1690
    %1692 = vrot.lane.b32.xlu0 %v141, 88
    %v1693 = vpop.permute.xlu0 %1692
    %v1694 = vsel %vm198, %v1687, 0
    %v1696 = vsel %vm198, %v1689, 0
    %v1698 = vsel %vm198, %v1691, 0
    %v1700 = vsel %vm198, %v1693, 0
    %1702 = vmatprep.subr.mxu0 0.0
    %1703 = vmatpush1.xpose.msra.mxu0 %v1698
    %1704 = vmatprep.subr.mxu0 0.0
    %1705 = vmatpush1.xpose.msra.mxu0 %v1700
    %1706 = vmatprep.subr.mxu0 0.0
    %1707 = vmatpush1.xpose.msra.mxu0 0.0
    %1708 = vmatprep.subr.mxu0 0.0
    %1709 = vmatpush1.xpose.msra.mxu0 0.0
    %1710 = vmatprep.subr.mxu0 0.0
    %1711 = vmatpush1.xpose.msra.mxu0 0.0
    %1712 = vmatprep.subr.mxu0 0.0
    %1713 = vmatpush1.xpose.msra.mxu0 0.0
    %1714 = vmatprep.subr.mxu0 0.0
    %1715 = vmatpush1.xpose.msra.mxu0 0.0
    %1716 = vmatprep.subr.mxu0 0.0
    %1717 = vmatpush1.xpose.msra.mxu0 0.0
    %1718 = vmatprep.subr.mxu0 0.0
    %1719 = vmatpush1.xpose.msra.mxu0 0.0
    %1720 = vmatprep.subr.mxu0 0.0
    %1721 = vmatpush1.xpose.msra.mxu0 0.0
    %1722 = vmatprep.subr.mxu0 0.0
    %1723 = vmatpush1.xpose.msra.mxu0 0.0
    %1724 = vmatprep.subr.mxu0 0.0
    %1725 = vmatpush1.xpose.msra.mxu0 0.0
    %1726 = vmatprep.subr.mxu0 0.0
    %1727 = vmatpush1.xpose.msra.mxu0 0.0
    %1728 = vmatprep.subr.mxu0 0.0
    %1729 = vmatpush1.xpose.msra.mxu0 0.0
    %1730 = vmatprep.subr.mxu0 0.0
    %1731 = vmatpush1.xpose.msra.mxu0 0.0
    %1732 = vmatprep.subr.mxu0 0.0
    %1733 = vmatpush1.xpose.msra.mxu0 0.0
    %1734 = vmatprep.subr.mxu0 0.0
    %1735 = vmatpush1.xpose.msra.mxu0 0.0
    %1736 = vmatprep.subr.mxu0 0.0
    %1737 = vmatpush1.xpose.msra.mxu0 0.0
    %1738 = vmatprep.subr.mxu0 0.0
    %1739 = vmatpush1.xpose.msra.mxu0 0.0
    %1740 = vmatprep.subr.mxu0 0.0
    %1741 = vmatpush1.xpose.msra.mxu0 0.0
    %1742 = vmatprep.subr.mxu0 0.0
    %1743 = vmatpush1.xpose.msra.mxu0 0.0
    %1744 = vmatprep.subr.mxu0 0.0
    %1745 = vmatpush1.xpose.msra.mxu0 0.0
    %1746 = vmatprep.subr.mxu0 0.0
    %1747 = vmatpush1.xpose.msra.mxu0 0.0
    %1748 = vmatprep.subr.mxu0 0.0
    %1749 = vmatpush1.xpose.msra.mxu0 0.0
    %1750 = vmatprep.subr.mxu0 0.0
    %1751 = vmatpush1.xpose.msra.mxu0 0.0
    %1752 = vmatprep.subr.mxu0 0.0
    %1753 = vmatpush1.xpose.msra.mxu0 0.0
    %1754 = vmatprep.subr.mxu0 0.0
    %1755 = vmatpush1.xpose.msra.mxu0 0.0
    %1756 = vmatprep.subr.mxu0 0.0
    %1757 = vmatpush1.xpose.msra.mxu0 0.0
    %1758 = vmatprep.subr.mxu0 0.0
    %1759 = vmatpush1.xpose.msra.mxu0 0.0
    %1760 = vmatprep.subr.mxu0 0.0
    %1761 = vmatpush1.xpose.msra.mxu0 0.0
    %1762 = vmatprep.subr.mxu0 0.0
    %1763 = vmatpush1.xpose.msra.mxu0 0.0
    %1764 = vmatprep.subr.mxu0 0.0
    %1765 = vmatpush1.xpose.msra.mxu0 0.0
    %1766 = vmatprep.mubr.f32.mxu0 0.0
    %1767 = vmatmul.mubr.f32.gmra.mrb[0].mxu0 %v1694
    %v1768 = vpop.f32.mrb[0].mxu0
    %v1769 = vadd.f32 0.0, %v1768
    %v1770 = vpop.f32.mrb[0].mxu0
    %1771 = vmatprep.mubr.f32.mxu0 0.0
    %1772 = vmatmul.mubr.f32.gmra.mrb[0].mxu0 %v1696
    %v1773 = vpop.f32.mrb[0].mxu0
    %v1774 = vadd.f32 0.0, %v1773
    %v1775 = vpop.f32.mrb[0].mxu0
    %1776 = vdwg.mxu0
    %v1777 = vsel %vm282, %v1769, -inf
    %1778 = vmax.xlane.f32.xlu0 %v1777
    %v1779 = vpop.xlane.xlu0 %1778
    %v1780 = vsel %vm282, %v1774, -inf
    %1781 = vmax.xlane.f32.xlu0 %v1780
    %v1782 = vpop.xlane.xlu0 %1781
    %v1783 = vsub.f32 %v1769, %v1779
    %v1784 = vsub.f32 %v1774, %v1782
    %v1785 = vmul.f32 %v1783, 1.442695
    %v1786 = vpow.pop %v1785
    %v1787 = vmul.f32 %v1784, 1.442695
    %v1788 = vpow.pop %v1787
    %v1789 = vsel %vm282, %v1786, 0.0
    %1790 = vadd.xlane.f32.xlu0 %v1789
    %v1791 = vpop.xlane.xlu0 %1790
    %v1792 = vsel %vm282, %v1788, 0.0
    %1793 = vadd.xlane.f32.xlu0 %v1792
    %v1794 = vpop.xlane.xlu0 %1793
    %v1795 = vrcp.pop %v1791
    %v1796 = vmul.f32 %v1786, %v1795
    %v1797 = vrcp.pop %v1794
    %v1798 = vmul.f32 %v1788, %v1797
    %1799 = vset.pattern.permute.xlu0 97
    %1800 = vperm.xlu0 %1799, %v186
    %v1801 = vpop.permute.xlu0 %1800
    %1803 = vset.pattern.permute.xlu0 97
    %1804 = vperm.xlu0 %1803, %v187
    %v1805 = vpop.permute.xlu0 %1804
    %v1807 = vrcp.pop %v1801
    %v1808 = vmul.f32 1.0, %v1807
    %v1809 = vrcp.pop %v1805
    %v1810 = vmul.f32 1.0, %v1809
    %v1811 = vmul.f32 %v1808, 0.3989423
    %v1812 = vmul.f32 %v1810, 0.3989423
    %v1813 = vmul.f32 %v35, %v1808
    %v1814 = vmul.f32 %v36, %v1810
    %v1815 = vmul.f32 %v1813, %v1808
    %v1816 = vmul.f32 %v1814, %v1810
    %v1817 = vmul.f32 %v1815, 1.442695
    %v1818 = vpow.pop %v1817
    %v1819 = vmul.f32 %v1816, 1.442695
    %v1820 = vpow.pop %v1819
    %v1821 = vmul.f32 %v1811, %v1818
    %v1822 = vmul.f32 %v1812, %v1820
    %s1823 = scalar_lea.vmem [#allocation4], 208
    %1824 = vst.msk [vmem:[%s1823] sm:$0xff] %vm282, %v1796
    %1825 = vst.msk [vmem:[%s1823 + $0x8] sm:$0xff] %vm282, %v1798
    %s1826 = scalar_lea.vmem [#allocation4], 272
    %1827 = vst.msk [vmem:[%s1826] sm:$0xff] %vm282, %v1821
    %1828 = vst.msk [vmem:[%s1826 + $0x8] sm:$0xff] %vm282, %v1822
    %s1829 = scalar_lea.vmem [#allocation4], 336
    %1830 = vst.msk [vmem:[%s1829] sm:$0xff] %vm282, %v1801
    %1831 = vst.msk [vmem:[%s1829 + $0x8] sm:$0xff] %vm282, %v1805
    %1832 = vrot.lane.b32.xlu0 %v136, 56
    %v1833 = vpop.permute.xlu0 %1832
    %1834 = vrot.lane.b32.xlu0 %v141, 56
    %v1835 = vpop.permute.xlu0 %1834
    %v1839 = vsel %vm282, %v1796, 0
    %v1842 = vsel %vm282, %v1798, 0
    %1844 = vmatprep.subr.mxu0 0.0
    %1845 = vmatpush1.msra.mxu0 %v1833
    %1846 = vmatprep.subr.mxu0 0.0
    %1847 = vmatpush1.msra.mxu0 %v1835
    %1848 = vmatprep.subr.mxu0 0.0
    %1849 = vmatpush1.msra.mxu0 0.0
    %1850 = vmatprep.subr.mxu0 0.0
    %1851 = vmatpush1.msra.mxu0 0.0
    %1852 = vmatprep.subr.mxu0 0.0
    %1853 = vmatpush1.msra.mxu0 0.0
    %1854 = vmatprep.subr.mxu0 0.0
    %1855 = vmatpush1.msra.mxu0 0.0
    %1856 = vmatprep.subr.mxu0 0.0
    %1857 = vmatpush1.msra.mxu0 0.0
    %1858 = vmatprep.subr.mxu0 0.0
    %1859 = vmatpush1.msra.mxu0 0.0
    %1860 = vmatprep.subr.mxu0 0.0
    %1861 = vmatpush1.msra.mxu0 0.0
    %1862 = vmatprep.subr.mxu0 0.0
    %1863 = vmatpush1.msra.mxu0 0.0
    %1864 = vmatprep.subr.mxu0 0.0
    %1865 = vmatpush1.msra.mxu0 0.0
    %1866 = vmatprep.subr.mxu0 0.0
    %1867 = vmatpush1.msra.mxu0 0.0
    %1868 = vmatprep.subr.mxu0 0.0
    %1869 = vmatpush1.msra.mxu0 0.0
    %1870 = vmatprep.subr.mxu0 0.0
    %1871 = vmatpush1.msra.mxu0 0.0
    %1872 = vmatprep.subr.mxu0 0.0
    %1873 = vmatpush1.msra.mxu0 0.0
    %1874 = vmatprep.subr.mxu0 0.0
    %1875 = vmatpush1.msra.mxu0 0.0
    %1876 = vmatprep.subr.mxu0 0.0
    %1877 = vmatpush1.msra.mxu0 0.0
    %1878 = vmatprep.subr.mxu0 0.0
    %1879 = vmatpush1.msra.mxu0 0.0
    %1880 = vmatprep.subr.mxu0 0.0
    %1881 = vmatpush1.msra.mxu0 0.0
    %1882 = vmatprep.subr.mxu0 0.0
    %1883 = vmatpush1.msra.mxu0 0.0
    %1884 = vmatprep.subr.mxu0 0.0
    %1885 = vmatpush1.msra.mxu0 0.0
    %1886 = vmatprep.subr.mxu0 0.0
    %1887 = vmatpush1.msra.mxu0 0.0
    %1888 = vmatprep.subr.mxu0 0.0
    %1889 = vmatpush1.msra.mxu0 0.0
    %1890 = vmatprep.subr.mxu0 0.0
    %1891 = vmatpush1.msra.mxu0 0.0
    %1892 = vmatprep.subr.mxu0 0.0
    %1893 = vmatpush1.msra.mxu0 0.0
    %1894 = vmatprep.subr.mxu0 0.0
    %1895 = vmatpush1.msra.mxu0 0.0
    %1896 = vmatprep.subr.mxu0 0.0
    %1897 = vmatpush1.msra.mxu0 0.0
    %1898 = vmatprep.subr.mxu0 0.0
    %1899 = vmatpush1.msra.mxu0 0.0
    %1900 = vmatprep.subr.mxu0 0.0
    %1901 = vmatpush1.msra.mxu0 0.0
    %1902 = vmatprep.subr.mxu0 0.0
    %1903 = vmatpush1.msra.mxu0 0.0
    %1904 = vmatprep.subr.mxu0 0.0
    %1905 = vmatpush1.msra.mxu0 0.0
    %1906 = vmatprep.subr.mxu0 0.0
    %1907 = vmatpush1.msra.mxu0 0.0
    %1908 = vmatprep.mubr.f32.mxu0 0.0
    %1909 = vmatmul.mubr.f32.gmra.mrb[0].mxu0 %v1839
    %v1910 = vpop.f32.mrb[0].mxu0
    %v1911 = vadd.f32 0.0, %v1910
    %v1912 = vpop.f32.mrb[0].mxu0
    %1913 = vmatprep.mubr.f32.mxu0 0.0
    %1914 = vmatmul.mubr.f32.gmra.mrb[0].mxu0 %v1842
    %v1915 = vpop.f32.mrb[0].mxu0
    %v1916 = vadd.f32 0.0, %v1915
    %v1917 = vpop.f32.mrb[0].mxu0
    %1918 = vdwg.mxu0
    %v1920 = vsel %vm198, %v1911, 0
    %v1923 = vsel %vm198, %v1916, 0
    %1925 = vmatprep.subr.mxu0 0.0
    %1926 = vmatpush1.msra.mxu0 %v189
    %1927 = vmatprep.subr.mxu0 0.0
    %1928 = vmatpush1.msra.mxu0 0.0
    %1929 = vmatprep.subr.mxu0 0.0
    %1930 = vmatpush1.msra.mxu0 0.0
    %1931 = vmatprep.subr.mxu0 0.0
    %1932 = vmatpush1.msra.mxu0 0.0
    %1933 = vmatprep.subr.mxu0 0.0
    %1934 = vmatpush1.msra.mxu0 0.0
    %1935 = vmatprep.subr.mxu0 0.0
    %1936 = vmatpush1.msra.mxu0 0.0
    %1937 = vmatprep.subr.mxu0 0.0
    %1938 = vmatpush1.msra.mxu0 0.0
    %1939 = vmatprep.subr.mxu0 0.0
    %1940 = vmatpush1.msra.mxu0 0.0
    %1941 = vmatprep.subr.mxu0 0.0
    %1942 = vmatpush1.msra.mxu0 0.0
    %1943 = vmatprep.subr.mxu0 0.0
    %1944 = vmatpush1.msra.mxu0 0.0
    %1945 = vmatprep.subr.mxu0 0.0
    %1946 = vmatpush1.msra.mxu0 0.0
    %1947 = vmatprep.subr.mxu0 0.0
    %1948 = vmatpush1.msra.mxu0 0.0
    %1949 = vmatprep.subr.mxu0 0.0
    %1950 = vmatpush1.msra.mxu0 0.0
    %1951 = vmatprep.subr.mxu0 0.0
    %1952 = vmatpush1.msra.mxu0 0.0
    %1953 = vmatprep.subr.mxu0 0.0
    %1954 = vmatpush1.msra.mxu0 0.0
    %1955 = vmatprep.subr.mxu0 0.0
    %1956 = vmatpush1.msra.mxu0 0.0
    %1957 = vmatprep.subr.mxu0 0.0
    %1958 = vmatpush1.msra.mxu0 0.0
    %1959 = vmatprep.subr.mxu0 0.0
    %1960 = vmatpush1.msra.mxu0 0.0
    %1961 = vmatprep.subr.mxu0 0.0
    %1962 = vmatpush1.msra.mxu0 0.0
    %1963 = vmatprep.subr.mxu0 0.0
    %1964 = vmatpush1.msra.mxu0 0.0
    %1965 = vmatprep.subr.mxu0 0.0
    %1966 = vmatpush1.msra.mxu0 0.0
    %1967 = vmatprep.subr.mxu0 0.0
    %1968 = vmatpush1.msra.mxu0 0.0
    %1969 = vmatprep.subr.mxu0 0.0
    %1970 = vmatpush1.msra.mxu0 0.0
    %1971 = vmatprep.subr.mxu0 0.0
    %1972 = vmatpush1.msra.mxu0 0.0
    %1973 = vmatprep.subr.mxu0 0.0
    %1974 = vmatpush1.msra.mxu0 0.0
    %1975 = vmatprep.subr.mxu0 0.0
    %1976 = vmatpush1.msra.mxu0 0.0
    %1977 = vmatprep.subr.mxu0 0.0
    %1978 = vmatpush1.msra.mxu0 0.0
    %1979 = vmatprep.subr.mxu0 0.0
    %1980 = vmatpush1.msra.mxu0 0.0
    %1981 = vmatprep.subr.mxu0 0.0
    %1982 = vmatpush1.msra.mxu0 0.0
    %1983 = vmatprep.subr.mxu0 0.0
    %1984 = vmatpush1.msra.mxu0 0.0
    %1985 = vmatprep.subr.mxu0 0.0
    %1986 = vmatpush1.msra.mxu0 0.0
    %1987 = vmatprep.subr.mxu0 0.0
    %1988 = vmatpush1.msra.mxu0 0.0
    %1989 = vmatprep.mubr.f32.mxu0 0.0
    %1990 = vmatmul.mubr.f32.gmra.mrb[0].mxu0 %v1920
    %v1991 = vpop.f32.mrb[0].mxu0
    %v1992 = vadd.f32 0.0, %v1991
    %v1993 = vpop.f32.mrb[0].mxu0
    %1994 = vmatprep.mubr.f32.mxu0 0.0
    %1995 = vmatmul.mubr.f32.gmra.mrb[0].mxu0 %v1923
    %v1996 = vpop.f32.mrb[0].mxu0
    %v1997 = vadd.f32 0.0, %v1996
    %v1998 = vpop.f32.mrb[0].mxu0
    %1999 = vdwg.mxu0
    %v2001 = vsel %vm198, %v1678, 0
    %v2004 = vsel %vm198, %v1683, 0
    %2006 = vmatprep.subr.mxu0 0.0
    %2007 = vmatpush1.msra.mxu0 %v188
    %2008 = vmatprep.subr.mxu0 0.0
    %2009 = vmatpush1.msra.mxu0 0.0
    %2010 = vmatprep.subr.mxu0 0.0
    %2011 = vmatpush1.msra.mxu0 0.0
    %2012 = vmatprep.subr.mxu0 0.0
    %2013 = vmatpush1.msra.mxu0 0.0
    %2014 = vmatprep.subr.mxu0 0.0
    %2015 = vmatpush1.msra.mxu0 0.0
    %2016 = vmatprep.subr.mxu0 0.0
    %2017 = vmatpush1.msra.mxu0 0.0
    %2018 = vmatprep.subr.mxu0 0.0
    %2019 = vmatpush1.msra.mxu0 0.0
    %2020 = vmatprep.subr.mxu0 0.0
    %2021 = vmatpush1.msra.mxu0 0.0
    %2022 = vmatprep.subr.mxu0 0.0
    %2023 = vmatpush1.msra.mxu0 0.0
    %2024 = vmatprep.subr.mxu0 0.0
    %2025 = vmatpush1.msra.mxu0 0.0
    %2026 = vmatprep.subr.mxu0 0.0
    %2027 = vmatpush1.msra.mxu0 0.0
    %2028 = vmatprep.subr.mxu0 0.0
    %2029 = vmatpush1.msra.mxu0 0.0
    %2030 = vmatprep.subr.mxu0 0.0
    %2031 = vmatpush1.msra.mxu0 0.0
    %2032 = vmatprep.subr.mxu0 0.0
    %2033 = vmatpush1.msra.mxu0 0.0
    %2034 = vmatprep.subr.mxu0 0.0
    %2035 = vmatpush1.msra.mxu0 0.0
    %2036 = vmatprep.subr.mxu0 0.0
    %2037 = vmatpush1.msra.mxu0 0.0
    %2038 = vmatprep.subr.mxu0 0.0
    %2039 = vmatpush1.msra.mxu0 0.0
    %2040 = vmatprep.subr.mxu0 0.0
    %2041 = vmatpush1.msra.mxu0 0.0
    %2042 = vmatprep.subr.mxu0 0.0
    %2043 = vmatpush1.msra.mxu0 0.0
    %2044 = vmatprep.subr.mxu0 0.0
    %2045 = vmatpush1.msra.mxu0 0.0
    %2046 = vmatprep.subr.mxu0 0.0
    %2047 = vmatpush1.msra.mxu0 0.0
    %2048 = vmatprep.subr.mxu0 0.0
    %2049 = vmatpush1.msra.mxu0 0.0
    %2050 = vmatprep.subr.mxu0 0.0
    %2051 = vmatpush1.msra.mxu0 0.0
    %2052 = vmatprep.subr.mxu0 0.0
    %2053 = vmatpush1.msra.mxu0 0.0
    %2054 = vmatprep.subr.mxu0 0.0
    %2055 = vmatpush1.msra.mxu0 0.0
    %2056 = vmatprep.subr.mxu0 0.0
    %2057 = vmatpush1.msra.mxu0 0.0
    %2058 = vmatprep.subr.mxu0 0.0
    %2059 = vmatpush1.msra.mxu0 0.0
    %2060 = vmatprep.subr.mxu0 0.0
    %2061 = vmatpush1.msra.mxu0 0.0
    %2062 = vmatprep.subr.mxu0 0.0
    %2063 = vmatpush1.msra.mxu0 0.0
    %2064 = vmatprep.subr.mxu0 0.0
    %2065 = vmatpush1.msra.mxu0 0.0
    %2066 = vmatprep.subr.mxu0 0.0
    %2067 = vmatpush1.msra.mxu0 0.0
    %2068 = vmatprep.subr.mxu0 0.0
    %2069 = vmatpush1.msra.mxu0 0.0
    %2070 = vmatprep.mubr.f32.mxu0 0.0
    %2071 = vmatmul.mubr.f32.gmra.mrb[0].mxu0 %v2001
    %v2072 = vpop.f32.mrb[0].mxu0
    %v2073 = vadd.f32 %v1992, %v2072
    %v2074 = vpop.f32.mrb[0].mxu0
    %2075 = vmatprep.mubr.f32.mxu0 0.0
    %2076 = vmatmul.mubr.f32.gmra.mrb[0].mxu0 %v2004
    %v2077 = vpop.f32.mrb[0].mxu0
    %v2078 = vadd.f32 %v1997, %v2077
    %v2079 = vpop.f32.mrb[0].mxu0
    %2080 = vdwg.mxu0
    %2081 = vrot.lane.b32.xlu0 %v136, 112
    %v2082 = vpop.permute.xlu0 %2081
    %2083 = vrot.lane.b32.xlu0 %v141, 112
    %v2084 = vpop.permute.xlu0 %2083
    %2085 = vrot.lane.b32.xlu0 %v136, 80
    %v2086 = vpop.permute.xlu0 %2085
    %2087 = vrot.lane.b32.xlu0 %v141, 80
    %v2088 = vpop.permute.xlu0 %2087
    %v2089 = vsel %vm198, %v2082, 0
    %v2091 = vsel %vm198, %v2084, 0
    %v2093 = vsel %vm198, %v2086, 0
    %v2095 = vsel %vm198, %v2088, 0
    %2097 = vmatprep.subr.mxu0 0.0
    %2098 = vmatpush1.xpose.msra.mxu0 %v2093
    %2099 = vmatprep.subr.mxu0 0.0
    %2100 = vmatpush1.xpose.msra.mxu0 %v2095
    %2101 = vmatprep.subr.mxu0 0.0
    %2102 = vmatpush1.xpose.msra.mxu0 0.0
    %2103 = vmatprep.subr.mxu0 0.0
    %2104 = vmatpush1.xpose.msra.mxu0 0.0
    %2105 = vmatprep.subr.mxu0 0.0
    %2106 = vmatpush1.xpose.msra.mxu0 0.0
    %2107 = vmatprep.subr.mxu0 0.0
    %2108 = vmatpush1.xpose.msra.mxu0 0.0
    %2109 = vmatprep.subr.mxu0 0.0
    %2110 = vmatpush1.xpose.msra.mxu0 0.0
    %2111 = vmatprep.subr.mxu0 0.0
    %2112 = vmatpush1.xpose.msra.mxu0 0.0
    %2113 = vmatprep.subr.mxu0 0.0
    %2114 = vmatpush1.xpose.msra.mxu0 0.0
    %2115 = vmatprep.subr.mxu0 0.0
    %2116 = vmatpush1.xpose.msra.mxu0 0.0
    %2117 = vmatprep.subr.mxu0 0.0
    %2118 = vmatpush1.xpose.msra.mxu0 0.0
    %2119 = vmatprep.subr.mxu0 0.0
    %2120 = vmatpush1.xpose.msra.mxu0 0.0
    %2121 = vmatprep.subr.mxu0 0.0
    %2122 = vmatpush1.xpose.msra.mxu0 0.0
    %2123 = vmatprep.subr.mxu0 0.0
    %2124 = vmatpush1.xpose.msra.mxu0 0.0
    %2125 = vmatprep.subr.mxu0 0.0
    %2126 = vmatpush1.xpose.msra.mxu0 0.0
    %2127 = vmatprep.subr.mxu0 0.0
    %2128 = vmatpush1.xpose.msra.mxu0 0.0
    %2129 = vmatprep.subr.mxu0 0.0
    %2130 = vmatpush1.xpose.msra.mxu0 0.0
    %2131 = vmatprep.subr.mxu0 0.0
    %2132 = vmatpush1.xpose.msra.mxu0 0.0
    %2133 = vmatprep.subr.mxu0 0.0
    %2134 = vmatpush1.xpose.msra.mxu0 0.0
    %2135 = vmatprep.subr.mxu0 0.0
    %2136 = vmatpush1.xpose.msra.mxu0 0.0
    %2137 = vmatprep.subr.mxu0 0.0
    %2138 = vmatpush1.xpose.msra.mxu0 0.0
    %2139 = vmatprep.subr.mxu0 0.0
    %2140 = vmatpush1.xpose.msra.mxu0 0.0
    %2141 = vmatprep.subr.mxu0 0.0
    %2142 = vmatpush1.xpose.msra.mxu0 0.0
    %2143 = vmatprep.subr.mxu0 0.0
    %2144 = vmatpush1.xpose.msra.mxu0 0.0
    %2145 = vmatprep.subr.mxu0 0.0
    %2146 = vmatpush1.xpose.msra.mxu0 0.0
    %2147 = vmatprep.subr.mxu0 0.0
    %2148 = vmatpush1.xpose.msra.mxu0 0.0
    %2149 = vmatprep.subr.mxu0 0.0
    %2150 = vmatpush1.xpose.msra.mxu0 0.0
    %2151 = vmatprep.subr.mxu0 0.0
    %2152 = vmatpush1.xpose.msra.mxu0 0.0
    %2153 = vmatprep.subr.mxu0 0.0
    %2154 = vmatpush1.xpose.msra.mxu0 0.0
    %2155 = vmatprep.subr.mxu0 0.0
    %2156 = vmatpush1.xpose.msra.mxu0 0.0
    %2157 = vmatprep.subr.mxu0 0.0
    %2158 = vmatpush1.xpose.msra.mxu0 0.0
    %2159 = vmatprep.subr.mxu0 0.0
    %2160 = vmatpush1.xpose.msra.mxu0 0.0
    %2161 = vmatprep.mubr.f32.mxu0 0.0
    %2162 = vmatmul.mubr.f32.gmra.mrb[0].mxu0 %v2089
    %v2163 = vpop.f32.mrb[0].mxu0
    %v2164 = vadd.f32 0.0, %v2163
    %v2165 = vpop.f32.mrb[0].mxu0
    %2166 = vmatprep.mubr.f32.mxu0 0.0
    %2167 = vmatmul.mubr.f32.gmra.mrb[0].mxu0 %v2091
    %v2168 = vpop.f32.mrb[0].mxu0
    %v2169 = vadd.f32 0.0, %v2168
    %v2170 = vpop.f32.mrb[0].mxu0
    %2171 = vdwg.mxu0
    %v2172 = vsel %vm282, %v2164, -inf
    %2173 = vmax.xlane.f32.xlu0 %v2172
    %v2174 = vpop.xlane.xlu0 %2173
    %v2175 = vsel %vm282, %v2169, -inf
    %2176 = vmax.xlane.f32.xlu0 %v2175
    %v2177 = vpop.xlane.xlu0 %2176
    %v2178 = vsub.f32 %v2164, %v2174
    %v2179 = vsub.f32 %v2169, %v2177
    %v2180 = vmul.f32 %v2178, 1.442695
    %v2181 = vpow.pop %v2180
    %v2182 = vmul.f32 %v2179, 1.442695
    %v2183 = vpow.pop %v2182
    %v2184 = vsel %vm282, %v2181, 0.0
    %2185 = vadd.xlane.f32.xlu0 %v2184
    %v2186 = vpop.xlane.xlu0 %2185
    %v2187 = vsel %vm282, %v2183, 0.0
    %2188 = vadd.xlane.f32.xlu0 %v2187
    %v2189 = vpop.xlane.xlu0 %2188
    %v2190 = vrcp.pop %v2186
    %v2191 = vmul.f32 %v2181, %v2190
    %v2192 = vrcp.pop %v2189
    %v2193 = vmul.f32 %v2183, %v2192
    %2194 = vset.pattern.permute.xlu0 98
    %2195 = vperm.xlu0 %2194, %v186
    %v2196 = vpop.permute.xlu0 %2195
    %2198 = vset.pattern.permute.xlu0 98
    %2199 = vperm.xlu0 %2198, %v187
    %v2200 = vpop.permute.xlu0 %2199
    %v2202 = vrcp.pop %v2196
    %v2203 = vmul.f32 1.0, %v2202
    %v2204 = vrcp.pop %v2200
    %v2205 = vmul.f32 1.0, %v2204
    %v2206 = vmul.f32 %v2203, 0.3989423
    %v2207 = vmul.f32 %v2205, 0.3989423
    %v2208 = vmul.f32 %v35, %v2203
    %v2209 = vmul.f32 %v36, %v2205
    %v2210 = vmul.f32 %v2208, %v2203
    %v2211 = vmul.f32 %v2209, %v2205
    %v2212 = vmul.f32 %v2210, 1.442695
    %v2213 = vpow.pop %v2212
    %v2214 = vmul.f32 %v2211, 1.442695
    %v2215 = vpow.pop %v2214
    %v2216 = vmul.f32 %v2206, %v2213
    %v2217 = vmul.f32 %v2207, %v2215
    %s2218 = scalar_lea.vmem [#allocation4], 224
    %2219 = vst.msk [vmem:[%s2218] sm:$0xff] %vm282, %v2191
    %2220 = vst.msk [vmem:[%s2218 + $0x8] sm:$0xff] %vm282, %v2193
    %s2221 = scalar_lea.vmem [#allocation4], 288
    %2222 = vst.msk [vmem:[%s2221] sm:$0xff] %vm282, %v2216
    %2223 = vst.msk [vmem:[%s2221 + $0x8] sm:$0xff] %vm282, %v2217
    %s2224 = scalar_lea.vmem [#allocation4], 352
    %2225 = vst.msk [vmem:[%s2224] sm:$0xff] %vm282, %v2196
    %2226 = vst.msk [vmem:[%s2224 + $0x8] sm:$0xff] %vm282, %v2200
    %2227 = vrot.lane.b32.xlu0 %v136, 48
    %v2228 = vpop.permute.xlu0 %2227
    %2229 = vrot.lane.b32.xlu0 %v141, 48
    %v2230 = vpop.permute.xlu0 %2229
    %v2234 = vsel %vm282, %v2191, 0
    %v2237 = vsel %vm282, %v2193, 0
    %2239 = vmatprep.subr.mxu0 0.0
    %2240 = vmatpush1.msra.mxu0 %v2228
    %2241 = vmatprep.subr.mxu0 0.0
    %2242 = vmatpush1.msra.mxu0 %v2230
    %2243 = vmatprep.subr.mxu0 0.0
    %2244 = vmatpush1.msra.mxu0 0.0
    %2245 = vmatprep.subr.mxu0 0.0
    %2246 = vmatpush1.msra.mxu0 0.0
    %2247 = vmatprep.subr.mxu0 0.0
    %2248 = vmatpush1.msra.mxu0 0.0
    %2249 = vmatprep.subr.mxu0 0.0
    %2250 = vmatpush1.msra.mxu0 0.0
    %2251 = vmatprep.subr.mxu0 0.0
    %2252 = vmatpush1.msra.mxu0 0.0
    %2253 = vmatprep.subr.mxu0 0.0
    %2254 = vmatpush1.msra.mxu0 0.0
    %2255 = vmatprep.subr.mxu0 0.0
    %2256 = vmatpush1.msra.mxu0 0.0
    %2257 = vmatprep.subr.mxu0 0.0
    %2258 = vmatpush1.msra.mxu0 0.0
    %2259 = vmatprep.subr.mxu0 0.0
    %2260 = vmatpush1.msra.mxu0 0.0
    %2261 = vmatprep.subr.mxu0 0.0
    %2262 = vmatpush1.msra.mxu0 0.0
    %2263 = vmatprep.subr.mxu0 0.0
    %2264 = vmatpush1.msra.mxu0 0.0
    %2265 = vmatprep.subr.mxu0 0.0
    %2266 = vmatpush1.msra.mxu0 0.0
    %2267 = vmatprep.subr.mxu0 0.0
    %2268 = vmatpush1.msra.mxu0 0.0
    %2269 = vmatprep.subr.mxu0 0.0
    %2270 = vmatpush1.msra.mxu0 0.0
    %2271 = vmatprep.subr.mxu0 0.0
    %2272 = vmatpush1.msra.mxu0 0.0
    %2273 = vmatprep.subr.mxu0 0.0
    %2274 = vmatpush1.msra.mxu0 0.0
    %2275 = vmatprep.subr.mxu0 0.0
    %2276 = vmatpush1.msra.mxu0 0.0
    %2277 = vmatprep.subr.mxu0 0.0
    %2278 = vmatpush1.msra.mxu0 0.0
    %2279 = vmatprep.subr.mxu0 0.0
    %2280 = vmatpush1.msra.mxu0 0.0
    %2281 = vmatprep.subr.mxu0 0.0
    %2282 = vmatpush1.msra.mxu0 0.0
    %2283 = vmatprep.subr.mxu0 0.0
    %2284 = vmatpush1.msra.mxu0 0.0
    %2285 = vmatprep.subr.mxu0 0.0
    %2286 = vmatpush1.msra.mxu0 0.0
    %2287 = vmatprep.subr.mxu0 0.0
    %2288 = vmatpush1.msra.mxu0 0.0
    %2289 = vmatprep.subr.mxu0 0.0
    %2290 = vmatpush1.msra.mxu0 0.0
    %2291 = vmatprep.subr.mxu0 0.0
    %2292 = vmatpush1.msra.mxu0 0.0
    %2293 = vmatprep.subr.mxu0 0.0
    %2294 = vmatpush1.msra.mxu0 0.0
    %2295 = vmatprep.subr.mxu0 0.0
    %2296 = vmatpush1.msra.mxu0 0.0
    %2297 = vmatprep.subr.mxu0 0.0
    %2298 = vmatpush1.msra.mxu0 0.0
    %2299 = vmatprep.subr.mxu0 0.0
    %2300 = vmatpush1.msra.mxu0 0.0
    %2301 = vmatprep.subr.mxu0 0.0
    %2302 = vmatpush1.msra.mxu0 0.0
    %2303 = vmatprep.mubr.f32.mxu0 0.0
    %2304 = vmatmul.mubr.f32.gmra.mrb[0].mxu0 %v2234
    %v2305 = vpop.f32.mrb[0].mxu0
    %v2306 = vadd.f32 0.0, %v2305
    %v2307 = vpop.f32.mrb[0].mxu0
    %2308 = vmatprep.mubr.f32.mxu0 0.0
    %2309 = vmatmul.mubr.f32.gmra.mrb[0].mxu0 %v2237
    %v2310 = vpop.f32.mrb[0].mxu0
    %v2311 = vadd.f32 0.0, %v2310
    %v2312 = vpop.f32.mrb[0].mxu0
    %2313 = vdwg.mxu0
    %v2315 = vsel %vm198, %v2306, 0
    %v2318 = vsel %vm198, %v2311, 0
    %2320 = vmatprep.subr.mxu0 0.0
    %2321 = vmatpush1.msra.mxu0 %v190
    %2322 = vmatprep.subr.mxu0 0.0
    %2323 = vmatpush1.msra.mxu0 0.0
    %2324 = vmatprep.subr.mxu0 0.0
    %2325 = vmatpush1.msra.mxu0 0.0
    %2326 = vmatprep.subr.mxu0 0.0
    %2327 = vmatpush1.msra.mxu0 0.0
    %2328 = vmatprep.subr.mxu0 0.0
    %2329 = vmatpush1.msra.mxu0 0.0
    %2330 = vmatprep.subr.mxu0 0.0
    %2331 = vmatpush1.msra.mxu0 0.0
    %2332 = vmatprep.subr.mxu0 0.0
    %2333 = vmatpush1.msra.mxu0 0.0
    %2334 = vmatprep.subr.mxu0 0.0
    %2335 = vmatpush1.msra.mxu0 0.0
    %2336 = vmatprep.subr.mxu0 0.0
    %2337 = vmatpush1.msra.mxu0 0.0
    %2338 = vmatprep.subr.mxu0 0.0
    %2339 = vmatpush1.msra.mxu0 0.0
    %2340 = vmatprep.subr.mxu0 0.0
    %2341 = vmatpush1.msra.mxu0 0.0
    %2342 = vmatprep.subr.mxu0 0.0
    %2343 = vmatpush1.msra.mxu0 0.0
    %2344 = vmatprep.subr.mxu0 0.0
    %2345 = vmatpush1.msra.mxu0 0.0
    %2346 = vmatprep.subr.mxu0 0.0
    %2347 = vmatpush1.msra.mxu0 0.0
    %2348 = vmatprep.subr.mxu0 0.0
    %2349 = vmatpush1.msra.mxu0 0.0
    %2350 = vmatprep.subr.mxu0 0.0
    %2351 = vmatpush1.msra.mxu0 0.0
    %2352 = vmatprep.subr.mxu0 0.0
    %2353 = vmatpush1.msra.mxu0 0.0
    %2354 = vmatprep.subr.mxu0 0.0
    %2355 = vmatpush1.msra.mxu0 0.0
    %2356 = vmatprep.subr.mxu0 0.0
    %2357 = vmatpush1.msra.mxu0 0.0
    %2358 = vmatprep.subr.mxu0 0.0
    %2359 = vmatpush1.msra.mxu0 0.0
    %2360 = vmatprep.subr.mxu0 0.0
    %2361 = vmatpush1.msra.mxu0 0.0
    %2362 = vmatprep.subr.mxu0 0.0
    %2363 = vmatpush1.msra.mxu0 0.0
    %2364 = vmatprep.subr.mxu0 0.0
    %2365 = vmatpush1.msra.mxu0 0.0
    %2366 = vmatprep.subr.mxu0 0.0
    %2367 = vmatpush1.msra.mxu0 0.0
    %2368 = vmatprep.subr.mxu0 0.0
    %2369 = vmatpush1.msra.mxu0 0.0
    %2370 = vmatprep.subr.mxu0 0.0
    %2371 = vmatpush1.msra.mxu0 0.0
    %2372 = vmatprep.subr.mxu0 0.0
    %2373 = vmatpush1.msra.mxu0 0.0
    %2374 = vmatprep.subr.mxu0 0.0
    %2375 = vmatpush1.msra.mxu0 0.0
    %2376 = vmatprep.subr.mxu0 0.0
    %2377 = vmatpush1.msra.mxu0 0.0
    %2378 = vmatprep.subr.mxu0 0.0
    %2379 = vmatpush1.msra.mxu0 0.0
    %2380 = vmatprep.subr.mxu0 0.0
    %2381 = vmatpush1.msra.mxu0 0.0
    %2382 = vmatprep.subr.mxu0 0.0
    %2383 = vmatpush1.msra.mxu0 0.0
    %2384 = vmatprep.mubr.f32.mxu0 0.0
    %2385 = vmatmul.mubr.f32.gmra.mrb[0].mxu0 %v2315
    %v2386 = vpop.f32.mrb[0].mxu0
    %v2387 = vadd.f32 0.0, %v2386
    %v2388 = vpop.f32.mrb[0].mxu0
    %2389 = vmatprep.mubr.f32.mxu0 0.0
    %2390 = vmatmul.mubr.f32.gmra.mrb[0].mxu0 %v2318
    %v2391 = vpop.f32.mrb[0].mxu0
    %v2392 = vadd.f32 0.0, %v2391
    %v2393 = vpop.f32.mrb[0].mxu0
    %2394 = vdwg.mxu0
    %v2395 = vadd.f32 %v2073, %v2387
    %v2396 = vadd.f32 %v2078, %v2392
    %2397 = vrot.lane.b32.xlu0 %v136, 104
    %v2398 = vpop.permute.xlu0 %2397
    %2399 = vrot.lane.b32.xlu0 %v141, 104
    %v2400 = vpop.permute.xlu0 %2399
    %2401 = vrot.lane.b32.xlu0 %v136, 72
    %v2402 = vpop.permute.xlu0 %2401
    %2403 = vrot.lane.b32.xlu0 %v141, 72
    %v2404 = vpop.permute.xlu0 %2403
    %v2405 = vsel %vm198, %v2398, 0
    %v2407 = vsel %vm198, %v2400, 0
    %v2409 = vsel %vm198, %v2402, 0
    %v2411 = vsel %vm198, %v2404, 0
    %2413 = vmatprep.subr.mxu0 0.0
    %2414 = vmatpush1.xpose.msra.mxu0 %v2409
    %2415 = vmatprep.subr.mxu0 0.0
    %2416 = vmatpush1.xpose.msra.mxu0 %v2411
    %2417 = vmatprep.subr.mxu0 0.0
    %2418 = vmatpush1.xpose.msra.mxu0 0.0
    %2419 = vmatprep.subr.mxu0 0.0
    %2420 = vmatpush1.xpose.msra.mxu0 0.0
    %2421 = vmatprep.subr.mxu0 0.0
    %2422 = vmatpush1.xpose.msra.mxu0 0.0
    %2423 = vmatprep.subr.mxu0 0.0
    %2424 = vmatpush1.xpose.msra.mxu0 0.0
    %2425 = vmatprep.subr.mxu0 0.0
    %2426 = vmatpush1.xpose.msra.mxu0 0.0
    %2427 = vmatprep.subr.mxu0 0.0
    %2428 = vmatpush1.xpose.msra.mxu0 0.0
    %2429 = vmatprep.subr.mxu0 0.0
    %2430 = vmatpush1.xpose.msra.mxu0 0.0
    %2431 = vmatprep.subr.mxu0 0.0
    %2432 = vmatpush1.xpose.msra.mxu0 0.0
    %2433 = vmatprep.subr.mxu0 0.0
    %2434 = vmatpush1.xpose.msra.mxu0 0.0
    %2435 = vmatprep.subr.mxu0 0.0
    %2436 = vmatpush1.xpose.msra.mxu0 0.0
    %2437 = vmatprep.subr.mxu0 0.0
    %2438 = vmatpush1.xpose.msra.mxu0 0.0
    %2439 = vmatprep.subr.mxu0 0.0
    %2440 = vmatpush1.xpose.msra.mxu0 0.0
    %2441 = vmatprep.subr.mxu0 0.0
    %2442 = vmatpush1.xpose.msra.mxu0 0.0
    %2443 = vmatprep.subr.mxu0 0.0
    %2444 = vmatpush1.xpose.msra.mxu0 0.0
    %2445 = vmatprep.subr.mxu0 0.0
    %2446 = vmatpush1.xpose.msra.mxu0 0.0
    %2447 = vmatprep.subr.mxu0 0.0
    %2448 = vmatpush1.xpose.msra.mxu0 0.0
    %2449 = vmatprep.subr.mxu0 0.0
    %2450 = vmatpush1.xpose.msra.mxu0 0.0
    %2451 = vmatprep.subr.mxu0 0.0
    %2452 = vmatpush1.xpose.msra.mxu0 0.0
    %2453 = vmatprep.subr.mxu0 0.0
    %2454 = vmatpush1.xpose.msra.mxu0 0.0
    %2455 = vmatprep.subr.mxu0 0.0
    %2456 = vmatpush1.xpose.msra.mxu0 0.0
    %2457 = vmatprep.subr.mxu0 0.0
    %2458 = vmatpush1.xpose.msra.mxu0 0.0
    %2459 = vmatprep.subr.mxu0 0.0
    %2460 = vmatpush1.xpose.msra.mxu0 0.0
    %2461 = vmatprep.subr.mxu0 0.0
    %2462 = vmatpush1.xpose.msra.mxu0 0.0
    %2463 = vmatprep.subr.mxu0 0.0
    %2464 = vmatpush1.xpose.msra.mxu0 0.0
    %2465 = vmatprep.subr.mxu0 0.0
    %2466 = vmatpush1.xpose.msra.mxu0 0.0
    %2467 = vmatprep.subr.mxu0 0.0
    %2468 = vmatpush1.xpose.msra.mxu0 0.0
    %2469 = vmatprep.subr.mxu0 0.0
    %2470 = vmatpush1.xpose.msra.mxu0 0.0
    %2471 = vmatprep.subr.mxu0 0.0
    %2472 = vmatpush1.xpose.msra.mxu0 0.0
    %2473 = vmatprep.subr.mxu0 0.0
    %2474 = vmatpush1.xpose.msra.mxu0 0.0
    %2475 = vmatprep.subr.mxu0 0.0
    %2476 = vmatpush1.xpose.msra.mxu0 0.0
    %2477 = vmatprep.mubr.f32.mxu0 0.0
    %2478 = vmatmul.mubr.f32.gmra.mrb[0].mxu0 %v2405
    %v2479 = vpop.f32.mrb[0].mxu0
    %v2480 = vadd.f32 0.0, %v2479
    %v2481 = vpop.f32.mrb[0].mxu0
    %2482 = vmatprep.mubr.f32.mxu0 0.0
    %2483 = vmatmul.mubr.f32.gmra.mrb[0].mxu0 %v2407
    %v2484 = vpop.f32.mrb[0].mxu0
    %v2485 = vadd.f32 0.0, %v2484
    %v2486 = vpop.f32.mrb[0].mxu0
    %2487 = vdwg.mxu0
    %v2488 = vsel %vm282, %v2480, -inf
    %2489 = vmax.xlane.f32.xlu0 %v2488
    %v2490 = vpop.xlane.xlu0 %2489
    %v2491 = vsel %vm282, %v2485, -inf
    %2492 = vmax.xlane.f32.xlu0 %v2491
    %v2493 = vpop.xlane.xlu0 %2492
    %v2494 = vsub.f32 %v2480, %v2490
    %v2495 = vsub.f32 %v2485, %v2493
    %v2496 = vmul.f32 %v2494, 1.442695
    %v2497 = vpow.pop %v2496
    %v2498 = vmul.f32 %v2495, 1.442695
    %v2499 = vpow.pop %v2498
    %v2500 = vsel %vm282, %v2497, 0.0
    %2501 = vadd.xlane.f32.xlu0 %v2500
    %v2502 = vpop.xlane.xlu0 %2501
    %v2503 = vsel %vm282, %v2499, 0.0
    %2504 = vadd.xlane.f32.xlu0 %v2503
    %v2505 = vpop.xlane.xlu0 %2504
    %v2506 = vrcp.pop %v2502
    %v2507 = vmul.f32 %v2497, %v2506
    %v2508 = vrcp.pop %v2505
    %v2509 = vmul.f32 %v2499, %v2508
    %2510 = vset.pattern.permute.xlu0 99
    %2511 = vperm.xlu0 %2510, %v186
    %v2512 = vpop.permute.xlu0 %2511
    %2514 = vset.pattern.permute.xlu0 99
    %2515 = vperm.xlu0 %2514, %v187
    %v2516 = vpop.permute.xlu0 %2515
    %v2518 = vrcp.pop %v2512
    %v2519 = vmul.f32 1.0, %v2518
    %v2520 = vrcp.pop %v2516
    %v2521 = vmul.f32 1.0, %v2520
    %v2522 = vmul.f32 %v2519, 0.3989423
    %v2523 = vmul.f32 %v2521, 0.3989423
    %v2524 = vmul.f32 %v35, %v2519
    %v2525 = vmul.f32 %v36, %v2521
    %v2526 = vmul.f32 %v2524, %v2519
    %v2527 = vmul.f32 %v2525, %v2521
    %v2528 = vmul.f32 %v2526, 1.442695
    %v2529 = vpow.pop %v2528
    %v2530 = vmul.f32 %v2527, 1.442695
    %v2531 = vpow.pop %v2530
    %v2532 = vmul.f32 %v2522, %v2529
    %v2533 = vmul.f32 %v2523, %v2531
    %s2534 = scalar_lea.vmem [#allocation4], 240
    %2535 = vst.msk [vmem:[%s2534] sm:$0xff] %vm282, %v2507
    %2536 = vst.msk [vmem:[%s2534 + $0x8] sm:$0xff] %vm282, %v2509
    %s2537 = scalar_lea.vmem [#allocation4], 304
    %2538 = vst.msk [vmem:[%s2537] sm:$0xff] %vm282, %v2532
    %2539 = vst.msk [vmem:[%s2537 + $0x8] sm:$0xff] %vm282, %v2533
    %s2540 = scalar_lea.vmem [#allocation4], 368
    %2541 = vst.msk [vmem:[%s2540] sm:$0xff] %vm282, %v2512
    %2542 = vst.msk [vmem:[%s2540 + $0x8] sm:$0xff] %vm282, %v2516
    %2543 = vrot.lane.b32.xlu0 %v136, 40
    %v2544 = vpop.permute.xlu0 %2543
    %2545 = vrot.lane.b32.xlu0 %v141, 40
    %v2546 = vpop.permute.xlu0 %2545
    %v2550 = vsel %vm282, %v2507, 0
    %v2553 = vsel %vm282, %v2509, 0
    %2555 = vmatprep.subr.mxu0 0.0
    %2556 = vmatpush1.msra.mxu0 %v2544
    %2557 = vmatprep.subr.mxu0 0.0
    %2558 = vmatpush1.msra.mxu0 %v2546
    %2559 = vmatprep.subr.mxu0 0.0
    %2560 = vmatpush1.msra.mxu0 0.0
    %2561 = vmatprep.subr.mxu0 0.0
    %2562 = vmatpush1.msra.mxu0 0.0
    %2563 = vmatprep.subr.mxu0 0.0
    %2564 = vmatpush1.msra.mxu0 0.0
    %2565 = vmatprep.subr.mxu0 0.0
    %2566 = vmatpush1.msra.mxu0 0.0
    %2567 = vmatprep.subr.mxu0 0.0
    %2568 = vmatpush1.msra.mxu0 0.0
    %2569 = vmatprep.subr.mxu0 0.0
    %2570 = vmatpush1.msra.mxu0 0.0
    %2571 = vmatprep.subr.mxu0 0.0
    %2572 = vmatpush1.msra.mxu0 0.0
    %2573 = vmatprep.subr.mxu0 0.0
    %2574 = vmatpush1.msra.mxu0 0.0
    %2575 = vmatprep.subr.mxu0 0.0
    %2576 = vmatpush1.msra.mxu0 0.0
    %2577 = vmatprep.subr.mxu0 0.0
    %2578 = vmatpush1.msra.mxu0 0.0
    %2579 = vmatprep.subr.mxu0 0.0
    %2580 = vmatpush1.msra.mxu0 0.0
    %2581 = vmatprep.subr.mxu0 0.0
    %2582 = vmatpush1.msra.mxu0 0.0
    %2583 = vmatprep.subr.mxu0 0.0
    %2584 = vmatpush1.msra.mxu0 0.0
    %2585 = vmatprep.subr.mxu0 0.0
    %2586 = vmatpush1.msra.mxu0 0.0
    %2587 = vmatprep.subr.mxu0 0.0
    %2588 = vmatpush1.msra.mxu0 0.0
    %2589 = vmatprep.subr.mxu0 0.0
    %2590 = vmatpush1.msra.mxu0 0.0
    %2591 = vmatprep.subr.mxu0 0.0
    %2592 = vmatpush1.msra.mxu0 0.0
    %2593 = vmatprep.subr.mxu0 0.0
    %2594 = vmatpush1.msra.mxu0 0.0
    %2595 = vmatprep.subr.mxu0 0.0
    %2596 = vmatpush1.msra.mxu0 0.0
    %2597 = vmatprep.subr.mxu0 0.0
    %2598 = vmatpush1.msra.mxu0 0.0
    %2599 = vmatprep.subr.mxu0 0.0
    %2600 = vmatpush1.msra.mxu0 0.0
    %2601 = vmatprep.subr.mxu0 0.0
    %2602 = vmatpush1.msra.mxu0 0.0
    %2603 = vmatprep.subr.mxu0 0.0
    %2604 = vmatpush1.msra.mxu0 0.0
    %2605 = vmatprep.subr.mxu0 0.0
    %2606 = vmatpush1.msra.mxu0 0.0
    %2607 = vmatprep.subr.mxu0 0.0
    %2608 = vmatpush1.msra.mxu0 0.0
    %2609 = vmatprep.subr.mxu0 0.0
    %2610 = vmatpush1.msra.mxu0 0.0
    %2611 = vmatprep.subr.mxu0 0.0
    %2612 = vmatpush1.msra.mxu0 0.0
    %2613 = vmatprep.subr.mxu0 0.0
    %2614 = vmatpush1.msra.mxu0 0.0
    %2615 = vmatprep.subr.mxu0 0.0
    %2616 = vmatpush1.msra.mxu0 0.0
    %2617 = vmatprep.subr.mxu0 0.0
    %2618 = vmatpush1.msra.mxu0 0.0
    %2619 = vmatprep.mubr.f32.mxu0 0.0
    %2620 = vmatmul.mubr.f32.gmra.mrb[0].mxu0 %v2550
    %v2621 = vpop.f32.mrb[0].mxu0
    %v2622 = vadd.f32 0.0, %v2621
    %v2623 = vpop.f32.mrb[0].mxu0
    %2624 = vmatprep.mubr.f32.mxu0 0.0
    %2625 = vmatmul.mubr.f32.gmra.mrb[0].mxu0 %v2553
    %v2626 = vpop.f32.mrb[0].mxu0
    %v2627 = vadd.f32 0.0, %v2626
    %v2628 = vpop.f32.mrb[0].mxu0
    %2629 = vdwg.mxu0
    %v2631 = vsel %vm198, %v2622, 0
    %v2634 = vsel %vm198, %v2627, 0
    %2636 = vmatprep.subr.mxu0 0.0
    %2637 = vmatpush1.msra.mxu0 %v191
    %2638 = vmatprep.subr.mxu0 0.0
    %2639 = vmatpush1.msra.mxu0 0.0
    %2640 = vmatprep.subr.mxu0 0.0
    %2641 = vmatpush1.msra.mxu0 0.0
    %2642 = vmatprep.subr.mxu0 0.0
    %2643 = vmatpush1.msra.mxu0 0.0
    %2644 = vmatprep.subr.mxu0 0.0
    %2645 = vmatpush1.msra.mxu0 0.0
    %2646 = vmatprep.subr.mxu0 0.0
    %2647 = vmatpush1.msra.mxu0 0.0
    %2648 = vmatprep.subr.mxu0 0.0
    %2649 = vmatpush1.msra.mxu0 0.0
    %2650 = vmatprep.subr.mxu0 0.0
    %2651 = vmatpush1.msra.mxu0 0.0
    %2652 = vmatprep.subr.mxu0 0.0
    %2653 = vmatpush1.msra.mxu0 0.0
    %2654 = vmatprep.subr.mxu0 0.0
    %2655 = vmatpush1.msra.mxu0 0.0
    %2656 = vmatprep.subr.mxu0 0.0
    %2657 = vmatpush1.msra.mxu0 0.0
    %2658 = vmatprep.subr.mxu0 0.0
    %2659 = vmatpush1.msra.mxu0 0.0
    %2660 = vmatprep.subr.mxu0 0.0
    %2661 = vmatpush1.msra.mxu0 0.0
    %2662 = vmatprep.subr.mxu0 0.0
    %2663 = vmatpush1.msra.mxu0 0.0
    %2664 = vmatprep.subr.mxu0 0.0
    %2665 = vmatpush1.msra.mxu0 0.0
    %2666 = vmatprep.subr.mxu0 0.0
    %2667 = vmatpush1.msra.mxu0 0.0
    %2668 = vmatprep.subr.mxu0 0.0
    %2669 = vmatpush1.msra.mxu0 0.0
    %2670 = vmatprep.subr.mxu0 0.0
    %2671 = vmatpush1.msra.mxu0 0.0
    %2672 = vmatprep.subr.mxu0 0.0
    %2673 = vmatpush1.msra.mxu0 0.0
    %2674 = vmatprep.subr.mxu0 0.0
    %2675 = vmatpush1.msra.mxu0 0.0
    %2676 = vmatprep.subr.mxu0 0.0
    %2677 = vmatpush1.msra.mxu0 0.0
    %2678 = vmatprep.subr.mxu0 0.0
    %2679 = vmatpush1.msra.mxu0 0.0
    %2680 = vmatprep.subr.mxu0 0.0
    %2681 = vmatpush1.msra.mxu0 0.0
    %2682 = vmatprep.subr.mxu0 0.0
    %2683 = vmatpush1.msra.mxu0 0.0
    %2684 = vmatprep.subr.mxu0 0.0
    %2685 = vmatpush1.msra.mxu0 0.0
    %2686 = vmatprep.subr.mxu0 0.0
    %2687 = vmatpush1.msra.mxu0 0.0
    %2688 = vmatprep.subr.mxu0 0.0
    %2689 = vmatpush1.msra.mxu0 0.0
    %2690 = vmatprep.subr.mxu0 0.0
    %2691 = vmatpush1.msra.mxu0 0.0
    %2692 = vmatprep.subr.mxu0 0.0
    %2693 = vmatpush1.msra.mxu0 0.0
    %2694 = vmatprep.subr.mxu0 0.0
    %2695 = vmatpush1.msra.mxu0 0.0
    %2696 = vmatprep.subr.mxu0 0.0
    %2697 = vmatpush1.msra.mxu0 0.0
    %2698 = vmatprep.subr.mxu0 0.0
    %2699 = vmatpush1.msra.mxu0 0.0
    %2700 = vmatprep.mubr.f32.mxu0 0.0
    %2701 = vmatmul.mubr.f32.gmra.mrb[0].mxu0 %v2631
    %v2702 = vpop.f32.mrb[0].mxu0
    %v2703 = vadd.f32 0.0, %v2702
    %v2704 = vpop.f32.mrb[0].mxu0
    %2705 = vmatprep.mubr.f32.mxu0 0.0
    %2706 = vmatmul.mubr.f32.gmra.mrb[0].mxu0 %v2634
    %v2707 = vpop.f32.mrb[0].mxu0
    %v2708 = vadd.f32 0.0, %v2707
    %v2709 = vpop.f32.mrb[0].mxu0
    %2710 = vdwg.mxu0
    %v2711 = vadd.f32 %v2395, %v2703
    %v2712 = vadd.f32 %v2396, %v2708
    %v2713 = vadd.f32 %v30, %v1451
    %v2714 = vadd.f32 %v31, %v1452
    %v2715 = vadd.f32 %v33, %v2711
    %v2716 = vadd.f32 %v34, %v2712
    %v2717 = vlaneseq
    %v2718 = vshrl.u32 %v2717, 7
    %v2719 = vsub.s32 0, %v2718
    %v2720 = vrot.slane %v37, %v2719
    %v2721 = vadd.f32 %v2713, %v2720
    %v2722 = vadd.f32 %v2714, %v2720
    %v2723 = vadd.f32 %v2715, %v2720
    %v2724 = vadd.f32 %v2716, %v2720
    %v2725 = vsel %vm46, %v2721, 0.0
    %2726 = vadd.xlane.f32.xlu0 %v2725
    %v2727 = vpop.xlane.xlu0 %2726
    %v2728 = vsel %vm46, %v2722, 0.0
    %2729 = vadd.xlane.f32.xlu0 %v2728
    %v2730 = vpop.xlane.xlu0 %2729
    %v2731 = vsel %vm46, %v2723, 0.0
    %2732 = vadd.xlane.f32.xlu0 %v2731
    %v2733 = vpop.xlane.xlu0 %2732
    %v2734 = vsel %vm46, %v2724, 0.0
    %2735 = vadd.xlane.f32.xlu0 %v2734
    %v2736 = vpop.xlane.xlu0 %2735
    %v2737 = vrcp.pop 32.0
    %v2738 = vmul.f32 %v2727, %v2737
    %v2739 = vmul.f32 %v2730, %v2737
    %v2740 = vmul.f32 %v2733, %v2737
    %v2741 = vmul.f32 %v2736, %v2737
    %v2742 = vsub.f32 %v2721, %v2738
    %v2743 = vsub.f32 %v2722, %v2739
    %v2744 = vsub.f32 %v2723, %v2740
    %v2745 = vsub.f32 %v2724, %v2741
    %v2746 = vmul.f32 %v2742, %v2742
    %v2747 = vmul.f32 %v2743, %v2743
    %v2748 = vmul.f32 %v2744, %v2744
    %v2749 = vmul.f32 %v2745, %v2745
    %v2750 = vsel %vm46, %v2746, 0.0
    %2751 = vadd.xlane.f32.xlu0 %v2750
    %v2752 = vpop.xlane.xlu0 %2751
    %v2753 = vsel %vm46, %v2747, 0.0
    %2754 = vadd.xlane.f32.xlu0 %v2753
    %v2755 = vpop.xlane.xlu0 %2754
    %v2756 = vsel %vm46, %v2748, 0.0
    %2757 = vadd.xlane.f32.xlu0 %v2756
    %v2758 = vpop.xlane.xlu0 %2757
    %v2759 = vsel %vm46, %v2749, 0.0
    %2760 = vadd.xlane.f32.xlu0 %v2759
    %v2761 = vpop.xlane.xlu0 %2760
    %v2762 = vmul.f32 %v2752, %v2737
    %v2763 = vmul.f32 %v2755, %v2737
    %v2764 = vmul.f32 %v2758, %v2737
    %v2765 = vmul.f32 %v2761, %v2737
    %v2766 = vadd.f32 %v2762, 1e-05
    %v2767 = vadd.f32 %v2763, 1e-05
    %v2768 = vadd.f32 %v2764, 1e-05
    %v2769 = vadd.f32 %v2765, 1e-05
    %v2770 = vrsqrt.pop %v2766
    %v2771 = vrsqrt.pop %v2767
    %v2772 = vrsqrt.pop %v2768
    %v2773 = vrsqrt.pop %v2769
    %v2774 = vmul.f32 %v2742, %v2770
    %v2775 = vmul.f32 %v2743, %v2771
    %v2776 = vmul.f32 %v2744, %v2772
    %v2777 = vmul.f32 %v2745, %v2773
    %v2778 = vlaneseq
    %v2779 = vshrl.u32 %v2778, 7
    %v2780 = vsub.s32 1, %v2779
    %v2781 = vrot.slane %v37, %v2780
    %v2782 = vmul.f32 %v2774, %v2781
    %v2783 = vmul.f32 %v2775, %v2781
    %v2784 = vmul.f32 %v2776, %v2781
    %v2785 = vmul.f32 %v2777, %v2781
    %v2786 = vlaneseq
    %v2787 = vshrl.u32 %v2786, 7
    %v2788 = vsub.s32 2, %v2787
    %v2789 = vrot.slane %v37, %v2788
    %v2790 = vadd.f32 %v2782, %v2789
    %v2791 = vadd.f32 %v2783, %v2789
    %v2792 = vadd.f32 %v2784, %v2789
    %v2793 = vadd.f32 %v2785, %v2789
    %v2794 = vld [vmem:[%s4] sm:$0xff]
    %v2795 = vld [vmem:[%s4 + $0x8] sm:$0xff]
    %v2796 = vld [vmem:[%s4 + $0x10] sm:$0xff]
    %v2797 = vld [vmem:[%s4 + $0x18] sm:$0xff]
    %v2798 = vlaneseq
    %v2799 = vshrl.u32 %v2798, 7
    %v2800 = vsub.s32 6, %v2799
    %v2801 = vrot.slane %v37, %v2800
    %v2803 = vsel %vm46, %v2790, 0
    %v2806 = vsel %vm46, %v2791, 0
    %v2809 = vsel %vm46, %v2792, 0
    %v2812 = vsel %vm46, %v2793, 0
    %2814 = vmatprep.subr.mxu0 0.0
    %2815 = vmatpush1.msra.mxu0 %v2794
    %2816 = vmatprep.subr.mxu0 0.0
    %2817 = vmatpush1.msra.mxu0 %v2795
    %2818 = vmatprep.subr.mxu0 0.0
    %2819 = vmatpush1.msra.mxu0 %v2796
    %2820 = vmatprep.subr.mxu0 0.0
    %2821 = vmatpush1.msra.mxu0 %v2797
    %2822 = vmatprep.subr.mxu0 0.0
    %2823 = vmatpush1.msra.mxu0 0.0
    %2824 = vmatprep.subr.mxu0 0.0
    %2825 = vmatpush1.msra.mxu0 0.0
    %2826 = vmatprep.subr.mxu0 0.0
    %2827 = vmatpush1.msra.mxu0 0.0
    %2828 = vmatprep.subr.mxu0 0.0
    %2829 = vmatpush1.msra.mxu0 0.0
    %2830 = vmatprep.subr.mxu0 0.0
    %2831 = vmatpush1.msra.mxu0 0.0
    %2832 = vmatprep.subr.mxu0 0.0
    %2833 = vmatpush1.msra.mxu0 0.0
    %2834 = vmatprep.subr.mxu0 0.0
    %2835 = vmatpush1.msra.mxu0 0.0
    %2836 = vmatprep.subr.mxu0 0.0
    %2837 = vmatpush1.msra.mxu0 0.0
    %2838 = vmatprep.subr.mxu0 0.0
    %2839 = vmatpush1.msra.mxu0 0.0
    %2840 = vmatprep.subr.mxu0 0.0
    %2841 = vmatpush1.msra.mxu0 0.0
    %2842 = vmatprep.subr.mxu0 0.0
    %2843 = vmatpush1.msra.mxu0 0.0
    %2844 = vmatprep.subr.mxu0 0.0
    %2845 = vmatpush1.msra.mxu0 0.0
    %2846 = vmatprep.subr.mxu0 0.0
    %2847 = vmatpush1.msra.mxu0 0.0
    %2848 = vmatprep.subr.mxu0 0.0
    %2849 = vmatpush1.msra.mxu0 0.0
    %2850 = vmatprep.subr.mxu0 0.0
    %2851 = vmatpush1.msra.mxu0 0.0
    %2852 = vmatprep.subr.mxu0 0.0
    %2853 = vmatpush1.msra.mxu0 0.0
    %2854 = vmatprep.subr.mxu0 0.0
    %2855 = vmatpush1.msra.mxu0 0.0
    %2856 = vmatprep.subr.mxu0 0.0
    %2857 = vmatpush1.msra.mxu0 0.0
    %2858 = vmatprep.subr.mxu0 0.0
    %2859 = vmatpush1.msra.mxu0 0.0
    %2860 = vmatprep.subr.mxu0 0.0
    %2861 = vmatpush1.msra.mxu0 0.0
    %2862 = vmatprep.subr.mxu0 0.0
    %2863 = vmatpush1.msra.mxu0 0.0
    %2864 = vmatprep.subr.mxu0 0.0
    %2865 = vmatpush1.msra.mxu0 0.0
    %2866 = vmatprep.subr.mxu0 0.0
    %2867 = vmatpush1.msra.mxu0 0.0
    %2868 = vmatprep.subr.mxu0 0.0
    %2869 = vmatpush1.msra.mxu0 0.0
    %2870 = vmatprep.subr.mxu0 0.0
    %2871 = vmatpush1.msra.mxu0 0.0
    %2872 = vmatprep.subr.mxu0 0.0
    %2873 = vmatpush1.msra.mxu0 0.0
    %2874 = vmatprep.subr.mxu0 0.0
    %2875 = vmatpush1.msra.mxu0 0.0
    %2876 = vmatprep.subr.mxu0 0.0
    %2877 = vmatpush1.msra.mxu0 0.0
    %2878 = vmatprep.mubr.f32.mxu0 0.0
    %2879 = vmatmul.mubr.f32.gmra.mrb[0].mxu0 %v2803
    %v2880 = vpop.f32.mrb[0].mxu0
    %v2881 = vadd.f32 %v2801, %v2880
    %v2882 = vpop.f32.mrb[0].mxu0
    %2883 = vmatprep.mubr.f32.mxu0 0.0
    %2884 = vmatmul.mubr.f32.gmra.mrb[0].mxu0 %v2806
    %v2885 = vpop.f32.mrb[0].mxu0
    %v2886 = vadd.f32 %v2801, %v2885
    %v2887 = vpop.f32.mrb[0].mxu0
    %2888 = vmatprep.mubr.f32.mxu0 0.0
    %2889 = vmatmul.mubr.f32.gmra.mrb[0].mxu0 %v2809
    %v2890 = vpop.f32.mrb[0].mxu0
    %v2891 = vadd.f32 %v2801, %v2890
    %v2892 = vpop.f32.mrb[0].mxu0
    %2893 = vmatprep.mubr.f32.mxu0 0.0
    %2894 = vmatmul.mubr.f32.gmra.mrb[0].mxu0 %v2812
    %v2895 = vpop.f32.mrb[0].mxu0
    %v2896 = vadd.f32 %v2801, %v2895
    %v2897 = vpop.f32.mrb[0].mxu0
    %2898 = vdwg.mxu0
    %v2899 = vmax.f32 %v2881, 0.0
    %v2900 = vmax.f32 %v2886, 0.0
    %v2901 = vmax.f32 %v2891, 0.0
    %v2902 = vmax.f32 %v2896, 0.0
    %v2903 = vld [vmem:[%s5] sm:$0xff]
    %v2904 = vld [vmem:[%s5 + $0x8] sm:$0xff]
    %v2905 = vld [vmem:[%s5 + $0x10] sm:$0xff]
    %v2906 = vld [vmem:[%s5 + $0x18] sm:$0xff]
    %v2907 = vld [vmem:[%s5 + $0x20] sm:$0xff]
    %v2908 = vld [vmem:[%s5 + $0x28] sm:$0xff]
    %v2909 = vld [vmem:[%s5 + $0x30] sm:$0xff]
    %v2910 = vld [vmem:[%s5 + $0x38] sm:$0xff]
    %v2911 = vld [vmem:[%s5 + $0x40] sm:$0xff]
    %v2912 = vld [vmem:[%s5 + $0x48] sm:$0xff]
    %v2913 = vld [vmem:[%s5 + $0x50] sm:$0xff]
    %v2914 = vld [vmem:[%s5 + $0x58] sm:$0xff]
    %v2915 = vld [vmem:[%s5 + $0x60] sm:$0xff]
    %v2916 = vld [vmem:[%s5 + $0x68] sm:$0xff]
    %v2917 = vld [vmem:[%s5 + $0x70] sm:$0xff]
    %v2918 = vld [vmem:[%s5 + $0x78] sm:$0xff]
    %v2919 = vlaneseq
    %v2920 = vshrl.u32 %v2919, 7
    %v2921 = vsub.s32 5, %v2920
    %v2922 = vrot.slane %v37, %v2921
    %2923 = vmatprep.subr.mxu0 0.0
    %2924 = vmatpush1.msra.mxu0 %v2903
    %2925 = vmatprep.subr.mxu0 0.0
    %2926 = vmatpush1.msra.mxu0 %v2904
    %2927 = vmatprep.subr.mxu0 0.0
    %2928 = vmatpush1.msra.mxu0 %v2905
    %2929 = vmatprep.subr.mxu0 0.0
    %2930 = vmatpush1.msra.mxu0 %v2906
    %2931 = vmatprep.subr.mxu0 0.0
    %2932 = vmatpush1.msra.mxu0 %v2907
    %2933 = vmatprep.subr.mxu0 0.0
    %2934 = vmatpush1.msra.mxu0 %v2908
    %2935 = vmatprep.subr.mxu0 0.0
    %2936 = vmatpush1.msra.mxu0 %v2909
    %2937 = vmatprep.subr.mxu0 0.0
    %2938 = vmatpush1.msra.mxu0 %v2910
    %2939 = vmatprep.subr.mxu0 0.0
    %2940 = vmatpush1.msra.mxu0 %v2911
    %2941 = vmatprep.subr.mxu0 0.0
    %2942 = vmatpush1.msra.mxu0 %v2912
    %2943 = vmatprep.subr.mxu0 0.0
    %2944 = vmatpush1.msra.mxu0 %v2913
    %2945 = vmatprep.subr.mxu0 0.0
    %2946 = vmatpush1.msra.mxu0 %v2914
    %2947 = vmatprep.subr.mxu0 0.0
    %2948 = vmatpush1.msra.mxu0 %v2915
    %2949 = vmatprep.subr.mxu0 0.0
    %2950 = vmatpush1.msra.mxu0 %v2916
    %2951 = vmatprep.subr.mxu0 0.0
    %2952 = vmatpush1.msra.mxu0 %v2917
    %2953 = vmatprep.subr.mxu0 0.0
    %2954 = vmatpush1.msra.mxu0 %v2918
    %2955 = vmatprep.subr.mxu0 0.0
    %2956 = vmatpush1.msra.mxu0 0.0
    %2957 = vmatprep.subr.mxu0 0.0
    %2958 = vmatpush1.msra.mxu0 0.0
    %2959 = vmatprep.subr.mxu0 0.0
    %2960 = vmatpush1.msra.mxu0 0.0
    %2961 = vmatprep.subr.mxu0 0.0
    %2962 = vmatpush1.msra.mxu0 0.0
    %2963 = vmatprep.subr.mxu0 0.0
    %2964 = vmatpush1.msra.mxu0 0.0
    %2965 = vmatprep.subr.mxu0 0.0
    %2966 = vmatpush1.msra.mxu0 0.0
    %2967 = vmatprep.subr.mxu0 0.0
    %2968 = vmatpush1.msra.mxu0 0.0
    %2969 = vmatprep.subr.mxu0 0.0
    %2970 = vmatpush1.msra.mxu0 0.0
    %2971 = vmatprep.subr.mxu0 0.0
    %2972 = vmatpush1.msra.mxu0 0.0
    %2973 = vmatprep.subr.mxu0 0.0
    %2974 = vmatpush1.msra.mxu0 0.0
    %2975 = vmatprep.subr.mxu0 0.0
    %2976 = vmatpush1.msra.mxu0 0.0
    %2977 = vmatprep.subr.mxu0 0.0
    %2978 = vmatpush1.msra.mxu0 0.0
    %2979 = vmatprep.subr.mxu0 0.0
    %2980 = vmatpush1.msra.mxu0 0.0
    %2981 = vmatprep.subr.mxu0 0.0
    %2982 = vmatpush1.msra.mxu0 0.0
    %2983 = vmatprep.subr.mxu0 0.0
    %2984 = vmatpush1.msra.mxu0 0.0
    %2985 = vmatprep.subr.mxu0 0.0
    %2986 = vmatpush1.msra.mxu0 0.0
    %2987 = vmatprep.mubr.f32.mxu0 0.0
    %2988 = vmatmul.mubr.f32.gmra.mrb[0].mxu0 %v2899
    %v2989 = vpop.f32.mrb[0].mxu0
    %v2990 = vadd.f32 %v2922, %v2989
    %v2991 = vpop.f32.mrb[0].mxu0
    %2992 = vmatprep.mubr.f32.mxu0 0.0
    %2993 = vmatmul.mubr.f32.gmra.mrb[0].mxu0 %v2900
    %v2994 = vpop.f32.mrb[0].mxu0
    %v2995 = vadd.f32 %v2922, %v2994
    %v2996 = vpop.f32.mrb[0].mxu0
    %2997 = vmatprep.mubr.f32.mxu0 0.0
    %2998 = vmatmul.mubr.f32.gmra.mrb[0].mxu0 %v2901
    %v2999 = vpop.f32.mrb[0].mxu0
    %v3000 = vadd.f32 %v2922, %v2999
    %v3001 = vpop.f32.mrb[0].mxu0
    %3002 = vmatprep.mubr.f32.mxu0 0.0
    %3003 = vmatmul.mubr.f32.gmra.mrb[0].mxu0 %v2902
    %v3004 = vpop.f32.mrb[0].mxu0
    %v3005 = vadd.f32 %v2922, %v3004
    %v3006 = vpop.f32.mrb[0].mxu0
    %3007 = vdwg.mxu0
    %v3008 = vadd.f32 %v2790, %v2990
    %v3009 = vadd.f32 %v2791, %v2995
    %v3010 = vadd.f32 %v2792, %v3000
    %v3011 = vadd.f32 %v2793, %v3005
    %v3012 = vsel %vm46, %v3008, 0.0
    %3013 = vadd.xlane.f32.xlu0 %v3012
    %v3014 = vpop.xlane.xlu0 %3013
    %v3015 = vsel %vm46, %v3009, 0.0
    %3016 = vadd.xlane.f32.xlu0 %v3015
    %v3017 = vpop.xlane.xlu0 %3016
    %v3018 = vsel %vm46, %v3010, 0.0
    %3019 = vadd.xlane.f32.xlu0 %v3018
    %v3020 = vpop.xlane.xlu0 %3019
    %v3021 = vsel %vm46, %v3011, 0.0
    %3022 = vadd.xlane.f32.xlu0 %v3021
    %v3023 = vpop.xlane.xlu0 %3022
    %v3024 = vmul.f32 %v3014, %v2737
    %v3025 = vmul.f32 %v3017, %v2737
    %v3026 = vmul.f32 %v3020, %v2737
    %v3027 = vmul.f32 %v3023, %v2737
    %v3028 = vsub.f32 %v3008, %v3024
    %v3029 = vsub.f32 %v3009, %v3025
    %v3030 = vsub.f32 %v3010, %v3026
    %v3031 = vsub.f32 %v3011, %v3027
    %v3032 = vmul.f32 %v3028, %v3028
    %v3033 = vmul.f32 %v3029, %v3029
    %v3034 = vmul.f32 %v3030, %v3030
    %v3035 = vmul.f32 %v3031, %v3031
    %v3036 = vsel %vm46, %v3032, 0.0
    %3037 = vadd.xlane.f32.xlu0 %v3036
    %v3038 = vpop.xlane.xlu0 %3037
    %v3039 = vsel %vm46, %v3033, 0.0
    %3040 = vadd.xlane.f32.xlu0 %v3039
    %v3041 = vpop.xlane.xlu0 %3040
    %v3042 = vsel %vm46, %v3034, 0.0
    %3043 = vadd.xlane.f32.xlu0 %v3042
    %v3044 = vpop.xlane.xlu0 %3043
    %v3045 = vsel %vm46, %v3035, 0.0
    %3046 = vadd.xlane.f32.xlu0 %v3045
    %v3047 = vpop.xlane.xlu0 %3046
    %v3048 = vmul.f32 %v3038, %v2737
    %v3049 = vmul.f32 %v3041, %v2737
    %v3050 = vmul.f32 %v3044, %v2737
    %v3051 = vmul.f32 %v3047, %v2737
    %v3052 = vadd.f32 %v3048, 1e-05
    %v3053 = vadd.f32 %v3049, 1e-05
    %v3054 = vadd.f32 %v3050, 1e-05
    %v3055 = vadd.f32 %v3051, 1e-05
    %v3056 = vrsqrt.pop %v3052
    %v3057 = vrsqrt.pop %v3053
    %v3058 = vrsqrt.pop %v3054
    %v3059 = vrsqrt.pop %v3055
    %v3060 = vmul.f32 %v3028, %v3056
    %v3061 = vmul.f32 %v3029, %v3057
    %v3062 = vmul.f32 %v3030, %v3058
    %v3063 = vmul.f32 %v3031, %v3059
    %v3064 = vlaneseq
    %v3065 = vshrl.u32 %v3064, 7
    %v3066 = vsub.s32 3, %v3065
    %v3067 = vrot.slane %v37, %v3066
    %v3068 = vmul.f32 %v3060, %v3067
    %v3069 = vmul.f32 %v3061, %v3067
    %v3070 = vmul.f32 %v3062, %v3067
    %v3071 = vmul.f32 %v3063, %v3067
    %v3072 = vlaneseq
    %v3073 = vshrl.u32 %v3072, 7
    %v3074 = vsub.s32 4, %v3073
    %v3075 = vrot.slane %v37, %v3074
    %v3076 = vadd.f32 %v3068, %v3075
    %v3077 = vadd.f32 %v3069, %v3075
    %v3078 = vadd.f32 %v3070, %v3075
    %v3079 = vadd.f32 %v3071, %v3075
    %3080 = vst.msk [vmem:[#allocation2] sm:$0xff] %vm46, %v3076
    %3081 = vst.msk [vmem:[#allocation2 + $0x8] sm:$0xff] %vm46, %v3077
    %s3082 = scalar_lea.vmem [#allocation2], 16
    %3083 = vst.msk [vmem:[%s3082] sm:$0xff] %vm46, %v3078
    %3084 = vst.msk [vmem:[%s3082 + $0x8] sm:$0xff] %vm46, %v3079
    // Predicated region
    $region30: #{tpu_custom_call.1} parent=1 // pred_check
      _
    $region31: #{tpu_custom_call.1} parent=1 // pred_check_branch
      %3086 = sbr.rel (0) target = $region33
    $region32: #{tpu_custom_call.1} parent=1 // pred_region
      %s3088 = ssub.s32 512, 512
      %3089 = vsyncadd [#allocation3], %s3088
      %s3090 = sshll.u32 [#allocation2], 4
      %s3091 = int_to_ptr.vmem [resolvable:$true] %s3090
      %3096 = dma.vmem_to_hbm [thread:$0]  %s3091, 512, %s7, [#allocation3], 128, 128, 8
    $region33: #{tpu_custom_call.1} parent=1 // pred_fallthru
      _
    // Predicated region
    $region34: #{tpu_custom_call.1} parent=1 // pred_check
      _
    $region35: #{tpu_custom_call.1} parent=1 // pred_check_branch
      %3098 = sbr.rel (0) target = $region37
    $region36: #{tpu_custom_call.1} parent=1 // pred_region
      %s3100 = ssub.s32 6144, 6144
      %3101 = vsyncadd [#allocation5], %s3100
      %s3102 = sshll.u32 [#allocation4], 4
      %s3103 = int_to_ptr.vmem [resolvable:$true] %s3102
      %3108 = dma.vmem_to_hbm [thread:$0]  %s3103, 6144, %s8, [#allocation5], 128, 128, 8
    $region37: #{tpu_custom_call.1} parent=1 // pred_fallthru
      _
    // Predicated region
    $region38: #{tpu_custom_call.1} parent=1 // pred_check
      _
    $region39: #{tpu_custom_call.1} parent=1 // pred_check_branch
      %3110 = sbr.rel (0) target = $region41
    $region40: #{tpu_custom_call.1} parent=1 // pred_region
      %3111 = dma.done [#allocation3], 512
    $region41: #{tpu_custom_call.1} parent=1 // pred_fallthru
      _
    // Predicated region
    $region42: #{tpu_custom_call.1} parent=1 // pred_check
      _
    $region43: #{tpu_custom_call.1} parent=1 // pred_check_branch
      %3113 = sbr.rel (0) target = $region45
    $region44: #{tpu_custom_call.1} parent=1 // pred_region
      %3114 = dma.done [#allocation5], 6144
    $region45: #{tpu_custom_call.1} parent=1 // pred_fallthru
      _
    %3115 = vsyncpa [#allocation3], 1
    %3116 = vsyncpa [#allocation5], 1

</llo_original>
